<compile_context>
chip_gen: v7x
topology: tpu7x:2x2x1
jax: 0.10.0
libtpu: 0.0.40
codegen_flags: <defaults>
</compile_context>

<pallas_src>
import functools

import jax
import jax.numpy as jnp
from jax.experimental import pallas as pl
from jax.experimental.pallas import tpu as pltpu


def _bn_kernel(x_ref, gamma_ref, beta_ref, o_ref, *, eps, n_reduce):
    # x_ref: (N, C_TILE, HW);  gamma/beta: (1, C_TILE, 1) f32.
    x = x_ref[...].astype(jnp.float32)
    inv_n = 1.0 / float(n_reduce)
    mean = jnp.sum(x, axis=(0, 2), keepdims=True) * inv_n            # (1, C_TILE, 1)
    centered = x - mean
    var = jnp.sum(centered * centered, axis=(0, 2), keepdims=True) * inv_n  # biased
    scale = gamma_ref[...] * jax.lax.rsqrt(var + eps)                # (1, C_TILE, 1)
    o_ref[...] = (centered * scale + beta_ref[...]).astype(o_ref.dtype)


def _channel_tile(C):
    """One block per TensorCore: full C on 1-TC chips, C/2 on v7x (2 TCs)."""
    c_tile = C
    try:
        kind = jax.devices()[0].device_kind.lower()
        if "v7" in kind and C % 2 == 0 and (C // 2) % 8 == 0:
            c_tile = C // 2
    except Exception:
        pass
    return c_tile


def batchnorm2d_pallas(x, gamma, beta, *, eps=1e-5, c_tile=None):
    """BatchNorm2d forward (training-mode batch statistics) via Pallas.

    x: (N, C, H, W);  gamma, beta: (C,).
    """
    N, C, H, W = x.shape
    hw = H * W
    nhw = N * hw

    if c_tile is None:
        c_tile = _channel_tile(C)
    assert C % c_tile == 0
    if c_tile != C:
        # Partial channel blocks must respect the (8, 128) sublane tiling.
        assert c_tile % 8 == 0

    # Free reshapes only — no transposes, even for N > 1.
    x3 = x.reshape(N, C, hw)
    gamma3 = gamma.reshape(1, C, 1).astype(jnp.float32)
    beta3 = beta.reshape(1, C, 1).astype(jnp.float32)

    kernel = functools.partial(_bn_kernel, eps=eps, n_reduce=nhw)

    out3 = pl.pallas_call(
        kernel,
        out_shape=jax.ShapeDtypeStruct((N, C, hw), x.dtype),
        grid=(C // c_tile,),
        in_specs=[
            pl.BlockSpec((N, c_tile, hw), lambda i: (0, i, 0)),
            pl.BlockSpec((1, c_tile, 1), lambda i: (0, i, 0)),
            pl.BlockSpec((1, c_tile, 1), lambda i: (0, i, 0)),
        ],
        out_specs=pl.BlockSpec((N, c_tile, hw), lambda i: (0, i, 0)),
        compiler_params=pltpu.CompilerParams(
            dimension_semantics=("parallel",),
        ),
    )(x3, gamma3, beta3)

    return out3.reshape(N, C, H, W)


def _reference(x, gamma, beta, eps=1e-5):
    mean = jnp.mean(x, axis=(0, 2, 3), keepdims=True)
    var = jnp.var(x, axis=(0, 2, 3), keepdims=True)  # biased
    g = gamma.reshape(1, -1, 1, 1)
    b = beta.reshape(1, -1, 1, 1)
    return (x - mean) * jax.lax.rsqrt(var + eps) * g + b


if __name__ == "__main__":
    key = jax.random.PRNGKey(0)
    kx, kg, kb = jax.random.split(key, 3)

    # Shapes implied by the module: BatchNorm2d(960) applied to (1, 960, 14, 14).
    N, C, H, W = 1, 960, 14, 14
    x = jax.random.normal(kx, (N, C, H, W), dtype=jnp.float32)
    gamma = 1.0 + 0.1 * jax.random.normal(kg, (C,), dtype=jnp.float32)
    beta = 0.1 * jax.random.normal(kb, (C,), dtype=jnp.float32)

    y = batchnorm2d_pallas(x, gamma, beta)
    y = jax.block_until_ready(y)

    y_ref = _reference(x, gamma, beta)
    assert y.shape == (N, C, H, W)
    assert jnp.allclose(y, y_ref, atol=1e-4, rtol=1e-4), "mismatch vs reference"

    print("KERNEL_OK")
</pallas_src>

<mosaic_0001>
module attributes {stable_mosaic.version = 11 : i64} {
  func.func @_bn_kernel(%arg0: i32, %arg1: memref<1x960x196xf32, #tpu.memory_space<vmem>>, %arg2: memref<1x960x1xf32, #tpu.memory_space<vmem>>, %arg3: memref<1x960x1xf32, #tpu.memory_space<vmem>>, %arg4: memref<1x960x196xf32, #tpu.memory_space<vmem>>) attributes {dimension_semantics = [#tpu.dimension_semantics<parallel>], iteration_bounds = array<i64: 1>, scalar_prefetch = 0 : i64, scratch_operands = 0 : i64, tpu.core_type = #tpu.core_type<tc>, window_params = [{transform_indices = @transform_0, window_bounds = array<i64: 1, 960, 196>}, {transform_indices = @transform_1, window_bounds = array<i64: 1, 960, 1>}, {transform_indices = @transform_2, window_bounds = array<i64: 1, 960, 1>}, {transform_indices = @transform_3, window_bounds = array<i64: 1, 960, 196>}]} {
    %c0 = arith.constant 0 : index
    %c0_0 = arith.constant 0 : index
    %c0_1 = arith.constant 0 : index
    %0 = vector.load %arg1[%c0, %c0_0, %c0_1] : memref<1x960x196xf32, #tpu.memory_space<vmem>>, vector<1x960x196xf32>
    %cst = arith.constant dense<0.000000e+00> : vector<960xf32>
    %1 = vector.multi_reduction <add>, %0, %cst [0, 2] : vector<1x960x196xf32> to vector<960xf32>
    %2 = vector.shape_cast %1 : vector<960xf32> to vector<1x960x1xf32>
    %cst_2 = arith.constant 0.00510204071 : f32
    %3 = vector.broadcast %cst_2 : f32 to vector<1x960x1xf32>
    %4 = arith.mulf %2, %3 : vector<1x960x1xf32>
    %5 = vector.broadcast %4 : vector<1x960x1xf32> to vector<1x960x196xf32>
    %6 = arith.subf %0, %5 : vector<1x960x196xf32>
    %7 = arith.mulf %6, %6 : vector<1x960x196xf32>
    %cst_3 = arith.constant dense<0.000000e+00> : vector<960xf32>
    %8 = vector.multi_reduction <add>, %7, %cst_3 [0, 2] : vector<1x960x196xf32> to vector<960xf32>
    %9 = vector.shape_cast %8 : vector<960xf32> to vector<1x960x1xf32>
    %cst_4 = arith.constant 0.00510204071 : f32
    %10 = vector.broadcast %cst_4 : f32 to vector<1x960x1xf32>
    %11 = arith.mulf %9, %10 : vector<1x960x1xf32>
    %c0_5 = arith.constant 0 : index
    %c0_6 = arith.constant 0 : index
    %c0_7 = arith.constant 0 : index
    %12 = vector.load %arg2[%c0_5, %c0_6, %c0_7] : memref<1x960x1xf32, #tpu.memory_space<vmem>>, vector<1x960x1xf32>
    %cst_8 = arith.constant 9.99999974E-6 : f32
    %13 = vector.broadcast %cst_8 : f32 to vector<1x960x1xf32>
    %14 = arith.addf %11, %13 : vector<1x960x1xf32>
    %15 = math.rsqrt %14 : vector<1x960x1xf32>
    %16 = arith.mulf %12, %15 : vector<1x960x1xf32>
    %17 = vector.broadcast %16 : vector<1x960x1xf32> to vector<1x960x196xf32>
    %18 = arith.mulf %6, %17 : vector<1x960x196xf32>
    %c0_9 = arith.constant 0 : index
    %c0_10 = arith.constant 0 : index
    %c0_11 = arith.constant 0 : index
    %19 = vector.load %arg3[%c0_9, %c0_10, %c0_11] : memref<1x960x1xf32, #tpu.memory_space<vmem>>, vector<1x960x1xf32>
    %20 = vector.broadcast %19 : vector<1x960x1xf32> to vector<1x960x196xf32>
    %21 = arith.addf %18, %20 : vector<1x960x196xf32>
    %c0_12 = arith.constant 0 : index
    %c0_13 = arith.constant 0 : index
    %c0_14 = arith.constant 0 : index
    %22 = vector.load %arg4[%c0_12, %c0_13, %c0_14] : memref<1x960x196xf32, #tpu.memory_space<vmem>>, vector<1x960x196xf32>
    tpu.vector_store %arg4[%c0_12, %c0_13, %c0_14], %21 {strides = array<i32>} : memref<1x960x196xf32, #tpu.memory_space<vmem>>, vector<1x960x196xf32>,
    return
  }
  func.func @transform_0(%arg0: i32) -> (i32, i32, i32) {
    %c0_i32 = arith.constant 0 : i32
    %c0_i32_0 = arith.constant 0 : i32
    %c0_i32_1 = arith.constant 0 : i32
    return %c0_i32, %arg0, %c0_i32_0 : i32, i32, i32
  }
  func.func @transform_1(%arg0: i32) -> (i32, i32, i32) {
    %c0_i32 = arith.constant 0 : i32
    %c0_i32_0 = arith.constant 0 : i32
    %c0_i32_1 = arith.constant 0 : i32
    return %c0_i32, %arg0, %c0_i32_0 : i32, i32, i32
  }
  func.func @transform_2(%arg0: i32) -> (i32, i32, i32) {
    %c0_i32 = arith.constant 0 : i32
    %c0_i32_0 = arith.constant 0 : i32
    %c0_i32_1 = arith.constant 0 : i32
    return %c0_i32, %arg0, %c0_i32_0 : i32, i32, i32
  }
  func.func @transform_3(%arg0: i32) -> (i32, i32, i32) {
    %c0_i32 = arith.constant 0 : i32
    %c0_i32_0 = arith.constant 0 : i32
    %c0_i32_1 = arith.constant 0 : i32
    return %c0_i32, %arg0, %c0_i32_0 : i32, i32, i32
  }
}

</mosaic_0001>

<llo_original>
// kernel: tpu_custom_call.1
$region0: #{tpu_custom_call.1}
  #allocation0 [shape = 'u32[]', space=smem, size = 0x4, offset = 0x4, fixed_abs, tag = 'smem constant byte address 0x4 - core index']
  #allocation1 [shape = 'u32[144,128]{1,0:T(1,128)}', space=vmem, size = 0x12000, scoped, tag = 'internal scratch']
  %s0 = inlined_call_operand.vmem [shape: f32[1,960,196], index: 0, kind: input, shape index: {}]
  %s1 = inlined_call_operand.vmem [shape: f32[1,960,1], index: 1, kind: input, shape index: {}]
  %s2 = inlined_call_operand.vmem [shape: f32[1,960,1], index: 2, kind: input, shape index: {}]
  %s3 = inlined_call_operand.vmem [shape: f32[1,960,196], index: 3, kind: output, shape index: {}]
  %s4 = sld [smem:[#allocation0]]
  $region22: #{tpu_custom_call.1} parent=0
    _
  %s6 = ssub.s32 1, %s4
  %s7 = scalar_select 0, %s6, %s4
  // Predicated region
  $region2: #{tpu_custom_call.1} parent=0 // pred_check
    _
  $region3: #{tpu_custom_call.1} parent=0 // pred_check_branch
    %9 = sbr.rel (0) target = $region5
  $region4: #{tpu_custom_call.1} parent=0 // pred_region
    _
  $region5: #{tpu_custom_call.1} parent=0 // pred_fallthru
    _
  // Predicated region
  $region6: #{tpu_custom_call.1} parent=0 // pred_check
    _
  $region7: #{tpu_custom_call.1} parent=0 // pred_check_branch
    %11 = sbr.rel (0) target = $region9
  $region8: #{tpu_custom_call.1} parent=0 // pred_region
    _
  $region9: #{tpu_custom_call.1} parent=0 // pred_fallthru
    _
  // Predicated region
  $region10: #{tpu_custom_call.1} parent=0 // pred_check
    _
  $region11: #{tpu_custom_call.1} parent=0 // pred_check_branch
    %13 = sbr.rel (0) target = $region13
  $region12: #{tpu_custom_call.1} parent=0 // pred_region
    _
  $region13: #{tpu_custom_call.1} parent=0 // pred_fallthru
    _
  %v14 = vld [vmem:[%s0] sm:$0xff]
  %v15 = vld [vmem:[%s0 + $0x8] sm:$0xff]
  %v16 = vld [vmem:[%s0 + $0x10] sm:$0xff]
  %v17 = vld [vmem:[%s0 + $0x18] sm:$0xff]
  %v18 = vld [vmem:[%s0 + $0x20] sm:$0xff]
  %v19 = vld [vmem:[%s0 + $0x28] sm:$0xff]
  %v20 = vld [vmem:[%s0 + $0x30] sm:$0xff]
  %v21 = vld [vmem:[%s0 + $0x38] sm:$0xff]
  %v22 = vld [vmem:[%s0 + $0x40] sm:$0xff]
  %v23 = vld [vmem:[%s0 + $0x48] sm:$0xff]
  %v24 = vld [vmem:[%s0 + $0x50] sm:$0xff]
  %v25 = vld [vmem:[%s0 + $0x58] sm:$0xff]
  %v26 = vld [vmem:[%s0 + $0x60] sm:$0xff]
  %v27 = vld [vmem:[%s0 + $0x68] sm:$0xff]
  %v28 = vld [vmem:[%s0 + $0x70] sm:$0xff]
  %v29 = vld [vmem:[%s0 + $0x78] sm:$0xff]
  %v30 = vld [vmem:[%s0 + $0x80] sm:$0xff]
  %v31 = vld [vmem:[%s0 + $0x88] sm:$0xff]
  %v32 = vld [vmem:[%s0 + $0x90] sm:$0xff]
  %v33 = vld [vmem:[%s0 + $0x98] sm:$0xff]
  %v34 = vld [vmem:[%s0 + $0xa0] sm:$0xff]
  %v35 = vld [vmem:[%s0 + $0xa8] sm:$0xff]
  %v36 = vld [vmem:[%s0 + $0xb0] sm:$0xff]
  %v37 = vld [vmem:[%s0 + $0xb8] sm:$0xff]
  %v38 = vld [vmem:[%s0 + $0xc0] sm:$0xff]
  %v39 = vld [vmem:[%s0 + $0xc8] sm:$0xff]
  %v40 = vld [vmem:[%s0 + $0xd0] sm:$0xff]
  %v41 = vld [vmem:[%s0 + $0xd8] sm:$0xff]
  %v42 = vld [vmem:[%s0 + $0xe0] sm:$0xff]
  %v43 = vld [vmem:[%s0 + $0xe8] sm:$0xff]
  %v44 = vld [vmem:[%s0 + $0xf0] sm:$0xff]
  %v45 = vld [vmem:[%s0 + $0xf8] sm:$0xff]
  %v46 = vld [vmem:[%s0 + $0x100] sm:$0xff]
  %v47 = vld [vmem:[%s0 + $0x108] sm:$0xff]
  %v48 = vld [vmem:[%s0 + $0x110] sm:$0xff]
  %v49 = vld [vmem:[%s0 + $0x118] sm:$0xff]
  %v50 = vld [vmem:[%s0 + $0x120] sm:$0xff]
  %v51 = vld [vmem:[%s0 + $0x128] sm:$0xff]
  %v52 = vld [vmem:[%s0 + $0x130] sm:$0xff]
  %v53 = vld [vmem:[%s0 + $0x138] sm:$0xff]
  %v54 = vld [vmem:[%s0 + $0x140] sm:$0xff]
  %v55 = vld [vmem:[%s0 + $0x148] sm:$0xff]
  %v56 = vld [vmem:[%s0 + $0x150] sm:$0xff]
  %v57 = vld [vmem:[%s0 + $0x158] sm:$0xff]
  %v58 = vld [vmem:[%s0 + $0x160] sm:$0xff]
  %v59 = vld [vmem:[%s0 + $0x168] sm:$0xff]
  %v60 = vld [vmem:[%s0 + $0x170] sm:$0xff]
  %v61 = vld [vmem:[%s0 + $0x178] sm:$0xff]
  %v62 = vld [vmem:[%s0 + $0x180] sm:$0xff]
  %v63 = vld [vmem:[%s0 + $0x188] sm:$0xff]
  %v64 = vld [vmem:[%s0 + $0x190] sm:$0xff]
  %v65 = vld [vmem:[%s0 + $0x198] sm:$0xff]
  %v66 = vld [vmem:[%s0 + $0x1a0] sm:$0xff]
  %v67 = vld [vmem:[%s0 + $0x1a8] sm:$0xff]
  %v68 = vld [vmem:[%s0 + $0x1b0] sm:$0xff]
  %v69 = vld [vmem:[%s0 + $0x1b8] sm:$0xff]
  %v70 = vld [vmem:[%s0 + $0x1c0] sm:$0xff]
  %v71 = vld [vmem:[%s0 + $0x1c8] sm:$0xff]
  %v72 = vld [vmem:[%s0 + $0x1d0] sm:$0xff]
  %v73 = vld [vmem:[%s0 + $0x1d8] sm:$0xff]
  %v74 = vld [vmem:[%s0 + $0x1e0] sm:$0xff]
  %v75 = vld [vmem:[%s0 + $0x1e8] sm:$0xff]
  %v76 = vld [vmem:[%s0 + $0x1f0] sm:$0xff]
  %v77 = vld [vmem:[%s0 + $0x1f8] sm:$0xff]
  %v78 = vld [vmem:[%s0 + $0x200] sm:$0xff]
  %v79 = vld [vmem:[%s0 + $0x208] sm:$0xff]
  %v80 = vld [vmem:[%s0 + $0x210] sm:$0xff]
  %v81 = vld [vmem:[%s0 + $0x218] sm:$0xff]
  %v82 = vld [vmem:[%s0 + $0x220] sm:$0xff]
  %v83 = vld [vmem:[%s0 + $0x228] sm:$0xff]
  %v84 = vld [vmem:[%s0 + $0x230] sm:$0xff]
  %v85 = vld [vmem:[%s0 + $0x238] sm:$0xff]
  %v86 = vld [vmem:[%s0 + $0x240] sm:$0xff]
  %v87 = vld [vmem:[%s0 + $0x248] sm:$0xff]
  %v88 = vld [vmem:[%s0 + $0x250] sm:$0xff]
  %v89 = vld [vmem:[%s0 + $0x258] sm:$0xff]
  %v90 = vld [vmem:[%s0 + $0x260] sm:$0xff]
  %v91 = vld [vmem:[%s0 + $0x268] sm:$0xff]
  %v92 = vld [vmem:[%s0 + $0x270] sm:$0xff]
  %v93 = vld [vmem:[%s0 + $0x278] sm:$0xff]
  %v94 = vld [vmem:[%s0 + $0x280] sm:$0xff]
  %v95 = vld [vmem:[%s0 + $0x288] sm:$0xff]
  %v96 = vld [vmem:[%s0 + $0x290] sm:$0xff]
  %v97 = vld [vmem:[%s0 + $0x298] sm:$0xff]
  %v98 = vld [vmem:[%s0 + $0x2a0] sm:$0xff]
  %v99 = vld [vmem:[%s0 + $0x2a8] sm:$0xff]
  %v100 = vld [vmem:[%s0 + $0x2b0] sm:$0xff]
  %v101 = vld [vmem:[%s0 + $0x2b8] sm:$0xff]
  %v102 = vld [vmem:[%s0 + $0x2c0] sm:$0xff]
  %v103 = vld [vmem:[%s0 + $0x2c8] sm:$0xff]
  %v104 = vld [vmem:[%s0 + $0x2d0] sm:$0xff]
  %v105 = vld [vmem:[%s0 + $0x2d8] sm:$0xff]
  %v106 = vld [vmem:[%s0 + $0x2e0] sm:$0xff]
  %v107 = vld [vmem:[%s0 + $0x2e8] sm:$0xff]
  %v108 = vld [vmem:[%s0 + $0x2f0] sm:$0xff]
  %v109 = vld [vmem:[%s0 + $0x2f8] sm:$0xff]
  %v110 = vld [vmem:[%s0 + $0x300] sm:$0xff]
  %v111 = vld [vmem:[%s0 + $0x308] sm:$0xff]
  %v112 = vld [vmem:[%s0 + $0x310] sm:$0xff]
  %v113 = vld [vmem:[%s0 + $0x318] sm:$0xff]
  %v114 = vld [vmem:[%s0 + $0x320] sm:$0xff]
  %v115 = vld [vmem:[%s0 + $0x328] sm:$0xff]
  %v116 = vld [vmem:[%s0 + $0x330] sm:$0xff]
  %v117 = vld [vmem:[%s0 + $0x338] sm:$0xff]
  %v118 = vld [vmem:[%s0 + $0x340] sm:$0xff]
  %v119 = vld [vmem:[%s0 + $0x348] sm:$0xff]
  %v120 = vld [vmem:[%s0 + $0x350] sm:$0xff]
  %v121 = vld [vmem:[%s0 + $0x358] sm:$0xff]
  %v122 = vld [vmem:[%s0 + $0x360] sm:$0xff]
  %v123 = vld [vmem:[%s0 + $0x368] sm:$0xff]
  %v124 = vld [vmem:[%s0 + $0x370] sm:$0xff]
  %v125 = vld [vmem:[%s0 + $0x378] sm:$0xff]
  %v126 = vld [vmem:[%s0 + $0x380] sm:$0xff]
  %v127 = vld [vmem:[%s0 + $0x388] sm:$0xff]
  %v128 = vld [vmem:[%s0 + $0x390] sm:$0xff]
  %v129 = vld [vmem:[%s0 + $0x398] sm:$0xff]
  %v130 = vld [vmem:[%s0 + $0x3a0] sm:$0xff]
  %v131 = vld [vmem:[%s0 + $0x3a8] sm:$0xff]
  %v132 = vld [vmem:[%s0 + $0x3b0] sm:$0xff]
  %v133 = vld [vmem:[%s0 + $0x3b8] sm:$0xff]
  %v134 = vld [vmem:[%s0 + $0x3c0] sm:$0xff]
  %v135 = vld [vmem:[%s0 + $0x3c8] sm:$0xff]
  %v136 = vld [vmem:[%s0 + $0x3d0] sm:$0xff]
  %v137 = vld [vmem:[%s0 + $0x3d8] sm:$0xff]
  %v138 = vld [vmem:[%s0 + $0x3e0] sm:$0xff]
  %v139 = vld [vmem:[%s0 + $0x3e8] sm:$0xff]
  %v140 = vld [vmem:[%s0 + $0x3f0] sm:$0xff]
  %v141 = vld [vmem:[%s0 + $0x3f8] sm:$0xff]
  %v142 = vld [vmem:[%s0 + $0x400] sm:$0xff]
  %v143 = vld [vmem:[%s0 + $0x408] sm:$0xff]
  %v144 = vld [vmem:[%s0 + $0x410] sm:$0xff]
  %v145 = vld [vmem:[%s0 + $0x418] sm:$0xff]
  %v146 = vld [vmem:[%s0 + $0x420] sm:$0xff]
  %v147 = vld [vmem:[%s0 + $0x428] sm:$0xff]
  %v148 = vld [vmem:[%s0 + $0x430] sm:$0xff]
  %v149 = vld [vmem:[%s0 + $0x438] sm:$0xff]
  %v150 = vld [vmem:[%s0 + $0x440] sm:$0xff]
  %v151 = vld [vmem:[%s0 + $0x448] sm:$0xff]
  %v152 = vld [vmem:[%s0 + $0x450] sm:$0xff]
  %v153 = vld [vmem:[%s0 + $0x458] sm:$0xff]
  %v154 = vld [vmem:[%s0 + $0x460] sm:$0xff]
  %v155 = vld [vmem:[%s0 + $0x468] sm:$0xff]
  %v156 = vld [vmem:[%s0 + $0x470] sm:$0xff]
  %v157 = vld [vmem:[%s0 + $0x478] sm:$0xff]
  %v158 = vld [vmem:[%s0 + $0x480] sm:$0xff]
  %v159 = vld [vmem:[%s0 + $0x488] sm:$0xff]
  %v160 = vld [vmem:[%s0 + $0x490] sm:$0xff]
  %v161 = vld [vmem:[%s0 + $0x498] sm:$0xff]
  %v162 = vld [vmem:[%s0 + $0x4a0] sm:$0xff]
  %v163 = vld [vmem:[%s0 + $0x4a8] sm:$0xff]
  %v164 = vld [vmem:[%s0 + $0x4b0] sm:$0xff]
  %v165 = vld [vmem:[%s0 + $0x4b8] sm:$0xff]
  %v166 = vld [vmem:[%s0 + $0x4c0] sm:$0xff]
  %v167 = vld [vmem:[%s0 + $0x4c8] sm:$0xff]
  %v168 = vld [vmem:[%s0 + $0x4d0] sm:$0xff]
  %v169 = vld [vmem:[%s0 + $0x4d8] sm:$0xff]
  %v170 = vld [vmem:[%s0 + $0x4e0] sm:$0xff]
  %v171 = vld [vmem:[%s0 + $0x4e8] sm:$0xff]
  %v172 = vld [vmem:[%s0 + $0x4f0] sm:$0xff]
  %v173 = vld [vmem:[%s0 + $0x4f8] sm:$0xff]
  %v174 = vld [vmem:[%s0 + $0x500] sm:$0xff]
  %v175 = vld [vmem:[%s0 + $0x508] sm:$0xff]
  %v176 = vld [vmem:[%s0 + $0x510] sm:$0xff]
  %v177 = vld [vmem:[%s0 + $0x518] sm:$0xff]
  %v178 = vld [vmem:[%s0 + $0x520] sm:$0xff]
  %v179 = vld [vmem:[%s0 + $0x528] sm:$0xff]
  %v180 = vld [vmem:[%s0 + $0x530] sm:$0xff]
  %v181 = vld [vmem:[%s0 + $0x538] sm:$0xff]
  %v182 = vld [vmem:[%s0 + $0x540] sm:$0xff]
  %v183 = vld [vmem:[%s0 + $0x548] sm:$0xff]
  %v184 = vld [vmem:[%s0 + $0x550] sm:$0xff]
  %v185 = vld [vmem:[%s0 + $0x558] sm:$0xff]
  %v186 = vld [vmem:[%s0 + $0x560] sm:$0xff]
  %v187 = vld [vmem:[%s0 + $0x568] sm:$0xff]
  %v188 = vld [vmem:[%s0 + $0x570] sm:$0xff]
  %v189 = vld [vmem:[%s0 + $0x578] sm:$0xff]
  %v190 = vld [vmem:[%s0 + $0x580] sm:$0xff]
  %v191 = vld [vmem:[%s0 + $0x588] sm:$0xff]
  %v192 = vld [vmem:[%s0 + $0x590] sm:$0xff]
  %v193 = vld [vmem:[%s0 + $0x598] sm:$0xff]
  %v194 = vld [vmem:[%s0 + $0x5a0] sm:$0xff]
  %v195 = vld [vmem:[%s0 + $0x5a8] sm:$0xff]
  %v196 = vld [vmem:[%s0 + $0x5b0] sm:$0xff]
  %v197 = vld [vmem:[%s0 + $0x5b8] sm:$0xff]
  %v198 = vld [vmem:[%s0 + $0x5c0] sm:$0xff]
  %v199 = vld [vmem:[%s0 + $0x5c8] sm:$0xff]
  %v200 = vld [vmem:[%s0 + $0x5d0] sm:$0xff]
  %v201 = vld [vmem:[%s0 + $0x5d8] sm:$0xff]
  %v202 = vld [vmem:[%s0 + $0x5e0] sm:$0xff]
  %v203 = vld [vmem:[%s0 + $0x5e8] sm:$0xff]
  %v204 = vld [vmem:[%s0 + $0x5f0] sm:$0xff]
  %v205 = vld [vmem:[%s0 + $0x5f8] sm:$0xff]
  %v206 = vld [vmem:[%s0 + $0x600] sm:$0xff]
  %v207 = vld [vmem:[%s0 + $0x608] sm:$0xff]
  %v208 = vld [vmem:[%s0 + $0x610] sm:$0xff]
  %v209 = vld [vmem:[%s0 + $0x618] sm:$0xff]
  %v210 = vld [vmem:[%s0 + $0x620] sm:$0xff]
  %v211 = vld [vmem:[%s0 + $0x628] sm:$0xff]
  %v212 = vld [vmem:[%s0 + $0x630] sm:$0xff]
  %v213 = vld [vmem:[%s0 + $0x638] sm:$0xff]
  %v214 = vld [vmem:[%s0 + $0x640] sm:$0xff]
  %v215 = vld [vmem:[%s0 + $0x648] sm:$0xff]
  %v216 = vld [vmem:[%s0 + $0x650] sm:$0xff]
  %v217 = vld [vmem:[%s0 + $0x658] sm:$0xff]
  %v218 = vld [vmem:[%s0 + $0x660] sm:$0xff]
  %v219 = vld [vmem:[%s0 + $0x668] sm:$0xff]
  %v220 = vld [vmem:[%s0 + $0x670] sm:$0xff]
  %v221 = vld [vmem:[%s0 + $0x678] sm:$0xff]
  %v222 = vld [vmem:[%s0 + $0x680] sm:$0xff]
  %v223 = vld [vmem:[%s0 + $0x688] sm:$0xff]
  %v224 = vld [vmem:[%s0 + $0x690] sm:$0xff]
  %v225 = vld [vmem:[%s0 + $0x698] sm:$0xff]
  %v226 = vld [vmem:[%s0 + $0x6a0] sm:$0xff]
  %v227 = vld [vmem:[%s0 + $0x6a8] sm:$0xff]
  %v228 = vld [vmem:[%s0 + $0x6b0] sm:$0xff]
  %v229 = vld [vmem:[%s0 + $0x6b8] sm:$0xff]
  %v230 = vld [vmem:[%s0 + $0x6c0] sm:$0xff]
  %v231 = vld [vmem:[%s0 + $0x6c8] sm:$0xff]
  %v232 = vld [vmem:[%s0 + $0x6d0] sm:$0xff]
  %v233 = vld [vmem:[%s0 + $0x6d8] sm:$0xff]
  %v234 = vld [vmem:[%s0 + $0x6e0] sm:$0xff]
  %v235 = vld [vmem:[%s0 + $0x6e8] sm:$0xff]
  %v236 = vld [vmem:[%s0 + $0x6f0] sm:$0xff]
  %v237 = vld [vmem:[%s0 + $0x6f8] sm:$0xff]
  %v238 = vld [vmem:[%s0 + $0x700] sm:$0xff]
  %v239 = vld [vmem:[%s0 + $0x708] sm:$0xff]
  %v240 = vld [vmem:[%s0 + $0x710] sm:$0xff]
  %v241 = vld [vmem:[%s0 + $0x718] sm:$0xff]
  %v242 = vld [vmem:[%s0 + $0x720] sm:$0xff]
  %v243 = vld [vmem:[%s0 + $0x728] sm:$0xff]
  %v244 = vld [vmem:[%s0 + $0x730] sm:$0xff]
  %v245 = vld [vmem:[%s0 + $0x738] sm:$0xff]
  %v246 = vld [vmem:[%s0 + $0x740] sm:$0xff]
  %v247 = vld [vmem:[%s0 + $0x748] sm:$0xff]
  %v248 = vld [vmem:[%s0 + $0x750] sm:$0xff]
  %v249 = vld [vmem:[%s0 + $0x758] sm:$0xff]
  %v250 = vld [vmem:[%s0 + $0x760] sm:$0xff]
  %v251 = vld [vmem:[%s0 + $0x768] sm:$0xff]
  %v252 = vld [vmem:[%s0 + $0x770] sm:$0xff]
  %v253 = vld [vmem:[%s0 + $0x778] sm:$0xff]
  %vm254 = vcmask 556032
  %v255 = vsel %vm254, %v15, 0.0
  %v256 = vadd.f32 %v14, %v255
  %257 = vadd.xlane.f32.xlu0 %v256
  %v258 = vpop.xlane.xlu0 %257
  %v259 = vsel %vm254, %v17, 0.0
  %v260 = vadd.f32 %v16, %v259
  %261 = vadd.xlane.f32.xlu0 %v260
  %v262 = vpop.xlane.xlu0 %261
  %v263 = vsel %vm254, %v19, 0.0
  %v264 = vadd.f32 %v18, %v263
  %265 = vadd.xlane.f32.xlu0 %v264
  %v266 = vpop.xlane.xlu0 %265
  %v267 = vsel %vm254, %v21, 0.0
  %v268 = vadd.f32 %v20, %v267
  %269 = vadd.xlane.f32.xlu0 %v268
  %v270 = vpop.xlane.xlu0 %269
  %v271 = vsel %vm254, %v23, 0.0
  %v272 = vadd.f32 %v22, %v271
  %273 = vadd.xlane.f32.xlu0 %v272
  %v274 = vpop.xlane.xlu0 %273
  %v275 = vsel %vm254, %v25, 0.0
  %v276 = vadd.f32 %v24, %v275
  %277 = vadd.xlane.f32.xlu0 %v276
  %v278 = vpop.xlane.xlu0 %277
  %v279 = vsel %vm254, %v27, 0.0
  %v280 = vadd.f32 %v26, %v279
  %281 = vadd.xlane.f32.xlu0 %v280
  %v282 = vpop.xlane.xlu0 %281
  %v283 = vsel %vm254, %v29, 0.0
  %v284 = vadd.f32 %v28, %v283
  %285 = vadd.xlane.f32.xlu0 %v284
  %v286 = vpop.xlane.xlu0 %285
  %v287 = vsel %vm254, %v31, 0.0
  %v288 = vadd.f32 %v30, %v287
  %289 = vadd.xlane.f32.xlu0 %v288
  %v290 = vpop.xlane.xlu0 %289
  %v291 = vsel %vm254, %v33, 0.0
  %v292 = vadd.f32 %v32, %v291
  %293 = vadd.xlane.f32.xlu0 %v292
  %v294 = vpop.xlane.xlu0 %293
  %v295 = vsel %vm254, %v35, 0.0
  %v296 = vadd.f32 %v34, %v295
  %297 = vadd.xlane.f32.xlu0 %v296
  %v298 = vpop.xlane.xlu0 %297
  %v299 = vsel %vm254, %v37, 0.0
  %v300 = vadd.f32 %v36, %v299
  %301 = vadd.xlane.f32.xlu0 %v300
  %v302 = vpop.xlane.xlu0 %301
  %v303 = vsel %vm254, %v39, 0.0
  %v304 = vadd.f32 %v38, %v303
  %305 = vadd.xlane.f32.xlu0 %v304
  %v306 = vpop.xlane.xlu0 %305
  %v307 = vsel %vm254, %v41, 0.0
  %v308 = vadd.f32 %v40, %v307
  %309 = vadd.xlane.f32.xlu0 %v308
  %v310 = vpop.xlane.xlu0 %309
  %v311 = vsel %vm254, %v43, 0.0
  %v312 = vadd.f32 %v42, %v311
  %313 = vadd.xlane.f32.xlu0 %v312
  %v314 = vpop.xlane.xlu0 %313
  %v315 = vsel %vm254, %v45, 0.0
  %v316 = vadd.f32 %v44, %v315
  %317 = vadd.xlane.f32.xlu0 %v316
  %v318 = vpop.xlane.xlu0 %317
  %v319 = vsel %vm254, %v47, 0.0
  %v320 = vadd.f32 %v46, %v319
  %321 = vadd.xlane.f32.xlu0 %v320
  %v322 = vpop.xlane.xlu0 %321
  %v323 = vsel %vm254, %v49, 0.0
  %v324 = vadd.f32 %v48, %v323
  %325 = vadd.xlane.f32.xlu0 %v324
  %v326 = vpop.xlane.xlu0 %325
  %v327 = vsel %vm254, %v51, 0.0
  %v328 = vadd.f32 %v50, %v327
  %329 = vadd.xlane.f32.xlu0 %v328
  %v330 = vpop.xlane.xlu0 %329
  %v331 = vsel %vm254, %v53, 0.0
  %v332 = vadd.f32 %v52, %v331
  %333 = vadd.xlane.f32.xlu0 %v332
  %v334 = vpop.xlane.xlu0 %333
  %v335 = vsel %vm254, %v55, 0.0
  %v336 = vadd.f32 %v54, %v335
  %337 = vadd.xlane.f32.xlu0 %v336
  %v338 = vpop.xlane.xlu0 %337
  %v339 = vsel %vm254, %v57, 0.0
  %v340 = vadd.f32 %v56, %v339
  %341 = vadd.xlane.f32.xlu0 %v340
  %v342 = vpop.xlane.xlu0 %341
  %v343 = vsel %vm254, %v59, 0.0
  %v344 = vadd.f32 %v58, %v343
  %345 = vadd.xlane.f32.xlu0 %v344
  %v346 = vpop.xlane.xlu0 %345
  %v347 = vsel %vm254, %v61, 0.0
  %v348 = vadd.f32 %v60, %v347
  %349 = vadd.xlane.f32.xlu0 %v348
  %v350 = vpop.xlane.xlu0 %349
  %v351 = vsel %vm254, %v63, 0.0
  %v352 = vadd.f32 %v62, %v351
  %353 = vadd.xlane.f32.xlu0 %v352
  %v354 = vpop.xlane.xlu0 %353
  %v355 = vsel %vm254, %v65, 0.0
  %v356 = vadd.f32 %v64, %v355
  %357 = vadd.xlane.f32.xlu0 %v356
  %v358 = vpop.xlane.xlu0 %357
  %v359 = vsel %vm254, %v67, 0.0
  %v360 = vadd.f32 %v66, %v359
  %361 = vadd.xlane.f32.xlu0 %v360
  %v362 = vpop.xlane.xlu0 %361
  %v363 = vsel %vm254, %v69, 0.0
  %v364 = vadd.f32 %v68, %v363
  %365 = vadd.xlane.f32.xlu0 %v364
  %v366 = vpop.xlane.xlu0 %365
  %v367 = vsel %vm254, %v71, 0.0
  %v368 = vadd.f32 %v70, %v367
  %369 = vadd.xlane.f32.xlu0 %v368
  %v370 = vpop.xlane.xlu0 %369
  %v371 = vsel %vm254, %v73, 0.0
  %v372 = vadd.f32 %v72, %v371
  %373 = vadd.xlane.f32.xlu0 %v372
  %v374 = vpop.xlane.xlu0 %373
  %v375 = vsel %vm254, %v75, 0.0
  %v376 = vadd.f32 %v74, %v375
  %377 = vadd.xlane.f32.xlu0 %v376
  %v378 = vpop.xlane.xlu0 %377
  %v379 = vsel %vm254, %v77, 0.0
  %v380 = vadd.f32 %v76, %v379
  %381 = vadd.xlane.f32.xlu0 %v380
  %v382 = vpop.xlane.xlu0 %381
  %v383 = vsel %vm254, %v79, 0.0
  %v384 = vadd.f32 %v78, %v383
  %385 = vadd.xlane.f32.xlu0 %v384
  %v386 = vpop.xlane.xlu0 %385
  %v387 = vsel %vm254, %v81, 0.0
  %v388 = vadd.f32 %v80, %v387
  %389 = vadd.xlane.f32.xlu0 %v388
  %v390 = vpop.xlane.xlu0 %389
  %v391 = vsel %vm254, %v83, 0.0
  %v392 = vadd.f32 %v82, %v391
  %393 = vadd.xlane.f32.xlu0 %v392
  %v394 = vpop.xlane.xlu0 %393
  %v395 = vsel %vm254, %v85, 0.0
  %v396 = vadd.f32 %v84, %v395
  %397 = vadd.xlane.f32.xlu0 %v396
  %v398 = vpop.xlane.xlu0 %397
  %v399 = vsel %vm254, %v87, 0.0
  %v400 = vadd.f32 %v86, %v399
  %401 = vadd.xlane.f32.xlu0 %v400
  %v402 = vpop.xlane.xlu0 %401
  %v403 = vsel %vm254, %v89, 0.0
  %v404 = vadd.f32 %v88, %v403
  %405 = vadd.xlane.f32.xlu0 %v404
  %v406 = vpop.xlane.xlu0 %405
  %v407 = vsel %vm254, %v91, 0.0
  %v408 = vadd.f32 %v90, %v407
  %409 = vadd.xlane.f32.xlu0 %v408
  %v410 = vpop.xlane.xlu0 %409
  %v411 = vsel %vm254, %v93, 0.0
  %v412 = vadd.f32 %v92, %v411
  %413 = vadd.xlane.f32.xlu0 %v412
  %v414 = vpop.xlane.xlu0 %413
  %v415 = vsel %vm254, %v95, 0.0
  %v416 = vadd.f32 %v94, %v415
  %417 = vadd.xlane.f32.xlu0 %v416
  %v418 = vpop.xlane.xlu0 %417
  %v419 = vsel %vm254, %v97, 0.0
  %v420 = vadd.f32 %v96, %v419
  %421 = vadd.xlane.f32.xlu0 %v420
  %v422 = vpop.xlane.xlu0 %421
  %v423 = vsel %vm254, %v99, 0.0
  %v424 = vadd.f32 %v98, %v423
  %425 = vadd.xlane.f32.xlu0 %v424
  %v426 = vpop.xlane.xlu0 %425
  %v427 = vsel %vm254, %v101, 0.0
  %v428 = vadd.f32 %v100, %v427
  %429 = vadd.xlane.f32.xlu0 %v428
  %v430 = vpop.xlane.xlu0 %429
  %v431 = vsel %vm254, %v103, 0.0
  %v432 = vadd.f32 %v102, %v431
  %433 = vadd.xlane.f32.xlu0 %v432
  %v434 = vpop.xlane.xlu0 %433
  %v435 = vsel %vm254, %v105, 0.0
  %v436 = vadd.f32 %v104, %v435
  %437 = vadd.xlane.f32.xlu0 %v436
  %v438 = vpop.xlane.xlu0 %437
  %v439 = vsel %vm254, %v107, 0.0
  %v440 = vadd.f32 %v106, %v439
  %441 = vadd.xlane.f32.xlu0 %v440
  %v442 = vpop.xlane.xlu0 %441
  %v443 = vsel %vm254, %v109, 0.0
  %v444 = vadd.f32 %v108, %v443
  %445 = vadd.xlane.f32.xlu0 %v444
  %v446 = vpop.xlane.xlu0 %445
  %v447 = vsel %vm254, %v111, 0.0
  %v448 = vadd.f32 %v110, %v447
  %449 = vadd.xlane.f32.xlu0 %v448
  %v450 = vpop.xlane.xlu0 %449
  %v451 = vsel %vm254, %v113, 0.0
  %v452 = vadd.f32 %v112, %v451
  %453 = vadd.xlane.f32.xlu0 %v452
  %v454 = vpop.xlane.xlu0 %453
  %v455 = vsel %vm254, %v115, 0.0
  %v456 = vadd.f32 %v114, %v455
  %457 = vadd.xlane.f32.xlu0 %v456
  %v458 = vpop.xlane.xlu0 %457
  %v459 = vsel %vm254, %v117, 0.0
  %v460 = vadd.f32 %v116, %v459
  %461 = vadd.xlane.f32.xlu0 %v460
  %v462 = vpop.xlane.xlu0 %461
  %v463 = vsel %vm254, %v119, 0.0
  %v464 = vadd.f32 %v118, %v463
  %465 = vadd.xlane.f32.xlu0 %v464
  %v466 = vpop.xlane.xlu0 %465
  %v467 = vsel %vm254, %v121, 0.0
  %v468 = vadd.f32 %v120, %v467
  %469 = vadd.xlane.f32.xlu0 %v468
  %v470 = vpop.xlane.xlu0 %469
  %v471 = vsel %vm254, %v123, 0.0
  %v472 = vadd.f32 %v122, %v471
  %473 = vadd.xlane.f32.xlu0 %v472
  %v474 = vpop.xlane.xlu0 %473
  %v475 = vsel %vm254, %v125, 0.0
  %v476 = vadd.f32 %v124, %v475
  %477 = vadd.xlane.f32.xlu0 %v476
  %v478 = vpop.xlane.xlu0 %477
  %v479 = vsel %vm254, %v127, 0.0
  %v480 = vadd.f32 %v126, %v479
  %481 = vadd.xlane.f32.xlu0 %v480
  %v482 = vpop.xlane.xlu0 %481
  %v483 = vsel %vm254, %v129, 0.0
  %v484 = vadd.f32 %v128, %v483
  %485 = vadd.xlane.f32.xlu0 %v484
  %v486 = vpop.xlane.xlu0 %485
  %v487 = vsel %vm254, %v131, 0.0
  %v488 = vadd.f32 %v130, %v487
  %489 = vadd.xlane.f32.xlu0 %v488
  %v490 = vpop.xlane.xlu0 %489
  %v491 = vsel %vm254, %v133, 0.0
  %v492 = vadd.f32 %v132, %v491
  %493 = vadd.xlane.f32.xlu0 %v492
  %v494 = vpop.xlane.xlu0 %493
  %v495 = vsel %vm254, %v135, 0.0
  %v496 = vadd.f32 %v134, %v495
  %497 = vadd.xlane.f32.xlu0 %v496
  %v498 = vpop.xlane.xlu0 %497
  %v499 = vsel %vm254, %v137, 0.0
  %v500 = vadd.f32 %v136, %v499
  %501 = vadd.xlane.f32.xlu0 %v500
  %v502 = vpop.xlane.xlu0 %501
  %v503 = vsel %vm254, %v139, 0.0
  %v504 = vadd.f32 %v138, %v503
  %505 = vadd.xlane.f32.xlu0 %v504
  %v506 = vpop.xlane.xlu0 %505
  %v507 = vsel %vm254, %v141, 0.0
  %v508 = vadd.f32 %v140, %v507
  %509 = vadd.xlane.f32.xlu0 %v508
  %v510 = vpop.xlane.xlu0 %509
  %v511 = vsel %vm254, %v143, 0.0
  %v512 = vadd.f32 %v142, %v511
  %513 = vadd.xlane.f32.xlu0 %v512
  %v514 = vpop.xlane.xlu0 %513
  %v515 = vsel %vm254, %v145, 0.0
  %v516 = vadd.f32 %v144, %v515
  %517 = vadd.xlane.f32.xlu0 %v516
  %v518 = vpop.xlane.xlu0 %517
  %v519 = vsel %vm254, %v147, 0.0
  %v520 = vadd.f32 %v146, %v519
  %521 = vadd.xlane.f32.xlu0 %v520
  %v522 = vpop.xlane.xlu0 %521
  %v523 = vsel %vm254, %v149, 0.0
  %v524 = vadd.f32 %v148, %v523
  %525 = vadd.xlane.f32.xlu0 %v524
  %v526 = vpop.xlane.xlu0 %525
  %v527 = vsel %vm254, %v151, 0.0
  %v528 = vadd.f32 %v150, %v527
  %529 = vadd.xlane.f32.xlu0 %v528
  %v530 = vpop.xlane.xlu0 %529
  %v531 = vsel %vm254, %v153, 0.0
  %v532 = vadd.f32 %v152, %v531
  %533 = vadd.xlane.f32.xlu0 %v532
  %v534 = vpop.xlane.xlu0 %533
  %v535 = vsel %vm254, %v155, 0.0
  %v536 = vadd.f32 %v154, %v535
  %537 = vadd.xlane.f32.xlu0 %v536
  %v538 = vpop.xlane.xlu0 %537
  %v539 = vsel %vm254, %v157, 0.0
  %v540 = vadd.f32 %v156, %v539
  %541 = vadd.xlane.f32.xlu0 %v540
  %v542 = vpop.xlane.xlu0 %541
  %v543 = vsel %vm254, %v159, 0.0
  %v544 = vadd.f32 %v158, %v543
  %545 = vadd.xlane.f32.xlu0 %v544
  %v546 = vpop.xlane.xlu0 %545
  %v547 = vsel %vm254, %v161, 0.0
  %v548 = vadd.f32 %v160, %v547
  %549 = vadd.xlane.f32.xlu0 %v548
  %v550 = vpop.xlane.xlu0 %549
  %v551 = vsel %vm254, %v163, 0.0
  %v552 = vadd.f32 %v162, %v551
  %553 = vadd.xlane.f32.xlu0 %v552
  %v554 = vpop.xlane.xlu0 %553
  %v555 = vsel %vm254, %v165, 0.0
  %v556 = vadd.f32 %v164, %v555
  %557 = vadd.xlane.f32.xlu0 %v556
  %v558 = vpop.xlane.xlu0 %557
  %v559 = vsel %vm254, %v167, 0.0
  %v560 = vadd.f32 %v166, %v559
  %561 = vadd.xlane.f32.xlu0 %v560
  %v562 = vpop.xlane.xlu0 %561
  %v563 = vsel %vm254, %v169, 0.0
  %v564 = vadd.f32 %v168, %v563
  %565 = vadd.xlane.f32.xlu0 %v564
  %v566 = vpop.xlane.xlu0 %565
  %v567 = vsel %vm254, %v171, 0.0
  %v568 = vadd.f32 %v170, %v567
  %569 = vadd.xlane.f32.xlu0 %v568
  %v570 = vpop.xlane.xlu0 %569
  %v571 = vsel %vm254, %v173, 0.0
  %v572 = vadd.f32 %v172, %v571
  %573 = vadd.xlane.f32.xlu0 %v572
  %v574 = vpop.xlane.xlu0 %573
  %v575 = vsel %vm254, %v175, 0.0
  %v576 = vadd.f32 %v174, %v575
  %577 = vadd.xlane.f32.xlu0 %v576
  %v578 = vpop.xlane.xlu0 %577
  %v579 = vsel %vm254, %v177, 0.0
  %v580 = vadd.f32 %v176, %v579
  %581 = vadd.xlane.f32.xlu0 %v580
  %v582 = vpop.xlane.xlu0 %581
  %v583 = vsel %vm254, %v179, 0.0
  %v584 = vadd.f32 %v178, %v583
  %585 = vadd.xlane.f32.xlu0 %v584
  %v586 = vpop.xlane.xlu0 %585
  %v587 = vsel %vm254, %v181, 0.0
  %v588 = vadd.f32 %v180, %v587
  %589 = vadd.xlane.f32.xlu0 %v588
  %v590 = vpop.xlane.xlu0 %589
  %v591 = vsel %vm254, %v183, 0.0
  %v592 = vadd.f32 %v182, %v591
  %593 = vadd.xlane.f32.xlu0 %v592
  %v594 = vpop.xlane.xlu0 %593
  %v595 = vsel %vm254, %v185, 0.0
  %v596 = vadd.f32 %v184, %v595
  %597 = vadd.xlane.f32.xlu0 %v596
  %v598 = vpop.xlane.xlu0 %597
  %v599 = vsel %vm254, %v187, 0.0
  %v600 = vadd.f32 %v186, %v599
  %601 = vadd.xlane.f32.xlu0 %v600
  %v602 = vpop.xlane.xlu0 %601
  %v603 = vsel %vm254, %v189, 0.0
  %v604 = vadd.f32 %v188, %v603
  %605 = vadd.xlane.f32.xlu0 %v604
  %v606 = vpop.xlane.xlu0 %605
  %v607 = vsel %vm254, %v191, 0.0
  %v608 = vadd.f32 %v190, %v607
  %609 = vadd.xlane.f32.xlu0 %v608
  %v610 = vpop.xlane.xlu0 %609
  %v611 = vsel %vm254, %v193, 0.0
  %v612 = vadd.f32 %v192, %v611
  %613 = vadd.xlane.f32.xlu0 %v612
  %v614 = vpop.xlane.xlu0 %613
  %v615 = vsel %vm254, %v195, 0.0
  %v616 = vadd.f32 %v194, %v615
  %617 = vadd.xlane.f32.xlu0 %v616
  %v618 = vpop.xlane.xlu0 %617
  %v619 = vsel %vm254, %v197, 0.0
  %v620 = vadd.f32 %v196, %v619
  %621 = vadd.xlane.f32.xlu0 %v620
  %v622 = vpop.xlane.xlu0 %621
  %v623 = vsel %vm254, %v199, 0.0
  %v624 = vadd.f32 %v198, %v623
  %625 = vadd.xlane.f32.xlu0 %v624
  %v626 = vpop.xlane.xlu0 %625
  %v627 = vsel %vm254, %v201, 0.0
  %v628 = vadd.f32 %v200, %v627
  %629 = vadd.xlane.f32.xlu0 %v628
  %v630 = vpop.xlane.xlu0 %629
  %v631 = vsel %vm254, %v203, 0.0
  %v632 = vadd.f32 %v202, %v631
  %633 = vadd.xlane.f32.xlu0 %v632
  %v634 = vpop.xlane.xlu0 %633
  %v635 = vsel %vm254, %v205, 0.0
  %v636 = vadd.f32 %v204, %v635
  %637 = vadd.xlane.f32.xlu0 %v636
  %v638 = vpop.xlane.xlu0 %637
  %v639 = vsel %vm254, %v207, 0.0
  %v640 = vadd.f32 %v206, %v639
  %641 = vadd.xlane.f32.xlu0 %v640
  %v642 = vpop.xlane.xlu0 %641
  %v643 = vsel %vm254, %v209, 0.0
  %v644 = vadd.f32 %v208, %v643
  %645 = vadd.xlane.f32.xlu0 %v644
  %v646 = vpop.xlane.xlu0 %645
  %v647 = vsel %vm254, %v211, 0.0
  %v648 = vadd.f32 %v210, %v647
  %649 = vadd.xlane.f32.xlu0 %v648
  %v650 = vpop.xlane.xlu0 %649
  %v651 = vsel %vm254, %v213, 0.0
  %v652 = vadd.f32 %v212, %v651
  %653 = vadd.xlane.f32.xlu0 %v652
  %v654 = vpop.xlane.xlu0 %653
  %v655 = vsel %vm254, %v215, 0.0
  %v656 = vadd.f32 %v214, %v655
  %657 = vadd.xlane.f32.xlu0 %v656
  %v658 = vpop.xlane.xlu0 %657
  %v659 = vsel %vm254, %v217, 0.0
  %v660 = vadd.f32 %v216, %v659
  %661 = vadd.xlane.f32.xlu0 %v660
  %v662 = vpop.xlane.xlu0 %661
  %v663 = vsel %vm254, %v219, 0.0
  %v664 = vadd.f32 %v218, %v663
  %665 = vadd.xlane.f32.xlu0 %v664
  %v666 = vpop.xlane.xlu0 %665
  %v667 = vsel %vm254, %v221, 0.0
  %v668 = vadd.f32 %v220, %v667
  %669 = vadd.xlane.f32.xlu0 %v668
  %v670 = vpop.xlane.xlu0 %669
  %v671 = vsel %vm254, %v223, 0.0
  %v672 = vadd.f32 %v222, %v671
  %673 = vadd.xlane.f32.xlu0 %v672
  %v674 = vpop.xlane.xlu0 %673
  %v675 = vsel %vm254, %v225, 0.0
  %v676 = vadd.f32 %v224, %v675
  %677 = vadd.xlane.f32.xlu0 %v676
  %v678 = vpop.xlane.xlu0 %677
  %v679 = vsel %vm254, %v227, 0.0
  %v680 = vadd.f32 %v226, %v679
  %681 = vadd.xlane.f32.xlu0 %v680
  %v682 = vpop.xlane.xlu0 %681
  %v683 = vsel %vm254, %v229, 0.0
  %v684 = vadd.f32 %v228, %v683
  %685 = vadd.xlane.f32.xlu0 %v684
  %v686 = vpop.xlane.xlu0 %685
  %v687 = vsel %vm254, %v231, 0.0
  %v688 = vadd.f32 %v230, %v687
  %689 = vadd.xlane.f32.xlu0 %v688
  %v690 = vpop.xlane.xlu0 %689
  %v691 = vsel %vm254, %v233, 0.0
  %v692 = vadd.f32 %v232, %v691
  %693 = vadd.xlane.f32.xlu0 %v692
  %v694 = vpop.xlane.xlu0 %693
  %v695 = vsel %vm254, %v235, 0.0
  %v696 = vadd.f32 %v234, %v695
  %697 = vadd.xlane.f32.xlu0 %v696
  %v698 = vpop.xlane.xlu0 %697
  %v699 = vsel %vm254, %v237, 0.0
  %v700 = vadd.f32 %v236, %v699
  %701 = vadd.xlane.f32.xlu0 %v700
  %v702 = vpop.xlane.xlu0 %701
  %v703 = vsel %vm254, %v239, 0.0
  %v704 = vadd.f32 %v238, %v703
  %705 = vadd.xlane.f32.xlu0 %v704
  %v706 = vpop.xlane.xlu0 %705
  %v707 = vsel %vm254, %v241, 0.0
  %v708 = vadd.f32 %v240, %v707
  %709 = vadd.xlane.f32.xlu0 %v708
  %v710 = vpop.xlane.xlu0 %709
  %v711 = vsel %vm254, %v243, 0.0
  %v712 = vadd.f32 %v242, %v711
  %713 = vadd.xlane.f32.xlu0 %v712
  %v714 = vpop.xlane.xlu0 %713
  %v715 = vsel %vm254, %v245, 0.0
  %v716 = vadd.f32 %v244, %v715
  %717 = vadd.xlane.f32.xlu0 %v716
  %v718 = vpop.xlane.xlu0 %717
  %v719 = vsel %vm254, %v247, 0.0
  %v720 = vadd.f32 %v246, %v719
  %721 = vadd.xlane.f32.xlu0 %v720
  %v722 = vpop.xlane.xlu0 %721
  %v723 = vsel %vm254, %v249, 0.0
  %v724 = vadd.f32 %v248, %v723
  %725 = vadd.xlane.f32.xlu0 %v724
  %v726 = vpop.xlane.xlu0 %725
  %v727 = vsel %vm254, %v251, 0.0
  %v728 = vadd.f32 %v250, %v727
  %729 = vadd.xlane.f32.xlu0 %v728
  %v730 = vpop.xlane.xlu0 %729
  %v731 = vsel %vm254, %v253, 0.0
  %v732 = vadd.f32 %v252, %v731
  %733 = vadd.xlane.f32.xlu0 %v732
  %v734 = vpop.xlane.xlu0 %733
  %v735 = vmul.f32 %v258, 0.0051020407
  %v736 = vmul.f32 %v262, 0.0051020407
  %v737 = vmul.f32 %v266, 0.0051020407
  %v738 = vmul.f32 %v270, 0.0051020407
  %v739 = vmul.f32 %v274, 0.0051020407
  %v740 = vmul.f32 %v278, 0.0051020407
  %v741 = vmul.f32 %v282, 0.0051020407
  %v742 = vmul.f32 %v286, 0.0051020407
  %v743 = vmul.f32 %v290, 0.0051020407
  %v744 = vmul.f32 %v294, 0.0051020407
  %v745 = vmul.f32 %v298, 0.0051020407
  %v746 = vmul.f32 %v302, 0.0051020407
  %v747 = vmul.f32 %v306, 0.0051020407
  %v748 = vmul.f32 %v310, 0.0051020407
  %v749 = vmul.f32 %v314, 0.0051020407
  %v750 = vmul.f32 %v318, 0.0051020407
  %v751 = vmul.f32 %v322, 0.0051020407
  %v752 = vmul.f32 %v326, 0.0051020407
  %v753 = vmul.f32 %v330, 0.0051020407
  %v754 = vmul.f32 %v334, 0.0051020407
  %v755 = vmul.f32 %v338, 0.0051020407
  %v756 = vmul.f32 %v342, 0.0051020407
  %v757 = vmul.f32 %v346, 0.0051020407
  %v758 = vmul.f32 %v350, 0.0051020407
  %v759 = vmul.f32 %v354, 0.0051020407
  %v760 = vmul.f32 %v358, 0.0051020407
  %v761 = vmul.f32 %v362, 0.0051020407
  %v762 = vmul.f32 %v366, 0.0051020407
  %v763 = vmul.f32 %v370, 0.0051020407
  %v764 = vmul.f32 %v374, 0.0051020407
  %v765 = vmul.f32 %v378, 0.0051020407
  %v766 = vmul.f32 %v382, 0.0051020407
  %v767 = vmul.f32 %v386, 0.0051020407
  %v768 = vmul.f32 %v390, 0.0051020407
  %v769 = vmul.f32 %v394, 0.0051020407
  %v770 = vmul.f32 %v398, 0.0051020407
  %v771 = vmul.f32 %v402, 0.0051020407
  %v772 = vmul.f32 %v406, 0.0051020407
  %v773 = vmul.f32 %v410, 0.0051020407
  %v774 = vmul.f32 %v414, 0.0051020407
  %v775 = vmul.f32 %v418, 0.0051020407
  %v776 = vmul.f32 %v422, 0.0051020407
  %v777 = vmul.f32 %v426, 0.0051020407
  %v778 = vmul.f32 %v430, 0.0051020407
  %v779 = vmul.f32 %v434, 0.0051020407
  %v780 = vmul.f32 %v438, 0.0051020407
  %v781 = vmul.f32 %v442, 0.0051020407
  %v782 = vmul.f32 %v446, 0.0051020407
  %v783 = vmul.f32 %v450, 0.0051020407
  %v784 = vmul.f32 %v454, 0.0051020407
  %v785 = vmul.f32 %v458, 0.0051020407
  %v786 = vmul.f32 %v462, 0.0051020407
  %v787 = vmul.f32 %v466, 0.0051020407
  %v788 = vmul.f32 %v470, 0.0051020407
  %v789 = vmul.f32 %v474, 0.0051020407
  %v790 = vmul.f32 %v478, 0.0051020407
  %v791 = vmul.f32 %v482, 0.0051020407
  %v792 = vmul.f32 %v486, 0.0051020407
  %v793 = vmul.f32 %v490, 0.0051020407
  %v794 = vmul.f32 %v494, 0.0051020407
  %v795 = vmul.f32 %v498, 0.0051020407
  %v796 = vmul.f32 %v502, 0.0051020407
  %v797 = vmul.f32 %v506, 0.0051020407
  %v798 = vmul.f32 %v510, 0.0051020407
  %v799 = vmul.f32 %v514, 0.0051020407
  %v800 = vmul.f32 %v518, 0.0051020407
  %v801 = vmul.f32 %v522, 0.0051020407
  %v802 = vmul.f32 %v526, 0.0051020407
  %v803 = vmul.f32 %v530, 0.0051020407
  %v804 = vmul.f32 %v534, 0.0051020407
  %v805 = vmul.f32 %v538, 0.0051020407
  %v806 = vmul.f32 %v542, 0.0051020407
  %v807 = vmul.f32 %v546, 0.0051020407
  %v808 = vmul.f32 %v550, 0.0051020407
  %v809 = vmul.f32 %v554, 0.0051020407
  %v810 = vmul.f32 %v558, 0.0051020407
  %v811 = vmul.f32 %v562, 0.0051020407
  %v812 = vmul.f32 %v566, 0.0051020407
  %v813 = vmul.f32 %v570, 0.0051020407
  %v814 = vmul.f32 %v574, 0.0051020407
  %v815 = vmul.f32 %v578, 0.0051020407
  %v816 = vmul.f32 %v582, 0.0051020407
  %v817 = vmul.f32 %v586, 0.0051020407
  %v818 = vmul.f32 %v590, 0.0051020407
  %v819 = vmul.f32 %v594, 0.0051020407
  %v820 = vmul.f32 %v598, 0.0051020407
  %v821 = vmul.f32 %v602, 0.0051020407
  %v822 = vmul.f32 %v606, 0.0051020407
  %v823 = vmul.f32 %v610, 0.0051020407
  %v824 = vmul.f32 %v614, 0.0051020407
  %v825 = vmul.f32 %v618, 0.0051020407
  %v826 = vmul.f32 %v622, 0.0051020407
  %v827 = vmul.f32 %v626, 0.0051020407
  %v828 = vmul.f32 %v630, 0.0051020407
  %v829 = vmul.f32 %v634, 0.0051020407
  %v830 = vmul.f32 %v638, 0.0051020407
  %v831 = vmul.f32 %v642, 0.0051020407
  %v832 = vmul.f32 %v646, 0.0051020407
  %v833 = vmul.f32 %v650, 0.0051020407
  %v834 = vmul.f32 %v654, 0.0051020407
  %v835 = vmul.f32 %v658, 0.0051020407
  %v836 = vmul.f32 %v662, 0.0051020407
  %v837 = vmul.f32 %v666, 0.0051020407
  %v838 = vmul.f32 %v670, 0.0051020407
  %v839 = vmul.f32 %v674, 0.0051020407
  %v840 = vmul.f32 %v678, 0.0051020407
  %v841 = vmul.f32 %v682, 0.0051020407
  %v842 = vmul.f32 %v686, 0.0051020407
  %v843 = vmul.f32 %v690, 0.0051020407
  %v844 = vmul.f32 %v694, 0.0051020407
  %v845 = vmul.f32 %v698, 0.0051020407
  %v846 = vmul.f32 %v702, 0.0051020407
  %v847 = vmul.f32 %v706, 0.0051020407
  %v848 = vmul.f32 %v710, 0.0051020407
  %v849 = vmul.f32 %v714, 0.0051020407
  %v850 = vmul.f32 %v718, 0.0051020407
  %v851 = vmul.f32 %v722, 0.0051020407
  %v852 = vmul.f32 %v726, 0.0051020407
  %v853 = vmul.f32 %v730, 0.0051020407
  %v854 = vmul.f32 %v734, 0.0051020407
  %v855 = vsub.f32 %v14, %v735
  %v856 = vsub.f32 %v15, %v735
  %v857 = vsub.f32 %v16, %v736
  %v858 = vsub.f32 %v17, %v736
  %v859 = vsub.f32 %v18, %v737
  %v860 = vsub.f32 %v19, %v737
  %v861 = vsub.f32 %v20, %v738
  %v862 = vsub.f32 %v21, %v738
  %v863 = vsub.f32 %v22, %v739
  %v864 = vsub.f32 %v23, %v739
  %v865 = vsub.f32 %v24, %v740
  %v866 = vsub.f32 %v25, %v740
  %v867 = vsub.f32 %v26, %v741
  %v868 = vsub.f32 %v27, %v741
  %v869 = vsub.f32 %v28, %v742
  %v870 = vsub.f32 %v29, %v742
  %v871 = vsub.f32 %v30, %v743
  %v872 = vsub.f32 %v31, %v743
  %v873 = vsub.f32 %v32, %v744
  %v874 = vsub.f32 %v33, %v744
  %v875 = vsub.f32 %v34, %v745
  %v876 = vsub.f32 %v35, %v745
  %v877 = vsub.f32 %v36, %v746
  %v878 = vsub.f32 %v37, %v746
  %v879 = vsub.f32 %v38, %v747
  %v880 = vsub.f32 %v39, %v747
  %v881 = vsub.f32 %v40, %v748
  %v882 = vsub.f32 %v41, %v748
  %v883 = vsub.f32 %v42, %v749
  %v884 = vsub.f32 %v43, %v749
  %v885 = vsub.f32 %v44, %v750
  %v886 = vsub.f32 %v45, %v750
  %v887 = vsub.f32 %v46, %v751
  %v888 = vsub.f32 %v47, %v751
  %v889 = vsub.f32 %v48, %v752
  %v890 = vsub.f32 %v49, %v752
  %v891 = vsub.f32 %v50, %v753
  %v892 = vsub.f32 %v51, %v753
  %v893 = vsub.f32 %v52, %v754
  %v894 = vsub.f32 %v53, %v754
  %v895 = vsub.f32 %v54, %v755
  %v896 = vsub.f32 %v55, %v755
  %v897 = vsub.f32 %v56, %v756
  %v898 = vsub.f32 %v57, %v756
  %v899 = vsub.f32 %v58, %v757
  %v900 = vsub.f32 %v59, %v757
  %v901 = vsub.f32 %v60, %v758
  %v902 = vsub.f32 %v61, %v758
  %v903 = vsub.f32 %v62, %v759
  %v904 = vsub.f32 %v63, %v759
  %v905 = vsub.f32 %v64, %v760
  %v906 = vsub.f32 %v65, %v760
  %v907 = vsub.f32 %v66, %v761
  %v908 = vsub.f32 %v67, %v761
  %v909 = vsub.f32 %v68, %v762
  %v910 = vsub.f32 %v69, %v762
  %v911 = vsub.f32 %v70, %v763
  %v912 = vsub.f32 %v71, %v763
  %v913 = vsub.f32 %v72, %v764
  %v914 = vsub.f32 %v73, %v764
  %v915 = vsub.f32 %v74, %v765
  %v916 = vsub.f32 %v75, %v765
  %v917 = vsub.f32 %v76, %v766
  %v918 = vsub.f32 %v77, %v766
  %v919 = vsub.f32 %v78, %v767
  %v920 = vsub.f32 %v79, %v767
  %v921 = vsub.f32 %v80, %v768
  %v922 = vsub.f32 %v81, %v768
  %v923 = vsub.f32 %v82, %v769
  %v924 = vsub.f32 %v83, %v769
  %v925 = vsub.f32 %v84, %v770
  %v926 = vsub.f32 %v85, %v770
  %v927 = vsub.f32 %v86, %v771
  %v928 = vsub.f32 %v87, %v771
  %v929 = vsub.f32 %v88, %v772
  %v930 = vsub.f32 %v89, %v772
  %v931 = vsub.f32 %v90, %v773
  %v932 = vsub.f32 %v91, %v773
  %v933 = vsub.f32 %v92, %v774
  %v934 = vsub.f32 %v93, %v774
  %v935 = vsub.f32 %v94, %v775
  %v936 = vsub.f32 %v95, %v775
  %v937 = vsub.f32 %v96, %v776
  %v938 = vsub.f32 %v97, %v776
  %v939 = vsub.f32 %v98, %v777
  %v940 = vsub.f32 %v99, %v777
  %v941 = vsub.f32 %v100, %v778
  %v942 = vsub.f32 %v101, %v778
  %v943 = vsub.f32 %v102, %v779
  %v944 = vsub.f32 %v103, %v779
  %v945 = vsub.f32 %v104, %v780
  %v946 = vsub.f32 %v105, %v780
  %v947 = vsub.f32 %v106, %v781
  %v948 = vsub.f32 %v107, %v781
  %v949 = vsub.f32 %v108, %v782
  %v950 = vsub.f32 %v109, %v782
  %v951 = vsub.f32 %v110, %v783
  %v952 = vsub.f32 %v111, %v783
  %v953 = vsub.f32 %v112, %v784
  %v954 = vsub.f32 %v113, %v784
  %v955 = vsub.f32 %v114, %v785
  %v956 = vsub.f32 %v115, %v785
  %v957 = vsub.f32 %v116, %v786
  %v958 = vsub.f32 %v117, %v786
  %v959 = vsub.f32 %v118, %v787
  %v960 = vsub.f32 %v119, %v787
  %v961 = vsub.f32 %v120, %v788
  %v962 = vsub.f32 %v121, %v788
  %v963 = vsub.f32 %v122, %v789
  %v964 = vsub.f32 %v123, %v789
  %v965 = vsub.f32 %v124, %v790
  %v966 = vsub.f32 %v125, %v790
  %v967 = vsub.f32 %v126, %v791
  %v968 = vsub.f32 %v127, %v791
  %v969 = vsub.f32 %v128, %v792
  %v970 = vsub.f32 %v129, %v792
  %v971 = vsub.f32 %v130, %v793
  %v972 = vsub.f32 %v131, %v793
  %v973 = vsub.f32 %v132, %v794
  %v974 = vsub.f32 %v133, %v794
  %v975 = vsub.f32 %v134, %v795
  %v976 = vsub.f32 %v135, %v795
  %v977 = vsub.f32 %v136, %v796
  %v978 = vsub.f32 %v137, %v796
  %v979 = vsub.f32 %v138, %v797
  %v980 = vsub.f32 %v139, %v797
  %v981 = vsub.f32 %v140, %v798
  %v982 = vsub.f32 %v141, %v798
  %v983 = vsub.f32 %v142, %v799
  %v984 = vsub.f32 %v143, %v799
  %v985 = vsub.f32 %v144, %v800
  %v986 = vsub.f32 %v145, %v800
  %v987 = vsub.f32 %v146, %v801
  %v988 = vsub.f32 %v147, %v801
  %v989 = vsub.f32 %v148, %v802
  %v990 = vsub.f32 %v149, %v802
  %v991 = vsub.f32 %v150, %v803
  %v992 = vsub.f32 %v151, %v803
  %v993 = vsub.f32 %v152, %v804
  %v994 = vsub.f32 %v153, %v804
  %v995 = vsub.f32 %v154, %v805
  %v996 = vsub.f32 %v155, %v805
  %v997 = vsub.f32 %v156, %v806
  %v998 = vsub.f32 %v157, %v806
  %v999 = vsub.f32 %v158, %v807
  %v1000 = vsub.f32 %v159, %v807
  %v1001 = vsub.f32 %v160, %v808
  %v1002 = vsub.f32 %v161, %v808
  %v1003 = vsub.f32 %v162, %v809
  %v1004 = vsub.f32 %v163, %v809
  %v1005 = vsub.f32 %v164, %v810
  %v1006 = vsub.f32 %v165, %v810
  %v1007 = vsub.f32 %v166, %v811
  %v1008 = vsub.f32 %v167, %v811
  %v1009 = vsub.f32 %v168, %v812
  %v1010 = vsub.f32 %v169, %v812
  %v1011 = vsub.f32 %v170, %v813
  %v1012 = vsub.f32 %v171, %v813
  %v1013 = vsub.f32 %v172, %v814
  %v1014 = vsub.f32 %v173, %v814
  %v1015 = vsub.f32 %v174, %v815
  %v1016 = vsub.f32 %v175, %v815
  %v1017 = vsub.f32 %v176, %v816
  %v1018 = vsub.f32 %v177, %v816
  %v1019 = vsub.f32 %v178, %v817
  %v1020 = vsub.f32 %v179, %v817
  %v1021 = vsub.f32 %v180, %v818
  %v1022 = vsub.f32 %v181, %v818
  %v1023 = vsub.f32 %v182, %v819
  %v1024 = vsub.f32 %v183, %v819
  %v1025 = vsub.f32 %v184, %v820
  %v1026 = vsub.f32 %v185, %v820
  %v1027 = vsub.f32 %v186, %v821
  %v1028 = vsub.f32 %v187, %v821
  %v1029 = vsub.f32 %v188, %v822
  %v1030 = vsub.f32 %v189, %v822
  %v1031 = vsub.f32 %v190, %v823
  %v1032 = vsub.f32 %v191, %v823
  %v1033 = vsub.f32 %v192, %v824
  %v1034 = vsub.f32 %v193, %v824
  %v1035 = vsub.f32 %v194, %v825
  %v1036 = vsub.f32 %v195, %v825
  %v1037 = vsub.f32 %v196, %v826
  %v1038 = vsub.f32 %v197, %v826
  %v1039 = vsub.f32 %v198, %v827
  %v1040 = vsub.f32 %v199, %v827
  %v1041 = vsub.f32 %v200, %v828
  %v1042 = vsub.f32 %v201, %v828
  %v1043 = vsub.f32 %v202, %v829
  %v1044 = vsub.f32 %v203, %v829
  %v1045 = vsub.f32 %v204, %v830
  %v1046 = vsub.f32 %v205, %v830
  %v1047 = vsub.f32 %v206, %v831
  %v1048 = vsub.f32 %v207, %v831
  %v1049 = vsub.f32 %v208, %v832
  %v1050 = vsub.f32 %v209, %v832
  %v1051 = vsub.f32 %v210, %v833
  %v1052 = vsub.f32 %v211, %v833
  %v1053 = vsub.f32 %v212, %v834
  %v1054 = vsub.f32 %v213, %v834
  %v1055 = vsub.f32 %v214, %v835
  %v1056 = vsub.f32 %v215, %v835
  %v1057 = vsub.f32 %v216, %v836
  %v1058 = vsub.f32 %v217, %v836
  %v1059 = vsub.f32 %v218, %v837
  %v1060 = vsub.f32 %v219, %v837
  %v1061 = vsub.f32 %v220, %v838
  %v1062 = vsub.f32 %v221, %v838
  %v1063 = vsub.f32 %v222, %v839
  %v1064 = vsub.f32 %v223, %v839
  %v1065 = vsub.f32 %v224, %v840
  %v1066 = vsub.f32 %v225, %v840
  %v1067 = vsub.f32 %v226, %v841
  %v1068 = vsub.f32 %v227, %v841
  %v1069 = vsub.f32 %v228, %v842
  %v1070 = vsub.f32 %v229, %v842
  %v1071 = vsub.f32 %v230, %v843
  %v1072 = vsub.f32 %v231, %v843
  %v1073 = vsub.f32 %v232, %v844
  %v1074 = vsub.f32 %v233, %v844
  %v1075 = vsub.f32 %v234, %v845
  %v1076 = vsub.f32 %v235, %v845
  %v1077 = vsub.f32 %v236, %v846
  %v1078 = vsub.f32 %v237, %v846
  %v1079 = vsub.f32 %v238, %v847
  %v1080 = vsub.f32 %v239, %v847
  %v1081 = vsub.f32 %v240, %v848
  %v1082 = vsub.f32 %v241, %v848
  %v1083 = vsub.f32 %v242, %v849
  %v1084 = vsub.f32 %v243, %v849
  %v1085 = vsub.f32 %v244, %v850
  %v1086 = vsub.f32 %v245, %v850
  %v1087 = vsub.f32 %v246, %v851
  %v1088 = vsub.f32 %v247, %v851
  %v1089 = vsub.f32 %v248, %v852
  %v1090 = vsub.f32 %v249, %v852
  %v1091 = vsub.f32 %v250, %v853
  %v1092 = vsub.f32 %v251, %v853
  %v1093 = vsub.f32 %v252, %v854
  %v1094 = vsub.f32 %v253, %v854
  %v1095 = vmul.f32 %v855, %v855
  %v1096 = vmul.f32 %v856, %v856
  %v1097 = vmul.f32 %v857, %v857
  %v1098 = vmul.f32 %v858, %v858
  %v1099 = vmul.f32 %v859, %v859
  %v1100 = vmul.f32 %v860, %v860
  %v1101 = vmul.f32 %v861, %v861
  %v1102 = vmul.f32 %v862, %v862
  %v1103 = vmul.f32 %v863, %v863
  %v1104 = vmul.f32 %v864, %v864
  %v1105 = vmul.f32 %v865, %v865
  %v1106 = vmul.f32 %v866, %v866
  %v1107 = vmul.f32 %v867, %v867
  %v1108 = vmul.f32 %v868, %v868
  %v1109 = vmul.f32 %v869, %v869
  %v1110 = vmul.f32 %v870, %v870
  %v1111 = vmul.f32 %v871, %v871
  %v1112 = vmul.f32 %v872, %v872
  %v1113 = vmul.f32 %v873, %v873
  %v1114 = vmul.f32 %v874, %v874
  %v1115 = vmul.f32 %v875, %v875
  %v1116 = vmul.f32 %v876, %v876
  %v1117 = vmul.f32 %v877, %v877
  %v1118 = vmul.f32 %v878, %v878
  %v1119 = vmul.f32 %v879, %v879
  %v1120 = vmul.f32 %v880, %v880
  %v1121 = vmul.f32 %v881, %v881
  %v1122 = vmul.f32 %v882, %v882
  %v1123 = vmul.f32 %v883, %v883
  %v1124 = vmul.f32 %v884, %v884
  %v1125 = vmul.f32 %v885, %v885
  %v1126 = vmul.f32 %v886, %v886
  %v1127 = vmul.f32 %v887, %v887
  %v1128 = vmul.f32 %v888, %v888
  %v1129 = vmul.f32 %v889, %v889
  %v1130 = vmul.f32 %v890, %v890
  %v1131 = vmul.f32 %v891, %v891
  %v1132 = vmul.f32 %v892, %v892
  %v1133 = vmul.f32 %v893, %v893
  %v1134 = vmul.f32 %v894, %v894
  %v1135 = vmul.f32 %v895, %v895
  %v1136 = vmul.f32 %v896, %v896
  %v1137 = vmul.f32 %v897, %v897
  %v1138 = vmul.f32 %v898, %v898
  %v1139 = vmul.f32 %v899, %v899
  %v1140 = vmul.f32 %v900, %v900
  %v1141 = vmul.f32 %v901, %v901
  %v1142 = vmul.f32 %v902, %v902
  %v1143 = vmul.f32 %v903, %v903
  %v1144 = vmul.f32 %v904, %v904
  %v1145 = vmul.f32 %v905, %v905
  %v1146 = vmul.f32 %v906, %v906
  %v1147 = vmul.f32 %v907, %v907
  %v1148 = vmul.f32 %v908, %v908
  %v1149 = vmul.f32 %v909, %v909
  %v1150 = vmul.f32 %v910, %v910
  %v1151 = vmul.f32 %v911, %v911
  %v1152 = vmul.f32 %v912, %v912
  %v1153 = vmul.f32 %v913, %v913
  %v1154 = vmul.f32 %v914, %v914
  %v1155 = vmul.f32 %v915, %v915
  %v1156 = vmul.f32 %v916, %v916
  %v1157 = vmul.f32 %v917, %v917
  %v1158 = vmul.f32 %v918, %v918
  %v1159 = vmul.f32 %v919, %v919
  %v1160 = vmul.f32 %v920, %v920
  %v1161 = vmul.f32 %v921, %v921
  %v1162 = vmul.f32 %v922, %v922
  %v1163 = vmul.f32 %v923, %v923
  %v1164 = vmul.f32 %v924, %v924
  %v1165 = vmul.f32 %v925, %v925
  %v1166 = vmul.f32 %v926, %v926
  %v1167 = vmul.f32 %v927, %v927
  %v1168 = vmul.f32 %v928, %v928
  %v1169 = vmul.f32 %v929, %v929
  %v1170 = vmul.f32 %v930, %v930
  %v1171 = vmul.f32 %v931, %v931
  %v1172 = vmul.f32 %v932, %v932
  %v1173 = vmul.f32 %v933, %v933
  %v1174 = vmul.f32 %v934, %v934
  %v1175 = vmul.f32 %v935, %v935
  %v1176 = vmul.f32 %v936, %v936
  %v1177 = vmul.f32 %v937, %v937
  %v1178 = vmul.f32 %v938, %v938
  %v1179 = vmul.f32 %v939, %v939
  %v1180 = vmul.f32 %v940, %v940
  %v1181 = vmul.f32 %v941, %v941
  %v1182 = vmul.f32 %v942, %v942
  %v1183 = vmul.f32 %v943, %v943
  %v1184 = vmul.f32 %v944, %v944
  %v1185 = vmul.f32 %v945, %v945
  %v1186 = vmul.f32 %v946, %v946
  %v1187 = vmul.f32 %v947, %v947
  %v1188 = vmul.f32 %v948, %v948
  %v1189 = vmul.f32 %v949, %v949
  %v1190 = vmul.f32 %v950, %v950
  %v1191 = vmul.f32 %v951, %v951
  %v1192 = vmul.f32 %v952, %v952
  %v1193 = vmul.f32 %v953, %v953
  %v1194 = vmul.f32 %v954, %v954
  %v1195 = vmul.f32 %v955, %v955
  %v1196 = vmul.f32 %v956, %v956
  %v1197 = vmul.f32 %v957, %v957
  %v1198 = vmul.f32 %v958, %v958
  %v1199 = vmul.f32 %v959, %v959
  %v1200 = vmul.f32 %v960, %v960
  %v1201 = vmul.f32 %v961, %v961
  %v1202 = vmul.f32 %v962, %v962
  %v1203 = vmul.f32 %v963, %v963
  %v1204 = vmul.f32 %v964, %v964
  %v1205 = vmul.f32 %v965, %v965
  %v1206 = vmul.f32 %v966, %v966
  %v1207 = vmul.f32 %v967, %v967
  %v1208 = vmul.f32 %v968, %v968
  %v1209 = vmul.f32 %v969, %v969
  %v1210 = vmul.f32 %v970, %v970
  %v1211 = vmul.f32 %v971, %v971
  %v1212 = vmul.f32 %v972, %v972
  %v1213 = vmul.f32 %v973, %v973
  %v1214 = vmul.f32 %v974, %v974
  %v1215 = vmul.f32 %v975, %v975
  %v1216 = vmul.f32 %v976, %v976
  %v1217 = vmul.f32 %v977, %v977
  %v1218 = vmul.f32 %v978, %v978
  %v1219 = vmul.f32 %v979, %v979
  %v1220 = vmul.f32 %v980, %v980
  %v1221 = vmul.f32 %v981, %v981
  %v1222 = vmul.f32 %v982, %v982
  %v1223 = vmul.f32 %v983, %v983
  %v1224 = vmul.f32 %v984, %v984
  %v1225 = vmul.f32 %v985, %v985
  %v1226 = vmul.f32 %v986, %v986
  %v1227 = vmul.f32 %v987, %v987
  %v1228 = vmul.f32 %v988, %v988
  %v1229 = vmul.f32 %v989, %v989
  %v1230 = vmul.f32 %v990, %v990
  %v1231 = vmul.f32 %v991, %v991
  %v1232 = vmul.f32 %v992, %v992
  %v1233 = vmul.f32 %v993, %v993
  %v1234 = vmul.f32 %v994, %v994
  %v1235 = vmul.f32 %v995, %v995
  %v1236 = vmul.f32 %v996, %v996
  %v1237 = vmul.f32 %v997, %v997
  %v1238 = vmul.f32 %v998, %v998
  %v1239 = vmul.f32 %v999, %v999
  %v1240 = vmul.f32 %v1000, %v1000
  %v1241 = vmul.f32 %v1001, %v1001
  %v1242 = vmul.f32 %v1002, %v1002
  %v1243 = vmul.f32 %v1003, %v1003
  %v1244 = vmul.f32 %v1004, %v1004
  %v1245 = vmul.f32 %v1005, %v1005
  %v1246 = vmul.f32 %v1006, %v1006
  %v1247 = vmul.f32 %v1007, %v1007
  %v1248 = vmul.f32 %v1008, %v1008
  %v1249 = vmul.f32 %v1009, %v1009
  %v1250 = vmul.f32 %v1010, %v1010
  %v1251 = vmul.f32 %v1011, %v1011
  %v1252 = vmul.f32 %v1012, %v1012
  %v1253 = vmul.f32 %v1013, %v1013
  %v1254 = vmul.f32 %v1014, %v1014
  %v1255 = vmul.f32 %v1015, %v1015
  %v1256 = vmul.f32 %v1016, %v1016
  %v1257 = vmul.f32 %v1017, %v1017
  %v1258 = vmul.f32 %v1018, %v1018
  %v1259 = vmul.f32 %v1019, %v1019
  %v1260 = vmul.f32 %v1020, %v1020
  %v1261 = vmul.f32 %v1021, %v1021
  %v1262 = vmul.f32 %v1022, %v1022
  %v1263 = vmul.f32 %v1023, %v1023
  %v1264 = vmul.f32 %v1024, %v1024
  %v1265 = vmul.f32 %v1025, %v1025
  %v1266 = vmul.f32 %v1026, %v1026
  %v1267 = vmul.f32 %v1027, %v1027
  %v1268 = vmul.f32 %v1028, %v1028
  %v1269 = vmul.f32 %v1029, %v1029
  %v1270 = vmul.f32 %v1030, %v1030
  %v1271 = vmul.f32 %v1031, %v1031
  %v1272 = vmul.f32 %v1032, %v1032
  %v1273 = vmul.f32 %v1033, %v1033
  %v1274 = vmul.f32 %v1034, %v1034
  %v1275 = vmul.f32 %v1035, %v1035
  %v1276 = vmul.f32 %v1036, %v1036
  %v1277 = vmul.f32 %v1037, %v1037
  %v1278 = vmul.f32 %v1038, %v1038
  %v1279 = vmul.f32 %v1039, %v1039
  %v1280 = vmul.f32 %v1040, %v1040
  %v1281 = vmul.f32 %v1041, %v1041
  %v1282 = vmul.f32 %v1042, %v1042
  %v1283 = vmul.f32 %v1043, %v1043
  %v1284 = vmul.f32 %v1044, %v1044
  %v1285 = vmul.f32 %v1045, %v1045
  %v1286 = vmul.f32 %v1046, %v1046
  %v1287 = vmul.f32 %v1047, %v1047
  %v1288 = vmul.f32 %v1048, %v1048
  %v1289 = vmul.f32 %v1049, %v1049
  %v1290 = vmul.f32 %v1050, %v1050
  %v1291 = vmul.f32 %v1051, %v1051
  %v1292 = vmul.f32 %v1052, %v1052
  %v1293 = vmul.f32 %v1053, %v1053
  %v1294 = vmul.f32 %v1054, %v1054
  %v1295 = vmul.f32 %v1055, %v1055
  %v1296 = vmul.f32 %v1056, %v1056
  %v1297 = vmul.f32 %v1057, %v1057
  %v1298 = vmul.f32 %v1058, %v1058
  %v1299 = vmul.f32 %v1059, %v1059
  %v1300 = vmul.f32 %v1060, %v1060
  %v1301 = vmul.f32 %v1061, %v1061
  %v1302 = vmul.f32 %v1062, %v1062
  %v1303 = vmul.f32 %v1063, %v1063
  %v1304 = vmul.f32 %v1064, %v1064
  %v1305 = vmul.f32 %v1065, %v1065
  %v1306 = vmul.f32 %v1066, %v1066
  %v1307 = vmul.f32 %v1067, %v1067
  %v1308 = vmul.f32 %v1068, %v1068
  %v1309 = vmul.f32 %v1069, %v1069
  %v1310 = vmul.f32 %v1070, %v1070
  %v1311 = vmul.f32 %v1071, %v1071
  %v1312 = vmul.f32 %v1072, %v1072
  %v1313 = vmul.f32 %v1073, %v1073
  %v1314 = vmul.f32 %v1074, %v1074
  %v1315 = vmul.f32 %v1075, %v1075
  %v1316 = vmul.f32 %v1076, %v1076
  %v1317 = vmul.f32 %v1077, %v1077
  %v1318 = vmul.f32 %v1078, %v1078
  %v1319 = vmul.f32 %v1079, %v1079
  %v1320 = vmul.f32 %v1080, %v1080
  %v1321 = vmul.f32 %v1081, %v1081
  %v1322 = vmul.f32 %v1082, %v1082
  %v1323 = vmul.f32 %v1083, %v1083
  %v1324 = vmul.f32 %v1084, %v1084
  %v1325 = vmul.f32 %v1085, %v1085
  %v1326 = vmul.f32 %v1086, %v1086
  %v1327 = vmul.f32 %v1087, %v1087
  %v1328 = vmul.f32 %v1088, %v1088
  %v1329 = vmul.f32 %v1089, %v1089
  %v1330 = vmul.f32 %v1090, %v1090
  %v1331 = vmul.f32 %v1091, %v1091
  %v1332 = vmul.f32 %v1092, %v1092
  %v1333 = vmul.f32 %v1093, %v1093
  %v1334 = vmul.f32 %v1094, %v1094
  %v1335 = vsel %vm254, %v1096, 0.0
  %v1336 = vadd.f32 %v1095, %v1335
  %1337 = vadd.xlane.f32.xlu0 %v1336
  %v1338 = vpop.xlane.xlu0 %1337
  %v1339 = vsel %vm254, %v1098, 0.0
  %v1340 = vadd.f32 %v1097, %v1339
  %1341 = vadd.xlane.f32.xlu0 %v1340
  %v1342 = vpop.xlane.xlu0 %1341
  %v1343 = vsel %vm254, %v1100, 0.0
  %v1344 = vadd.f32 %v1099, %v1343
  %1345 = vadd.xlane.f32.xlu0 %v1344
  %v1346 = vpop.xlane.xlu0 %1345
  %v1347 = vsel %vm254, %v1102, 0.0
  %v1348 = vadd.f32 %v1101, %v1347
  %1349 = vadd.xlane.f32.xlu0 %v1348
  %v1350 = vpop.xlane.xlu0 %1349
  %v1351 = vsel %vm254, %v1104, 0.0
  %v1352 = vadd.f32 %v1103, %v1351
  %1353 = vadd.xlane.f32.xlu0 %v1352
  %v1354 = vpop.xlane.xlu0 %1353
  %v1355 = vsel %vm254, %v1106, 0.0
  %v1356 = vadd.f32 %v1105, %v1355
  %1357 = vadd.xlane.f32.xlu0 %v1356
  %v1358 = vpop.xlane.xlu0 %1357
  %v1359 = vsel %vm254, %v1108, 0.0
  %v1360 = vadd.f32 %v1107, %v1359
  %1361 = vadd.xlane.f32.xlu0 %v1360
  %v1362 = vpop.xlane.xlu0 %1361
  %v1363 = vsel %vm254, %v1110, 0.0
  %v1364 = vadd.f32 %v1109, %v1363
  %1365 = vadd.xlane.f32.xlu0 %v1364
  %v1366 = vpop.xlane.xlu0 %1365
  %v1367 = vsel %vm254, %v1112, 0.0
  %v1368 = vadd.f32 %v1111, %v1367
  %1369 = vadd.xlane.f32.xlu0 %v1368
  %v1370 = vpop.xlane.xlu0 %1369
  %v1371 = vsel %vm254, %v1114, 0.0
  %v1372 = vadd.f32 %v1113, %v1371
  %1373 = vadd.xlane.f32.xlu0 %v1372
  %v1374 = vpop.xlane.xlu0 %1373
  %v1375 = vsel %vm254, %v1116, 0.0
  %v1376 = vadd.f32 %v1115, %v1375
  %1377 = vadd.xlane.f32.xlu0 %v1376
  %v1378 = vpop.xlane.xlu0 %1377
  %v1379 = vsel %vm254, %v1118, 0.0
  %v1380 = vadd.f32 %v1117, %v1379
  %1381 = vadd.xlane.f32.xlu0 %v1380
  %v1382 = vpop.xlane.xlu0 %1381
  %v1383 = vsel %vm254, %v1120, 0.0
  %v1384 = vadd.f32 %v1119, %v1383
  %1385 = vadd.xlane.f32.xlu0 %v1384
  %v1386 = vpop.xlane.xlu0 %1385
  %v1387 = vsel %vm254, %v1122, 0.0
  %v1388 = vadd.f32 %v1121, %v1387
  %1389 = vadd.xlane.f32.xlu0 %v1388
  %v1390 = vpop.xlane.xlu0 %1389
  %v1391 = vsel %vm254, %v1124, 0.0
  %v1392 = vadd.f32 %v1123, %v1391
  %1393 = vadd.xlane.f32.xlu0 %v1392
  %v1394 = vpop.xlane.xlu0 %1393
  %v1395 = vsel %vm254, %v1126, 0.0
  %v1396 = vadd.f32 %v1125, %v1395
  %1397 = vadd.xlane.f32.xlu0 %v1396
  %v1398 = vpop.xlane.xlu0 %1397
  %v1399 = vsel %vm254, %v1128, 0.0
  %v1400 = vadd.f32 %v1127, %v1399
  %1401 = vadd.xlane.f32.xlu0 %v1400
  %v1402 = vpop.xlane.xlu0 %1401
  %v1403 = vsel %vm254, %v1130, 0.0
  %v1404 = vadd.f32 %v1129, %v1403
  %1405 = vadd.xlane.f32.xlu0 %v1404
  %v1406 = vpop.xlane.xlu0 %1405
  %v1407 = vsel %vm254, %v1132, 0.0
  %v1408 = vadd.f32 %v1131, %v1407
  %1409 = vadd.xlane.f32.xlu0 %v1408
  %v1410 = vpop.xlane.xlu0 %1409
  %v1411 = vsel %vm254, %v1134, 0.0
  %v1412 = vadd.f32 %v1133, %v1411
  %1413 = vadd.xlane.f32.xlu0 %v1412
  %v1414 = vpop.xlane.xlu0 %1413
  %v1415 = vsel %vm254, %v1136, 0.0
  %v1416 = vadd.f32 %v1135, %v1415
  %1417 = vadd.xlane.f32.xlu0 %v1416
  %v1418 = vpop.xlane.xlu0 %1417
  %v1419 = vsel %vm254, %v1138, 0.0
  %v1420 = vadd.f32 %v1137, %v1419
  %1421 = vadd.xlane.f32.xlu0 %v1420
  %v1422 = vpop.xlane.xlu0 %1421
  %v1423 = vsel %vm254, %v1140, 0.0
  %v1424 = vadd.f32 %v1139, %v1423
  %1425 = vadd.xlane.f32.xlu0 %v1424
  %v1426 = vpop.xlane.xlu0 %1425
  %v1427 = vsel %vm254, %v1142, 0.0
  %v1428 = vadd.f32 %v1141, %v1427
  %1429 = vadd.xlane.f32.xlu0 %v1428
  %v1430 = vpop.xlane.xlu0 %1429
  %v1431 = vsel %vm254, %v1144, 0.0
  %v1432 = vadd.f32 %v1143, %v1431
  %1433 = vadd.xlane.f32.xlu0 %v1432
  %v1434 = vpop.xlane.xlu0 %1433
  %v1435 = vsel %vm254, %v1146, 0.0
  %v1436 = vadd.f32 %v1145, %v1435
  %1437 = vadd.xlane.f32.xlu0 %v1436
  %v1438 = vpop.xlane.xlu0 %1437
  %v1439 = vsel %vm254, %v1148, 0.0
  %v1440 = vadd.f32 %v1147, %v1439
  %1441 = vadd.xlane.f32.xlu0 %v1440
  %v1442 = vpop.xlane.xlu0 %1441
  %v1443 = vsel %vm254, %v1150, 0.0
  %v1444 = vadd.f32 %v1149, %v1443
  %1445 = vadd.xlane.f32.xlu0 %v1444
  %v1446 = vpop.xlane.xlu0 %1445
  %v1447 = vsel %vm254, %v1152, 0.0
  %v1448 = vadd.f32 %v1151, %v1447
  %1449 = vadd.xlane.f32.xlu0 %v1448
  %v1450 = vpop.xlane.xlu0 %1449
  %v1451 = vsel %vm254, %v1154, 0.0
  %v1452 = vadd.f32 %v1153, %v1451
  %1453 = vadd.xlane.f32.xlu0 %v1452
  %v1454 = vpop.xlane.xlu0 %1453
  %v1455 = vsel %vm254, %v1156, 0.0
  %v1456 = vadd.f32 %v1155, %v1455
  %1457 = vadd.xlane.f32.xlu0 %v1456
  %v1458 = vpop.xlane.xlu0 %1457
  %v1459 = vsel %vm254, %v1158, 0.0
  %v1460 = vadd.f32 %v1157, %v1459
  %1461 = vadd.xlane.f32.xlu0 %v1460
  %v1462 = vpop.xlane.xlu0 %1461
  %v1463 = vsel %vm254, %v1160, 0.0
  %v1464 = vadd.f32 %v1159, %v1463
  %1465 = vadd.xlane.f32.xlu0 %v1464
  %v1466 = vpop.xlane.xlu0 %1465
  %v1467 = vsel %vm254, %v1162, 0.0
  %v1468 = vadd.f32 %v1161, %v1467
  %1469 = vadd.xlane.f32.xlu0 %v1468
  %v1470 = vpop.xlane.xlu0 %1469
  %v1471 = vsel %vm254, %v1164, 0.0
  %v1472 = vadd.f32 %v1163, %v1471
  %1473 = vadd.xlane.f32.xlu0 %v1472
  %v1474 = vpop.xlane.xlu0 %1473
  %v1475 = vsel %vm254, %v1166, 0.0
  %v1476 = vadd.f32 %v1165, %v1475
  %1477 = vadd.xlane.f32.xlu0 %v1476
  %v1478 = vpop.xlane.xlu0 %1477
  %v1479 = vsel %vm254, %v1168, 0.0
  %v1480 = vadd.f32 %v1167, %v1479
  %1481 = vadd.xlane.f32.xlu0 %v1480
  %v1482 = vpop.xlane.xlu0 %1481
  %v1483 = vsel %vm254, %v1170, 0.0
  %v1484 = vadd.f32 %v1169, %v1483
  %1485 = vadd.xlane.f32.xlu0 %v1484
  %v1486 = vpop.xlane.xlu0 %1485
  %v1487 = vsel %vm254, %v1172, 0.0
  %v1488 = vadd.f32 %v1171, %v1487
  %1489 = vadd.xlane.f32.xlu0 %v1488
  %v1490 = vpop.xlane.xlu0 %1489
  %v1491 = vsel %vm254, %v1174, 0.0
  %v1492 = vadd.f32 %v1173, %v1491
  %1493 = vadd.xlane.f32.xlu0 %v1492
  %v1494 = vpop.xlane.xlu0 %1493
  %v1495 = vsel %vm254, %v1176, 0.0
  %v1496 = vadd.f32 %v1175, %v1495
  %1497 = vadd.xlane.f32.xlu0 %v1496
  %v1498 = vpop.xlane.xlu0 %1497
  %v1499 = vsel %vm254, %v1178, 0.0
  %v1500 = vadd.f32 %v1177, %v1499
  %1501 = vadd.xlane.f32.xlu0 %v1500
  %v1502 = vpop.xlane.xlu0 %1501
  %v1503 = vsel %vm254, %v1180, 0.0
  %v1504 = vadd.f32 %v1179, %v1503
  %1505 = vadd.xlane.f32.xlu0 %v1504
  %v1506 = vpop.xlane.xlu0 %1505
  %v1507 = vsel %vm254, %v1182, 0.0
  %v1508 = vadd.f32 %v1181, %v1507
  %1509 = vadd.xlane.f32.xlu0 %v1508
  %v1510 = vpop.xlane.xlu0 %1509
  %v1511 = vsel %vm254, %v1184, 0.0
  %v1512 = vadd.f32 %v1183, %v1511
  %1513 = vadd.xlane.f32.xlu0 %v1512
  %v1514 = vpop.xlane.xlu0 %1513
  %v1515 = vsel %vm254, %v1186, 0.0
  %v1516 = vadd.f32 %v1185, %v1515
  %1517 = vadd.xlane.f32.xlu0 %v1516
  %v1518 = vpop.xlane.xlu0 %1517
  %v1519 = vsel %vm254, %v1188, 0.0
  %v1520 = vadd.f32 %v1187, %v1519
  %1521 = vadd.xlane.f32.xlu0 %v1520
  %v1522 = vpop.xlane.xlu0 %1521
  %v1523 = vsel %vm254, %v1190, 0.0
  %v1524 = vadd.f32 %v1189, %v1523
  %1525 = vadd.xlane.f32.xlu0 %v1524
  %v1526 = vpop.xlane.xlu0 %1525
  %v1527 = vsel %vm254, %v1192, 0.0
  %v1528 = vadd.f32 %v1191, %v1527
  %1529 = vadd.xlane.f32.xlu0 %v1528
  %v1530 = vpop.xlane.xlu0 %1529
  %v1531 = vsel %vm254, %v1194, 0.0
  %v1532 = vadd.f32 %v1193, %v1531
  %1533 = vadd.xlane.f32.xlu0 %v1532
  %v1534 = vpop.xlane.xlu0 %1533
  %v1535 = vsel %vm254, %v1196, 0.0
  %v1536 = vadd.f32 %v1195, %v1535
  %1537 = vadd.xlane.f32.xlu0 %v1536
  %v1538 = vpop.xlane.xlu0 %1537
  %v1539 = vsel %vm254, %v1198, 0.0
  %v1540 = vadd.f32 %v1197, %v1539
  %1541 = vadd.xlane.f32.xlu0 %v1540
  %v1542 = vpop.xlane.xlu0 %1541
  %v1543 = vsel %vm254, %v1200, 0.0
  %v1544 = vadd.f32 %v1199, %v1543
  %1545 = vadd.xlane.f32.xlu0 %v1544
  %v1546 = vpop.xlane.xlu0 %1545
  %v1547 = vsel %vm254, %v1202, 0.0
  %v1548 = vadd.f32 %v1201, %v1547
  %1549 = vadd.xlane.f32.xlu0 %v1548
  %v1550 = vpop.xlane.xlu0 %1549
  %v1551 = vsel %vm254, %v1204, 0.0
  %v1552 = vadd.f32 %v1203, %v1551
  %1553 = vadd.xlane.f32.xlu0 %v1552
  %v1554 = vpop.xlane.xlu0 %1553
  %v1555 = vsel %vm254, %v1206, 0.0
  %v1556 = vadd.f32 %v1205, %v1555
  %1557 = vadd.xlane.f32.xlu0 %v1556
  %v1558 = vpop.xlane.xlu0 %1557
  %v1559 = vsel %vm254, %v1208, 0.0
  %v1560 = vadd.f32 %v1207, %v1559
  %1561 = vadd.xlane.f32.xlu0 %v1560
  %v1562 = vpop.xlane.xlu0 %1561
  %v1563 = vsel %vm254, %v1210, 0.0
  %v1564 = vadd.f32 %v1209, %v1563
  %1565 = vadd.xlane.f32.xlu0 %v1564
  %v1566 = vpop.xlane.xlu0 %1565
  %v1567 = vsel %vm254, %v1212, 0.0
  %v1568 = vadd.f32 %v1211, %v1567
  %1569 = vadd.xlane.f32.xlu0 %v1568
  %v1570 = vpop.xlane.xlu0 %1569
  %v1571 = vsel %vm254, %v1214, 0.0
  %v1572 = vadd.f32 %v1213, %v1571
  %1573 = vadd.xlane.f32.xlu0 %v1572
  %v1574 = vpop.xlane.xlu0 %1573
  %v1575 = vsel %vm254, %v1216, 0.0
  %v1576 = vadd.f32 %v1215, %v1575
  %1577 = vadd.xlane.f32.xlu0 %v1576
  %v1578 = vpop.xlane.xlu0 %1577
  %v1579 = vsel %vm254, %v1218, 0.0
  %v1580 = vadd.f32 %v1217, %v1579
  %1581 = vadd.xlane.f32.xlu0 %v1580
  %v1582 = vpop.xlane.xlu0 %1581
  %v1583 = vsel %vm254, %v1220, 0.0
  %v1584 = vadd.f32 %v1219, %v1583
  %1585 = vadd.xlane.f32.xlu0 %v1584
  %v1586 = vpop.xlane.xlu0 %1585
  %v1587 = vsel %vm254, %v1222, 0.0
  %v1588 = vadd.f32 %v1221, %v1587
  %1589 = vadd.xlane.f32.xlu0 %v1588
  %v1590 = vpop.xlane.xlu0 %1589
  %v1591 = vsel %vm254, %v1224, 0.0
  %v1592 = vadd.f32 %v1223, %v1591
  %1593 = vadd.xlane.f32.xlu0 %v1592
  %v1594 = vpop.xlane.xlu0 %1593
  %v1595 = vsel %vm254, %v1226, 0.0
  %v1596 = vadd.f32 %v1225, %v1595
  %1597 = vadd.xlane.f32.xlu0 %v1596
  %v1598 = vpop.xlane.xlu0 %1597
  %v1599 = vsel %vm254, %v1228, 0.0
  %v1600 = vadd.f32 %v1227, %v1599
  %1601 = vadd.xlane.f32.xlu0 %v1600
  %v1602 = vpop.xlane.xlu0 %1601
  %v1603 = vsel %vm254, %v1230, 0.0
  %v1604 = vadd.f32 %v1229, %v1603
  %1605 = vadd.xlane.f32.xlu0 %v1604
  %v1606 = vpop.xlane.xlu0 %1605
  %v1607 = vsel %vm254, %v1232, 0.0
  %v1608 = vadd.f32 %v1231, %v1607
  %1609 = vadd.xlane.f32.xlu0 %v1608
  %v1610 = vpop.xlane.xlu0 %1609
  %v1611 = vsel %vm254, %v1234, 0.0
  %v1612 = vadd.f32 %v1233, %v1611
  %1613 = vadd.xlane.f32.xlu0 %v1612
  %v1614 = vpop.xlane.xlu0 %1613
  %v1615 = vsel %vm254, %v1236, 0.0
  %v1616 = vadd.f32 %v1235, %v1615
  %1617 = vadd.xlane.f32.xlu0 %v1616
  %v1618 = vpop.xlane.xlu0 %1617
  %v1619 = vsel %vm254, %v1238, 0.0
  %v1620 = vadd.f32 %v1237, %v1619
  %1621 = vadd.xlane.f32.xlu0 %v1620
  %v1622 = vpop.xlane.xlu0 %1621
  %v1623 = vsel %vm254, %v1240, 0.0
  %v1624 = vadd.f32 %v1239, %v1623
  %1625 = vadd.xlane.f32.xlu0 %v1624
  %v1626 = vpop.xlane.xlu0 %1625
  %v1627 = vsel %vm254, %v1242, 0.0
  %v1628 = vadd.f32 %v1241, %v1627
  %1629 = vadd.xlane.f32.xlu0 %v1628
  %v1630 = vpop.xlane.xlu0 %1629
  %v1631 = vsel %vm254, %v1244, 0.0
  %v1632 = vadd.f32 %v1243, %v1631
  %1633 = vadd.xlane.f32.xlu0 %v1632
  %v1634 = vpop.xlane.xlu0 %1633
  %v1635 = vsel %vm254, %v1246, 0.0
  %v1636 = vadd.f32 %v1245, %v1635
  %1637 = vadd.xlane.f32.xlu0 %v1636
  %v1638 = vpop.xlane.xlu0 %1637
  %v1639 = vsel %vm254, %v1248, 0.0
  %v1640 = vadd.f32 %v1247, %v1639
  %1641 = vadd.xlane.f32.xlu0 %v1640
  %v1642 = vpop.xlane.xlu0 %1641
  %v1643 = vsel %vm254, %v1250, 0.0
  %v1644 = vadd.f32 %v1249, %v1643
  %1645 = vadd.xlane.f32.xlu0 %v1644
  %v1646 = vpop.xlane.xlu0 %1645
  %v1647 = vsel %vm254, %v1252, 0.0
  %v1648 = vadd.f32 %v1251, %v1647
  %1649 = vadd.xlane.f32.xlu0 %v1648
  %v1650 = vpop.xlane.xlu0 %1649
  %v1651 = vsel %vm254, %v1254, 0.0
  %v1652 = vadd.f32 %v1253, %v1651
  %1653 = vadd.xlane.f32.xlu0 %v1652
  %v1654 = vpop.xlane.xlu0 %1653
  %v1655 = vsel %vm254, %v1256, 0.0
  %v1656 = vadd.f32 %v1255, %v1655
  %1657 = vadd.xlane.f32.xlu0 %v1656
  %v1658 = vpop.xlane.xlu0 %1657
  %v1659 = vsel %vm254, %v1258, 0.0
  %v1660 = vadd.f32 %v1257, %v1659
  %1661 = vadd.xlane.f32.xlu0 %v1660
  %v1662 = vpop.xlane.xlu0 %1661
  %v1663 = vsel %vm254, %v1260, 0.0
  %v1664 = vadd.f32 %v1259, %v1663
  %1665 = vadd.xlane.f32.xlu0 %v1664
  %v1666 = vpop.xlane.xlu0 %1665
  %v1667 = vsel %vm254, %v1262, 0.0
  %v1668 = vadd.f32 %v1261, %v1667
  %1669 = vadd.xlane.f32.xlu0 %v1668
  %v1670 = vpop.xlane.xlu0 %1669
  %v1671 = vsel %vm254, %v1264, 0.0
  %v1672 = vadd.f32 %v1263, %v1671
  %1673 = vadd.xlane.f32.xlu0 %v1672
  %v1674 = vpop.xlane.xlu0 %1673
  %v1675 = vsel %vm254, %v1266, 0.0
  %v1676 = vadd.f32 %v1265, %v1675
  %1677 = vadd.xlane.f32.xlu0 %v1676
  %v1678 = vpop.xlane.xlu0 %1677
  %v1679 = vsel %vm254, %v1268, 0.0
  %v1680 = vadd.f32 %v1267, %v1679
  %1681 = vadd.xlane.f32.xlu0 %v1680
  %v1682 = vpop.xlane.xlu0 %1681
  %v1683 = vsel %vm254, %v1270, 0.0
  %v1684 = vadd.f32 %v1269, %v1683
  %1685 = vadd.xlane.f32.xlu0 %v1684
  %v1686 = vpop.xlane.xlu0 %1685
  %v1687 = vsel %vm254, %v1272, 0.0
  %v1688 = vadd.f32 %v1271, %v1687
  %1689 = vadd.xlane.f32.xlu0 %v1688
  %v1690 = vpop.xlane.xlu0 %1689
  %v1691 = vsel %vm254, %v1274, 0.0
  %v1692 = vadd.f32 %v1273, %v1691
  %1693 = vadd.xlane.f32.xlu0 %v1692
  %v1694 = vpop.xlane.xlu0 %1693
  %v1695 = vsel %vm254, %v1276, 0.0
  %v1696 = vadd.f32 %v1275, %v1695
  %1697 = vadd.xlane.f32.xlu0 %v1696
  %v1698 = vpop.xlane.xlu0 %1697
  %v1699 = vsel %vm254, %v1278, 0.0
  %v1700 = vadd.f32 %v1277, %v1699
  %1701 = vadd.xlane.f32.xlu0 %v1700
  %v1702 = vpop.xlane.xlu0 %1701
  %v1703 = vsel %vm254, %v1280, 0.0
  %v1704 = vadd.f32 %v1279, %v1703
  %1705 = vadd.xlane.f32.xlu0 %v1704
  %v1706 = vpop.xlane.xlu0 %1705
  %v1707 = vsel %vm254, %v1282, 0.0
  %v1708 = vadd.f32 %v1281, %v1707
  %1709 = vadd.xlane.f32.xlu0 %v1708
  %v1710 = vpop.xlane.xlu0 %1709
  %v1711 = vsel %vm254, %v1284, 0.0
  %v1712 = vadd.f32 %v1283, %v1711
  %1713 = vadd.xlane.f32.xlu0 %v1712
  %v1714 = vpop.xlane.xlu0 %1713
  %v1715 = vsel %vm254, %v1286, 0.0
  %v1716 = vadd.f32 %v1285, %v1715
  %1717 = vadd.xlane.f32.xlu0 %v1716
  %v1718 = vpop.xlane.xlu0 %1717
  %v1719 = vsel %vm254, %v1288, 0.0
  %v1720 = vadd.f32 %v1287, %v1719
  %1721 = vadd.xlane.f32.xlu0 %v1720
  %v1722 = vpop.xlane.xlu0 %1721
  %v1723 = vsel %vm254, %v1290, 0.0
  %v1724 = vadd.f32 %v1289, %v1723
  %1725 = vadd.xlane.f32.xlu0 %v1724
  %v1726 = vpop.xlane.xlu0 %1725
  %v1727 = vsel %vm254, %v1292, 0.0
  %v1728 = vadd.f32 %v1291, %v1727
  %1729 = vadd.xlane.f32.xlu0 %v1728
  %v1730 = vpop.xlane.xlu0 %1729
  %v1731 = vsel %vm254, %v1294, 0.0
  %v1732 = vadd.f32 %v1293, %v1731
  %1733 = vadd.xlane.f32.xlu0 %v1732
  %v1734 = vpop.xlane.xlu0 %1733
  %v1735 = vsel %vm254, %v1296, 0.0
  %v1736 = vadd.f32 %v1295, %v1735
  %1737 = vadd.xlane.f32.xlu0 %v1736
  %v1738 = vpop.xlane.xlu0 %1737
  %v1739 = vsel %vm254, %v1298, 0.0
  %v1740 = vadd.f32 %v1297, %v1739
  %1741 = vadd.xlane.f32.xlu0 %v1740
  %v1742 = vpop.xlane.xlu0 %1741
  %v1743 = vsel %vm254, %v1300, 0.0
  %v1744 = vadd.f32 %v1299, %v1743
  %1745 = vadd.xlane.f32.xlu0 %v1744
  %v1746 = vpop.xlane.xlu0 %1745
  %v1747 = vsel %vm254, %v1302, 0.0
  %v1748 = vadd.f32 %v1301, %v1747
  %1749 = vadd.xlane.f32.xlu0 %v1748
  %v1750 = vpop.xlane.xlu0 %1749
  %v1751 = vsel %vm254, %v1304, 0.0
  %v1752 = vadd.f32 %v1303, %v1751
  %1753 = vadd.xlane.f32.xlu0 %v1752
  %v1754 = vpop.xlane.xlu0 %1753
  %v1755 = vsel %vm254, %v1306, 0.0
  %v1756 = vadd.f32 %v1305, %v1755
  %1757 = vadd.xlane.f32.xlu0 %v1756
  %v1758 = vpop.xlane.xlu0 %1757
  %v1759 = vsel %vm254, %v1308, 0.0
  %v1760 = vadd.f32 %v1307, %v1759
  %1761 = vadd.xlane.f32.xlu0 %v1760
  %v1762 = vpop.xlane.xlu0 %1761
  %v1763 = vsel %vm254, %v1310, 0.0
  %v1764 = vadd.f32 %v1309, %v1763
  %1765 = vadd.xlane.f32.xlu0 %v1764
  %v1766 = vpop.xlane.xlu0 %1765
  %v1767 = vsel %vm254, %v1312, 0.0
  %v1768 = vadd.f32 %v1311, %v1767
  %1769 = vadd.xlane.f32.xlu0 %v1768
  %v1770 = vpop.xlane.xlu0 %1769
  %v1771 = vsel %vm254, %v1314, 0.0
  %v1772 = vadd.f32 %v1313, %v1771
  %1773 = vadd.xlane.f32.xlu0 %v1772
  %v1774 = vpop.xlane.xlu0 %1773
  %v1775 = vsel %vm254, %v1316, 0.0
  %v1776 = vadd.f32 %v1315, %v1775
  %1777 = vadd.xlane.f32.xlu0 %v1776
  %v1778 = vpop.xlane.xlu0 %1777
  %v1779 = vsel %vm254, %v1318, 0.0
  %v1780 = vadd.f32 %v1317, %v1779
  %1781 = vadd.xlane.f32.xlu0 %v1780
  %v1782 = vpop.xlane.xlu0 %1781
  %v1783 = vsel %vm254, %v1320, 0.0
  %v1784 = vadd.f32 %v1319, %v1783
  %1785 = vadd.xlane.f32.xlu0 %v1784
  %v1786 = vpop.xlane.xlu0 %1785
  %v1787 = vsel %vm254, %v1322, 0.0
  %v1788 = vadd.f32 %v1321, %v1787
  %1789 = vadd.xlane.f32.xlu0 %v1788
  %v1790 = vpop.xlane.xlu0 %1789
  %v1791 = vsel %vm254, %v1324, 0.0
  %v1792 = vadd.f32 %v1323, %v1791
  %1793 = vadd.xlane.f32.xlu0 %v1792
  %v1794 = vpop.xlane.xlu0 %1793
  %v1795 = vsel %vm254, %v1326, 0.0
  %v1796 = vadd.f32 %v1325, %v1795
  %1797 = vadd.xlane.f32.xlu0 %v1796
  %v1798 = vpop.xlane.xlu0 %1797
  %v1799 = vsel %vm254, %v1328, 0.0
  %v1800 = vadd.f32 %v1327, %v1799
  %1801 = vadd.xlane.f32.xlu0 %v1800
  %v1802 = vpop.xlane.xlu0 %1801
  %v1803 = vsel %vm254, %v1330, 0.0
  %v1804 = vadd.f32 %v1329, %v1803
  %1805 = vadd.xlane.f32.xlu0 %v1804
  %v1806 = vpop.xlane.xlu0 %1805
  %v1807 = vsel %vm254, %v1332, 0.0
  %v1808 = vadd.f32 %v1331, %v1807
  %1809 = vadd.xlane.f32.xlu0 %v1808
  %v1810 = vpop.xlane.xlu0 %1809
  %v1811 = vsel %vm254, %v1334, 0.0
  %v1812 = vadd.f32 %v1333, %v1811
  %1813 = vadd.xlane.f32.xlu0 %v1812
  %v1814 = vpop.xlane.xlu0 %1813
  %v1815 = vmul.f32 %v1338, 0.0051020407
  %v1816 = vmul.f32 %v1342, 0.0051020407
  %v1817 = vmul.f32 %v1346, 0.0051020407
  %v1818 = vmul.f32 %v1350, 0.0051020407
  %v1819 = vmul.f32 %v1354, 0.0051020407
  %v1820 = vmul.f32 %v1358, 0.0051020407
  %v1821 = vmul.f32 %v1362, 0.0051020407
  %v1822 = vmul.f32 %v1366, 0.0051020407
  %v1823 = vmul.f32 %v1370, 0.0051020407
  %v1824 = vmul.f32 %v1374, 0.0051020407
  %v1825 = vmul.f32 %v1378, 0.0051020407
  %v1826 = vmul.f32 %v1382, 0.0051020407
  %v1827 = vmul.f32 %v1386, 0.0051020407
  %v1828 = vmul.f32 %v1390, 0.0051020407
  %v1829 = vmul.f32 %v1394, 0.0051020407
  %v1830 = vmul.f32 %v1398, 0.0051020407
  %v1831 = vmul.f32 %v1402, 0.0051020407
  %v1832 = vmul.f32 %v1406, 0.0051020407
  %v1833 = vmul.f32 %v1410, 0.0051020407
  %v1834 = vmul.f32 %v1414, 0.0051020407
  %v1835 = vmul.f32 %v1418, 0.0051020407
  %v1836 = vmul.f32 %v1422, 0.0051020407
  %v1837 = vmul.f32 %v1426, 0.0051020407
  %v1838 = vmul.f32 %v1430, 0.0051020407
  %v1839 = vmul.f32 %v1434, 0.0051020407
  %v1840 = vmul.f32 %v1438, 0.0051020407
  %v1841 = vmul.f32 %v1442, 0.0051020407
  %v1842 = vmul.f32 %v1446, 0.0051020407
  %v1843 = vmul.f32 %v1450, 0.0051020407
  %v1844 = vmul.f32 %v1454, 0.0051020407
  %v1845 = vmul.f32 %v1458, 0.0051020407
  %v1846 = vmul.f32 %v1462, 0.0051020407
  %v1847 = vmul.f32 %v1466, 0.0051020407
  %v1848 = vmul.f32 %v1470, 0.0051020407
  %v1849 = vmul.f32 %v1474, 0.0051020407
  %v1850 = vmul.f32 %v1478, 0.0051020407
  %v1851 = vmul.f32 %v1482, 0.0051020407
  %v1852 = vmul.f32 %v1486, 0.0051020407
  %v1853 = vmul.f32 %v1490, 0.0051020407
  %v1854 = vmul.f32 %v1494, 0.0051020407
  %v1855 = vmul.f32 %v1498, 0.0051020407
  %v1856 = vmul.f32 %v1502, 0.0051020407
  %v1857 = vmul.f32 %v1506, 0.0051020407
  %v1858 = vmul.f32 %v1510, 0.0051020407
  %v1859 = vmul.f32 %v1514, 0.0051020407
  %v1860 = vmul.f32 %v1518, 0.0051020407
  %v1861 = vmul.f32 %v1522, 0.0051020407
  %v1862 = vmul.f32 %v1526, 0.0051020407
  %v1863 = vmul.f32 %v1530, 0.0051020407
  %v1864 = vmul.f32 %v1534, 0.0051020407
  %v1865 = vmul.f32 %v1538, 0.0051020407
  %v1866 = vmul.f32 %v1542, 0.0051020407
  %v1867 = vmul.f32 %v1546, 0.0051020407
  %v1868 = vmul.f32 %v1550, 0.0051020407
  %v1869 = vmul.f32 %v1554, 0.0051020407
  %v1870 = vmul.f32 %v1558, 0.0051020407
  %v1871 = vmul.f32 %v1562, 0.0051020407
  %v1872 = vmul.f32 %v1566, 0.0051020407
  %v1873 = vmul.f32 %v1570, 0.0051020407
  %v1874 = vmul.f32 %v1574, 0.0051020407
  %v1875 = vmul.f32 %v1578, 0.0051020407
  %v1876 = vmul.f32 %v1582, 0.0051020407
  %v1877 = vmul.f32 %v1586, 0.0051020407
  %v1878 = vmul.f32 %v1590, 0.0051020407
  %v1879 = vmul.f32 %v1594, 0.0051020407
  %v1880 = vmul.f32 %v1598, 0.0051020407
  %v1881 = vmul.f32 %v1602, 0.0051020407
  %v1882 = vmul.f32 %v1606, 0.0051020407
  %v1883 = vmul.f32 %v1610, 0.0051020407
  %v1884 = vmul.f32 %v1614, 0.0051020407
  %v1885 = vmul.f32 %v1618, 0.0051020407
  %v1886 = vmul.f32 %v1622, 0.0051020407
  %v1887 = vmul.f32 %v1626, 0.0051020407
  %v1888 = vmul.f32 %v1630, 0.0051020407
  %v1889 = vmul.f32 %v1634, 0.0051020407
  %v1890 = vmul.f32 %v1638, 0.0051020407
  %v1891 = vmul.f32 %v1642, 0.0051020407
  %v1892 = vmul.f32 %v1646, 0.0051020407
  %v1893 = vmul.f32 %v1650, 0.0051020407
  %v1894 = vmul.f32 %v1654, 0.0051020407
  %v1895 = vmul.f32 %v1658, 0.0051020407
  %v1896 = vmul.f32 %v1662, 0.0051020407
  %v1897 = vmul.f32 %v1666, 0.0051020407
  %v1898 = vmul.f32 %v1670, 0.0051020407
  %v1899 = vmul.f32 %v1674, 0.0051020407
  %v1900 = vmul.f32 %v1678, 0.0051020407
  %v1901 = vmul.f32 %v1682, 0.0051020407
  %v1902 = vmul.f32 %v1686, 0.0051020407
  %v1903 = vmul.f32 %v1690, 0.0051020407
  %v1904 = vmul.f32 %v1694, 0.0051020407
  %v1905 = vmul.f32 %v1698, 0.0051020407
  %v1906 = vmul.f32 %v1702, 0.0051020407
  %v1907 = vmul.f32 %v1706, 0.0051020407
  %v1908 = vmul.f32 %v1710, 0.0051020407
  %v1909 = vmul.f32 %v1714, 0.0051020407
  %v1910 = vmul.f32 %v1718, 0.0051020407
  %v1911 = vmul.f32 %v1722, 0.0051020407
  %v1912 = vmul.f32 %v1726, 0.0051020407
  %v1913 = vmul.f32 %v1730, 0.0051020407
  %v1914 = vmul.f32 %v1734, 0.0051020407
  %v1915 = vmul.f32 %v1738, 0.0051020407
  %v1916 = vmul.f32 %v1742, 0.0051020407
  %v1917 = vmul.f32 %v1746, 0.0051020407
  %v1918 = vmul.f32 %v1750, 0.0051020407
  %v1919 = vmul.f32 %v1754, 0.0051020407
  %v1920 = vmul.f32 %v1758, 0.0051020407
  %v1921 = vmul.f32 %v1762, 0.0051020407
  %v1922 = vmul.f32 %v1766, 0.0051020407
  %v1923 = vmul.f32 %v1770, 0.0051020407
  %v1924 = vmul.f32 %v1774, 0.0051020407
  %v1925 = vmul.f32 %v1778, 0.0051020407
  %v1926 = vmul.f32 %v1782, 0.0051020407
  %v1927 = vmul.f32 %v1786, 0.0051020407
  %v1928 = vmul.f32 %v1790, 0.0051020407
  %v1929 = vmul.f32 %v1794, 0.0051020407
  %v1930 = vmul.f32 %v1798, 0.0051020407
  %v1931 = vmul.f32 %v1802, 0.0051020407
  %v1932 = vmul.f32 %v1806, 0.0051020407
  %v1933 = vmul.f32 %v1810, 0.0051020407
  %v1934 = vmul.f32 %v1814, 0.0051020407
  %v1935 = vld [vmem:[%s1] sm:$0xff]
  %v1936 = vld [vmem:[%s1 + $0x8] sm:$0xff]
  %v1937 = vld [vmem:[%s1 + $0x10] sm:$0xff]
  %v1938 = vld [vmem:[%s1 + $0x18] sm:$0xff]
  %v1939 = vld [vmem:[%s1 + $0x20] sm:$0xff]
  %v1940 = vld [vmem:[%s1 + $0x28] sm:$0xff]
  %v1941 = vld [vmem:[%s1 + $0x30] sm:$0xff]
  %v1942 = vld [vmem:[%s1 + $0x38] sm:$0xff]
  %v1943 = vld [vmem:[%s1 + $0x40] sm:$0xff]
  %v1944 = vld [vmem:[%s1 + $0x48] sm:$0xff]
  %v1945 = vld [vmem:[%s1 + $0x50] sm:$0xff]
  %v1946 = vld [vmem:[%s1 + $0x58] sm:$0xff]
  %v1947 = vld [vmem:[%s1 + $0x60] sm:$0xff]
  %v1948 = vld [vmem:[%s1 + $0x68] sm:$0xff]
  %v1949 = vld [vmem:[%s1 + $0x70] sm:$0xff]
  %v1950 = vld [vmem:[%s1 + $0x78] sm:$0xff]
  %v1951 = vld [vmem:[%s1 + $0x80] sm:$0xff]
  %v1952 = vld [vmem:[%s1 + $0x88] sm:$0xff]
  %v1953 = vld [vmem:[%s1 + $0x90] sm:$0xff]
  %v1954 = vld [vmem:[%s1 + $0x98] sm:$0xff]
  %v1955 = vld [vmem:[%s1 + $0xa0] sm:$0xff]
  %v1956 = vld [vmem:[%s1 + $0xa8] sm:$0xff]
  %v1957 = vld [vmem:[%s1 + $0xb0] sm:$0xff]
  %v1958 = vld [vmem:[%s1 + $0xb8] sm:$0xff]
  %v1959 = vld [vmem:[%s1 + $0xc0] sm:$0xff]
  %v1960 = vld [vmem:[%s1 + $0xc8] sm:$0xff]
  %v1961 = vld [vmem:[%s1 + $0xd0] sm:$0xff]
  %v1962 = vld [vmem:[%s1 + $0xd8] sm:$0xff]
  %v1963 = vld [vmem:[%s1 + $0xe0] sm:$0xff]
  %v1964 = vld [vmem:[%s1 + $0xe8] sm:$0xff]
  %v1965 = vld [vmem:[%s1 + $0xf0] sm:$0xff]
  %v1966 = vld [vmem:[%s1 + $0xf8] sm:$0xff]
  %v1967 = vld [vmem:[%s1 + $0x100] sm:$0xff]
  %v1968 = vld [vmem:[%s1 + $0x108] sm:$0xff]
  %v1969 = vld [vmem:[%s1 + $0x110] sm:$0xff]
  %v1970 = vld [vmem:[%s1 + $0x118] sm:$0xff]
  %v1971 = vld [vmem:[%s1 + $0x120] sm:$0xff]
  %v1972 = vld [vmem:[%s1 + $0x128] sm:$0xff]
  %v1973 = vld [vmem:[%s1 + $0x130] sm:$0xff]
  %v1974 = vld [vmem:[%s1 + $0x138] sm:$0xff]
  %v1975 = vld [vmem:[%s1 + $0x140] sm:$0xff]
  %v1976 = vld [vmem:[%s1 + $0x148] sm:$0xff]
  %v1977 = vld [vmem:[%s1 + $0x150] sm:$0xff]
  %v1978 = vld [vmem:[%s1 + $0x158] sm:$0xff]
  %v1979 = vld [vmem:[%s1 + $0x160] sm:$0xff]
  %v1980 = vld [vmem:[%s1 + $0x168] sm:$0xff]
  %v1981 = vld [vmem:[%s1 + $0x170] sm:$0xff]
  %v1982 = vld [vmem:[%s1 + $0x178] sm:$0xff]
  %v1983 = vld [vmem:[%s1 + $0x180] sm:$0xff]
  %v1984 = vld [vmem:[%s1 + $0x188] sm:$0xff]
  %v1985 = vld [vmem:[%s1 + $0x190] sm:$0xff]
  %v1986 = vld [vmem:[%s1 + $0x198] sm:$0xff]
  %v1987 = vld [vmem:[%s1 + $0x1a0] sm:$0xff]
  %v1988 = vld [vmem:[%s1 + $0x1a8] sm:$0xff]
  %v1989 = vld [vmem:[%s1 + $0x1b0] sm:$0xff]
  %v1990 = vld [vmem:[%s1 + $0x1b8] sm:$0xff]
  %v1991 = vld [vmem:[%s1 + $0x1c0] sm:$0xff]
  %v1992 = vld [vmem:[%s1 + $0x1c8] sm:$0xff]
  %v1993 = vld [vmem:[%s1 + $0x1d0] sm:$0xff]
  %v1994 = vld [vmem:[%s1 + $0x1d8] sm:$0xff]
  %v1995 = vld [vmem:[%s1 + $0x1e0] sm:$0xff]
  %v1996 = vld [vmem:[%s1 + $0x1e8] sm:$0xff]
  %v1997 = vld [vmem:[%s1 + $0x1f0] sm:$0xff]
  %v1998 = vld [vmem:[%s1 + $0x1f8] sm:$0xff]
  %v1999 = vld [vmem:[%s1 + $0x200] sm:$0xff]
  %v2000 = vld [vmem:[%s1 + $0x208] sm:$0xff]
  %v2001 = vld [vmem:[%s1 + $0x210] sm:$0xff]
  %v2002 = vld [vmem:[%s1 + $0x218] sm:$0xff]
  %v2003 = vld [vmem:[%s1 + $0x220] sm:$0xff]
  %v2004 = vld [vmem:[%s1 + $0x228] sm:$0xff]
  %v2005 = vld [vmem:[%s1 + $0x230] sm:$0xff]
  %v2006 = vld [vmem:[%s1 + $0x238] sm:$0xff]
  %v2007 = vld [vmem:[%s1 + $0x240] sm:$0xff]
  %v2008 = vld [vmem:[%s1 + $0x248] sm:$0xff]
  %v2009 = vld [vmem:[%s1 + $0x250] sm:$0xff]
  %v2010 = vld [vmem:[%s1 + $0x258] sm:$0xff]
  %v2011 = vld [vmem:[%s1 + $0x260] sm:$0xff]
  %v2012 = vld [vmem:[%s1 + $0x268] sm:$0xff]
  %v2013 = vld [vmem:[%s1 + $0x270] sm:$0xff]
  %v2014 = vld [vmem:[%s1 + $0x278] sm:$0xff]
  %v2015 = vld [vmem:[%s1 + $0x280] sm:$0xff]
  %v2016 = vld [vmem:[%s1 + $0x288] sm:$0xff]
  %v2017 = vld [vmem:[%s1 + $0x290] sm:$0xff]
  %v2018 = vld [vmem:[%s1 + $0x298] sm:$0xff]
  %v2019 = vld [vmem:[%s1 + $0x2a0] sm:$0xff]
  %v2020 = vld [vmem:[%s1 + $0x2a8] sm:$0xff]
  %v2021 = vld [vmem:[%s1 + $0x2b0] sm:$0xff]
  %v2022 = vld [vmem:[%s1 + $0x2b8] sm:$0xff]
  %v2023 = vld [vmem:[%s1 + $0x2c0] sm:$0xff]
  %v2024 = vld [vmem:[%s1 + $0x2c8] sm:$0xff]
  %v2025 = vld [vmem:[%s1 + $0x2d0] sm:$0xff]
  %v2026 = vld [vmem:[%s1 + $0x2d8] sm:$0xff]
  %v2027 = vld [vmem:[%s1 + $0x2e0] sm:$0xff]
  %v2028 = vld [vmem:[%s1 + $0x2e8] sm:$0xff]
  %v2029 = vld [vmem:[%s1 + $0x2f0] sm:$0xff]
  %v2030 = vld [vmem:[%s1 + $0x2f8] sm:$0xff]
  %v2031 = vld [vmem:[%s1 + $0x300] sm:$0xff]
  %v2032 = vld [vmem:[%s1 + $0x308] sm:$0xff]
  %v2033 = vld [vmem:[%s1 + $0x310] sm:$0xff]
  %v2034 = vld [vmem:[%s1 + $0x318] sm:$0xff]
  %v2035 = vld [vmem:[%s1 + $0x320] sm:$0xff]
  %v2036 = vld [vmem:[%s1 + $0x328] sm:$0xff]
  %v2037 = vld [vmem:[%s1 + $0x330] sm:$0xff]
  %v2038 = vld [vmem:[%s1 + $0x338] sm:$0xff]
  %v2039 = vld [vmem:[%s1 + $0x340] sm:$0xff]
  %v2040 = vld [vmem:[%s1 + $0x348] sm:$0xff]
  %v2041 = vld [vmem:[%s1 + $0x350] sm:$0xff]
  %v2042 = vld [vmem:[%s1 + $0x358] sm:$0xff]
  %v2043 = vld [vmem:[%s1 + $0x360] sm:$0xff]
  %v2044 = vld [vmem:[%s1 + $0x368] sm:$0xff]
  %v2045 = vld [vmem:[%s1 + $0x370] sm:$0xff]
  %v2046 = vld [vmem:[%s1 + $0x378] sm:$0xff]
  %v2047 = vld [vmem:[%s1 + $0x380] sm:$0xff]
  %v2048 = vld [vmem:[%s1 + $0x388] sm:$0xff]
  %v2049 = vld [vmem:[%s1 + $0x390] sm:$0xff]
  %v2050 = vld [vmem:[%s1 + $0x398] sm:$0xff]
  %v2051 = vld [vmem:[%s1 + $0x3a0] sm:$0xff]
  %v2052 = vld [vmem:[%s1 + $0x3a8] sm:$0xff]
  %v2053 = vld [vmem:[%s1 + $0x3b0] sm:$0xff]
  %v2054 = vld [vmem:[%s1 + $0x3b8] sm:$0xff]
  %v2055 = vadd.f32 %v1815, 1e-05
  %v2056 = vadd.f32 %v1816, 1e-05
  %v2057 = vadd.f32 %v1817, 1e-05
  %v2058 = vadd.f32 %v1818, 1e-05
  %v2059 = vadd.f32 %v1819, 1e-05
  %v2060 = vadd.f32 %v1820, 1e-05
  %v2061 = vadd.f32 %v1821, 1e-05
  %v2062 = vadd.f32 %v1822, 1e-05
  %v2063 = vadd.f32 %v1823, 1e-05
  %v2064 = vadd.f32 %v1824, 1e-05
  %v2065 = vadd.f32 %v1825, 1e-05
  %v2066 = vadd.f32 %v1826, 1e-05
  %v2067 = vadd.f32 %v1827, 1e-05
  %v2068 = vadd.f32 %v1828, 1e-05
  %v2069 = vadd.f32 %v1829, 1e-05
  %v2070 = vadd.f32 %v1830, 1e-05
  %v2071 = vadd.f32 %v1831, 1e-05
  %v2072 = vadd.f32 %v1832, 1e-05
  %v2073 = vadd.f32 %v1833, 1e-05
  %v2074 = vadd.f32 %v1834, 1e-05
  %v2075 = vadd.f32 %v1835, 1e-05
  %v2076 = vadd.f32 %v1836, 1e-05
  %v2077 = vadd.f32 %v1837, 1e-05
  %v2078 = vadd.f32 %v1838, 1e-05
  %v2079 = vadd.f32 %v1839, 1e-05
  %v2080 = vadd.f32 %v1840, 1e-05
  %v2081 = vadd.f32 %v1841, 1e-05
  %v2082 = vadd.f32 %v1842, 1e-05
  %v2083 = vadd.f32 %v1843, 1e-05
  %v2084 = vadd.f32 %v1844, 1e-05
  %v2085 = vadd.f32 %v1845, 1e-05
  %v2086 = vadd.f32 %v1846, 1e-05
  %v2087 = vadd.f32 %v1847, 1e-05
  %v2088 = vadd.f32 %v1848, 1e-05
  %v2089 = vadd.f32 %v1849, 1e-05
  %v2090 = vadd.f32 %v1850, 1e-05
  %v2091 = vadd.f32 %v1851, 1e-05
  %v2092 = vadd.f32 %v1852, 1e-05
  %v2093 = vadd.f32 %v1853, 1e-05
  %v2094 = vadd.f32 %v1854, 1e-05
  %v2095 = vadd.f32 %v1855, 1e-05
  %v2096 = vadd.f32 %v1856, 1e-05
  %v2097 = vadd.f32 %v1857, 1e-05
  %v2098 = vadd.f32 %v1858, 1e-05
  %v2099 = vadd.f32 %v1859, 1e-05
  %v2100 = vadd.f32 %v1860, 1e-05
  %v2101 = vadd.f32 %v1861, 1e-05
  %v2102 = vadd.f32 %v1862, 1e-05
  %v2103 = vadd.f32 %v1863, 1e-05
  %v2104 = vadd.f32 %v1864, 1e-05
  %v2105 = vadd.f32 %v1865, 1e-05
  %v2106 = vadd.f32 %v1866, 1e-05
  %v2107 = vadd.f32 %v1867, 1e-05
  %v2108 = vadd.f32 %v1868, 1e-05
  %v2109 = vadd.f32 %v1869, 1e-05
  %v2110 = vadd.f32 %v1870, 1e-05
  %v2111 = vadd.f32 %v1871, 1e-05
  %v2112 = vadd.f32 %v1872, 1e-05
  %v2113 = vadd.f32 %v1873, 1e-05
  %v2114 = vadd.f32 %v1874, 1e-05
  %v2115 = vadd.f32 %v1875, 1e-05
  %v2116 = vadd.f32 %v1876, 1e-05
  %v2117 = vadd.f32 %v1877, 1e-05
  %v2118 = vadd.f32 %v1878, 1e-05
  %v2119 = vadd.f32 %v1879, 1e-05
  %v2120 = vadd.f32 %v1880, 1e-05
  %v2121 = vadd.f32 %v1881, 1e-05
  %v2122 = vadd.f32 %v1882, 1e-05
  %v2123 = vadd.f32 %v1883, 1e-05
  %v2124 = vadd.f32 %v1884, 1e-05
  %v2125 = vadd.f32 %v1885, 1e-05
  %v2126 = vadd.f32 %v1886, 1e-05
  %v2127 = vadd.f32 %v1887, 1e-05
  %v2128 = vadd.f32 %v1888, 1e-05
  %v2129 = vadd.f32 %v1889, 1e-05
  %v2130 = vadd.f32 %v1890, 1e-05
  %v2131 = vadd.f32 %v1891, 1e-05
  %v2132 = vadd.f32 %v1892, 1e-05
  %v2133 = vadd.f32 %v1893, 1e-05
  %v2134 = vadd.f32 %v1894, 1e-05
  %v2135 = vadd.f32 %v1895, 1e-05
  %v2136 = vadd.f32 %v1896, 1e-05
  %v2137 = vadd.f32 %v1897, 1e-05
  %v2138 = vadd.f32 %v1898, 1e-05
  %v2139 = vadd.f32 %v1899, 1e-05
  %v2140 = vadd.f32 %v1900, 1e-05
  %v2141 = vadd.f32 %v1901, 1e-05
  %v2142 = vadd.f32 %v1902, 1e-05
  %v2143 = vadd.f32 %v1903, 1e-05
  %v2144 = vadd.f32 %v1904, 1e-05
  %v2145 = vadd.f32 %v1905, 1e-05
  %v2146 = vadd.f32 %v1906, 1e-05
  %v2147 = vadd.f32 %v1907, 1e-05
  %v2148 = vadd.f32 %v1908, 1e-05
  %v2149 = vadd.f32 %v1909, 1e-05
  %v2150 = vadd.f32 %v1910, 1e-05
  %v2151 = vadd.f32 %v1911, 1e-05
  %v2152 = vadd.f32 %v1912, 1e-05
  %v2153 = vadd.f32 %v1913, 1e-05
  %v2154 = vadd.f32 %v1914, 1e-05
  %v2155 = vadd.f32 %v1915, 1e-05
  %v2156 = vadd.f32 %v1916, 1e-05
  %v2157 = vadd.f32 %v1917, 1e-05
  %v2158 = vadd.f32 %v1918, 1e-05
  %v2159 = vadd.f32 %v1919, 1e-05
  %v2160 = vadd.f32 %v1920, 1e-05
  %v2161 = vadd.f32 %v1921, 1e-05
  %v2162 = vadd.f32 %v1922, 1e-05
  %v2163 = vadd.f32 %v1923, 1e-05
  %v2164 = vadd.f32 %v1924, 1e-05
  %v2165 = vadd.f32 %v1925, 1e-05
  %v2166 = vadd.f32 %v1926, 1e-05
  %v2167 = vadd.f32 %v1927, 1e-05
  %v2168 = vadd.f32 %v1928, 1e-05
  %v2169 = vadd.f32 %v1929, 1e-05
  %v2170 = vadd.f32 %v1930, 1e-05
  %v2171 = vadd.f32 %v1931, 1e-05
  %v2172 = vadd.f32 %v1932, 1e-05
  %v2173 = vadd.f32 %v1933, 1e-05
  %v2174 = vadd.f32 %v1934, 1e-05
  %v2175 = vrsqrt.pop %v2055
  %v2176 = vrsqrt.pop %v2056
  %v2177 = vrsqrt.pop %v2057
  %v2178 = vrsqrt.pop %v2058
  %v2179 = vrsqrt.pop %v2059
  %v2180 = vrsqrt.pop %v2060
  %v2181 = vrsqrt.pop %v2061
  %v2182 = vrsqrt.pop %v2062
  %v2183 = vrsqrt.pop %v2063
  %v2184 = vrsqrt.pop %v2064
  %v2185 = vrsqrt.pop %v2065
  %v2186 = vrsqrt.pop %v2066
  %v2187 = vrsqrt.pop %v2067
  %v2188 = vrsqrt.pop %v2068
  %v2189 = vrsqrt.pop %v2069
  %v2190 = vrsqrt.pop %v2070
  %v2191 = vrsqrt.pop %v2071
  %v2192 = vrsqrt.pop %v2072
  %v2193 = vrsqrt.pop %v2073
  %v2194 = vrsqrt.pop %v2074
  %v2195 = vrsqrt.pop %v2075
  %v2196 = vrsqrt.pop %v2076
  %v2197 = vrsqrt.pop %v2077
  %v2198 = vrsqrt.pop %v2078
  %v2199 = vrsqrt.pop %v2079
  %v2200 = vrsqrt.pop %v2080
  %v2201 = vrsqrt.pop %v2081
  %v2202 = vrsqrt.pop %v2082
  %v2203 = vrsqrt.pop %v2083
  %v2204 = vrsqrt.pop %v2084
  %v2205 = vrsqrt.pop %v2085
  %v2206 = vrsqrt.pop %v2086
  %v2207 = vrsqrt.pop %v2087
  %v2208 = vrsqrt.pop %v2088
  %v2209 = vrsqrt.pop %v2089
  %v2210 = vrsqrt.pop %v2090
  %v2211 = vrsqrt.pop %v2091
  %v2212 = vrsqrt.pop %v2092
  %v2213 = vrsqrt.pop %v2093
  %v2214 = vrsqrt.pop %v2094
  %v2215 = vrsqrt.pop %v2095
  %v2216 = vrsqrt.pop %v2096
  %v2217 = vrsqrt.pop %v2097
  %v2218 = vrsqrt.pop %v2098
  %v2219 = vrsqrt.pop %v2099
  %v2220 = vrsqrt.pop %v2100
  %v2221 = vrsqrt.pop %v2101
  %v2222 = vrsqrt.pop %v2102
  %v2223 = vrsqrt.pop %v2103
  %v2224 = vrsqrt.pop %v2104
  %v2225 = vrsqrt.pop %v2105
  %v2226 = vrsqrt.pop %v2106
  %v2227 = vrsqrt.pop %v2107
  %v2228 = vrsqrt.pop %v2108
  %v2229 = vrsqrt.pop %v2109
  %v2230 = vrsqrt.pop %v2110
  %v2231 = vrsqrt.pop %v2111
  %v2232 = vrsqrt.pop %v2112
  %v2233 = vrsqrt.pop %v2113
  %v2234 = vrsqrt.pop %v2114
  %v2235 = vrsqrt.pop %v2115
  %v2236 = vrsqrt.pop %v2116
  %v2237 = vrsqrt.pop %v2117
  %v2238 = vrsqrt.pop %v2118
  %v2239 = vrsqrt.pop %v2119
  %v2240 = vrsqrt.pop %v2120
  %v2241 = vrsqrt.pop %v2121
  %v2242 = vrsqrt.pop %v2122
  %v2243 = vrsqrt.pop %v2123
  %v2244 = vrsqrt.pop %v2124
  %v2245 = vrsqrt.pop %v2125
  %v2246 = vrsqrt.pop %v2126
  %v2247 = vrsqrt.pop %v2127
  %v2248 = vrsqrt.pop %v2128
  %v2249 = vrsqrt.pop %v2129
  %v2250 = vrsqrt.pop %v2130
  %v2251 = vrsqrt.pop %v2131
  %v2252 = vrsqrt.pop %v2132
  %v2253 = vrsqrt.pop %v2133
  %v2254 = vrsqrt.pop %v2134
  %v2255 = vrsqrt.pop %v2135
  %v2256 = vrsqrt.pop %v2136
  %v2257 = vrsqrt.pop %v2137
  %v2258 = vrsqrt.pop %v2138
  %v2259 = vrsqrt.pop %v2139
  %v2260 = vrsqrt.pop %v2140
  %v2261 = vrsqrt.pop %v2141
  %v2262 = vrsqrt.pop %v2142
  %v2263 = vrsqrt.pop %v2143
  %v2264 = vrsqrt.pop %v2144
  %v2265 = vrsqrt.pop %v2145
  %v2266 = vrsqrt.pop %v2146
  %v2267 = vrsqrt.pop %v2147
  %v2268 = vrsqrt.pop %v2148
  %v2269 = vrsqrt.pop %v2149
  %v2270 = vrsqrt.pop %v2150
  %v2271 = vrsqrt.pop %v2151
  %v2272 = vrsqrt.pop %v2152
  %v2273 = vrsqrt.pop %v2153
  %v2274 = vrsqrt.pop %v2154
  %v2275 = vrsqrt.pop %v2155
  %v2276 = vrsqrt.pop %v2156
  %v2277 = vrsqrt.pop %v2157
  %v2278 = vrsqrt.pop %v2158
  %v2279 = vrsqrt.pop %v2159
  %v2280 = vrsqrt.pop %v2160
  %v2281 = vrsqrt.pop %v2161
  %v2282 = vrsqrt.pop %v2162
  %v2283 = vrsqrt.pop %v2163
  %v2284 = vrsqrt.pop %v2164
  %v2285 = vrsqrt.pop %v2165
  %v2286 = vrsqrt.pop %v2166
  %v2287 = vrsqrt.pop %v2167
  %v2288 = vrsqrt.pop %v2168
  %v2289 = vrsqrt.pop %v2169
  %v2290 = vrsqrt.pop %v2170
  %v2291 = vrsqrt.pop %v2171
  %v2292 = vrsqrt.pop %v2172
  %v2293 = vrsqrt.pop %v2173
  %v2294 = vrsqrt.pop %v2174
  %v2295 = vmul.f32 %v1935, %v2175
  %v2296 = vmul.f32 %v1936, %v2176
  %v2297 = vmul.f32 %v1937, %v2177
  %v2298 = vmul.f32 %v1938, %v2178
  %v2299 = vmul.f32 %v1939, %v2179
  %v2300 = vmul.f32 %v1940, %v2180
  %v2301 = vmul.f32 %v1941, %v2181
  %v2302 = vmul.f32 %v1942, %v2182
  %v2303 = vmul.f32 %v1943, %v2183
  %v2304 = vmul.f32 %v1944, %v2184
  %v2305 = vmul.f32 %v1945, %v2185
  %v2306 = vmul.f32 %v1946, %v2186
  %v2307 = vmul.f32 %v1947, %v2187
  %v2308 = vmul.f32 %v1948, %v2188
  %v2309 = vmul.f32 %v1949, %v2189
  %v2310 = vmul.f32 %v1950, %v2190
  %v2311 = vmul.f32 %v1951, %v2191
  %v2312 = vmul.f32 %v1952, %v2192
  %v2313 = vmul.f32 %v1953, %v2193
  %v2314 = vmul.f32 %v1954, %v2194
  %v2315 = vmul.f32 %v1955, %v2195
  %v2316 = vmul.f32 %v1956, %v2196
  %v2317 = vmul.f32 %v1957, %v2197
  %v2318 = vmul.f32 %v1958, %v2198
  %v2319 = vmul.f32 %v1959, %v2199
  %v2320 = vmul.f32 %v1960, %v2200
  %v2321 = vmul.f32 %v1961, %v2201
  %v2322 = vmul.f32 %v1962, %v2202
  %v2323 = vmul.f32 %v1963, %v2203
  %v2324 = vmul.f32 %v1964, %v2204
  %v2325 = vmul.f32 %v1965, %v2205
  %v2326 = vmul.f32 %v1966, %v2206
  %v2327 = vmul.f32 %v1967, %v2207
  %v2328 = vmul.f32 %v1968, %v2208
  %v2329 = vmul.f32 %v1969, %v2209
  %v2330 = vmul.f32 %v1970, %v2210
  %v2331 = vmul.f32 %v1971, %v2211
  %v2332 = vmul.f32 %v1972, %v2212
  %v2333 = vmul.f32 %v1973, %v2213
  %v2334 = vmul.f32 %v1974, %v2214
  %v2335 = vmul.f32 %v1975, %v2215
  %v2336 = vmul.f32 %v1976, %v2216
  %v2337 = vmul.f32 %v1977, %v2217
  %v2338 = vmul.f32 %v1978, %v2218
  %v2339 = vmul.f32 %v1979, %v2219
  %v2340 = vmul.f32 %v1980, %v2220
  %v2341 = vmul.f32 %v1981, %v2221
  %v2342 = vmul.f32 %v1982, %v2222
  %v2343 = vmul.f32 %v1983, %v2223
  %v2344 = vmul.f32 %v1984, %v2224
  %v2345 = vmul.f32 %v1985, %v2225
  %v2346 = vmul.f32 %v1986, %v2226
  %v2347 = vmul.f32 %v1987, %v2227
  %v2348 = vmul.f32 %v1988, %v2228
  %v2349 = vmul.f32 %v1989, %v2229
  %v2350 = vmul.f32 %v1990, %v2230
  %v2351 = vmul.f32 %v1991, %v2231
  %v2352 = vmul.f32 %v1992, %v2232
  %v2353 = vmul.f32 %v1993, %v2233
  %v2354 = vmul.f32 %v1994, %v2234
  %v2355 = vmul.f32 %v1995, %v2235
  %v2356 = vmul.f32 %v1996, %v2236
  %v2357 = vmul.f32 %v1997, %v2237
  %v2358 = vmul.f32 %v1998, %v2238
  %v2359 = vmul.f32 %v1999, %v2239
  %v2360 = vmul.f32 %v2000, %v2240
  %v2361 = vmul.f32 %v2001, %v2241
  %v2362 = vmul.f32 %v2002, %v2242
  %v2363 = vmul.f32 %v2003, %v2243
  %v2364 = vmul.f32 %v2004, %v2244
  %v2365 = vmul.f32 %v2005, %v2245
  %v2366 = vmul.f32 %v2006, %v2246
  %v2367 = vmul.f32 %v2007, %v2247
  %v2368 = vmul.f32 %v2008, %v2248
  %v2369 = vmul.f32 %v2009, %v2249
  %v2370 = vmul.f32 %v2010, %v2250
  %v2371 = vmul.f32 %v2011, %v2251
  %v2372 = vmul.f32 %v2012, %v2252
  %v2373 = vmul.f32 %v2013, %v2253
  %v2374 = vmul.f32 %v2014, %v2254
  %v2375 = vmul.f32 %v2015, %v2255
  %v2376 = vmul.f32 %v2016, %v2256
  %v2377 = vmul.f32 %v2017, %v2257
  %v2378 = vmul.f32 %v2018, %v2258
  %v2379 = vmul.f32 %v2019, %v2259
  %v2380 = vmul.f32 %v2020, %v2260
  %v2381 = vmul.f32 %v2021, %v2261
  %v2382 = vmul.f32 %v2022, %v2262
  %v2383 = vmul.f32 %v2023, %v2263
  %v2384 = vmul.f32 %v2024, %v2264
  %v2385 = vmul.f32 %v2025, %v2265
  %v2386 = vmul.f32 %v2026, %v2266
  %v2387 = vmul.f32 %v2027, %v2267
  %v2388 = vmul.f32 %v2028, %v2268
  %v2389 = vmul.f32 %v2029, %v2269
  %v2390 = vmul.f32 %v2030, %v2270
  %v2391 = vmul.f32 %v2031, %v2271
  %v2392 = vmul.f32 %v2032, %v2272
  %v2393 = vmul.f32 %v2033, %v2273
  %v2394 = vmul.f32 %v2034, %v2274
  %v2395 = vmul.f32 %v2035, %v2275
  %v2396 = vmul.f32 %v2036, %v2276
  %v2397 = vmul.f32 %v2037, %v2277
  %v2398 = vmul.f32 %v2038, %v2278
  %v2399 = vmul.f32 %v2039, %v2279
  %v2400 = vmul.f32 %v2040, %v2280
  %v2401 = vmul.f32 %v2041, %v2281
  %v2402 = vmul.f32 %v2042, %v2282
  %v2403 = vmul.f32 %v2043, %v2283
  %v2404 = vmul.f32 %v2044, %v2284
  %v2405 = vmul.f32 %v2045, %v2285
  %v2406 = vmul.f32 %v2046, %v2286
  %v2407 = vmul.f32 %v2047, %v2287
  %v2408 = vmul.f32 %v2048, %v2288
  %v2409 = vmul.f32 %v2049, %v2289
  %v2410 = vmul.f32 %v2050, %v2290
  %v2411 = vmul.f32 %v2051, %v2291
  %v2412 = vmul.f32 %v2052, %v2292
  %v2413 = vmul.f32 %v2053, %v2293
  %v2414 = vmul.f32 %v2054, %v2294
  %2416 = vset.pattern.permute.xlu0 0
  %2417 = vperm.xlu0 %2416, %v2295
  %v2418 = vpop.permute.xlu0 %2417
  %2421 = vset.pattern.permute.xlu0 0
  %2422 = vperm.xlu0 %2421, %v2296
  %v2423 = vpop.permute.xlu0 %2422
  %2426 = vset.pattern.permute.xlu0 0
  %2427 = vperm.xlu0 %2426, %v2297
  %v2428 = vpop.permute.xlu0 %2427
  %2431 = vset.pattern.permute.xlu0 0
  %2432 = vperm.xlu0 %2431, %v2298
  %v2433 = vpop.permute.xlu0 %2432
  %2436 = vset.pattern.permute.xlu0 0
  %2437 = vperm.xlu0 %2436, %v2299
  %v2438 = vpop.permute.xlu0 %2437
  %2441 = vset.pattern.permute.xlu0 0
  %2442 = vperm.xlu0 %2441, %v2300
  %v2443 = vpop.permute.xlu0 %2442
  %2446 = vset.pattern.permute.xlu0 0
  %2447 = vperm.xlu0 %2446, %v2301
  %v2448 = vpop.permute.xlu0 %2447
  %2451 = vset.pattern.permute.xlu0 0
  %2452 = vperm.xlu0 %2451, %v2302
  %v2453 = vpop.permute.xlu0 %2452
  %2456 = vset.pattern.permute.xlu0 0
  %2457 = vperm.xlu0 %2456, %v2303
  %v2458 = vpop.permute.xlu0 %2457
  %2461 = vset.pattern.permute.xlu0 0
  %2462 = vperm.xlu0 %2461, %v2304
  %v2463 = vpop.permute.xlu0 %2462
  %2466 = vset.pattern.permute.xlu0 0
  %2467 = vperm.xlu0 %2466, %v2305
  %v2468 = vpop.permute.xlu0 %2467
  %2471 = vset.pattern.permute.xlu0 0
  %2472 = vperm.xlu0 %2471, %v2306
  %v2473 = vpop.permute.xlu0 %2472
  %2476 = vset.pattern.permute.xlu0 0
  %2477 = vperm.xlu0 %2476, %v2307
  %v2478 = vpop.permute.xlu0 %2477
  %2481 = vset.pattern.permute.xlu0 0
  %2482 = vperm.xlu0 %2481, %v2308
  %v2483 = vpop.permute.xlu0 %2482
  %2486 = vset.pattern.permute.xlu0 0
  %2487 = vperm.xlu0 %2486, %v2309
  %v2488 = vpop.permute.xlu0 %2487
  %2491 = vset.pattern.permute.xlu0 0
  %2492 = vperm.xlu0 %2491, %v2310
  %v2493 = vpop.permute.xlu0 %2492
  %2496 = vset.pattern.permute.xlu0 0
  %2497 = vperm.xlu0 %2496, %v2311
  %v2498 = vpop.permute.xlu0 %2497
  %2501 = vset.pattern.permute.xlu0 0
  %2502 = vperm.xlu0 %2501, %v2312
  %v2503 = vpop.permute.xlu0 %2502
  %2506 = vset.pattern.permute.xlu0 0
  %2507 = vperm.xlu0 %2506, %v2313
  %v2508 = vpop.permute.xlu0 %2507
  %2511 = vset.pattern.permute.xlu0 0
  %2512 = vperm.xlu0 %2511, %v2314
  %v2513 = vpop.permute.xlu0 %2512
  %2516 = vset.pattern.permute.xlu0 0
  %2517 = vperm.xlu0 %2516, %v2315
  %v2518 = vpop.permute.xlu0 %2517
  %2521 = vset.pattern.permute.xlu0 0
  %2522 = vperm.xlu0 %2521, %v2316
  %v2523 = vpop.permute.xlu0 %2522
  %2526 = vset.pattern.permute.xlu0 0
  %2527 = vperm.xlu0 %2526, %v2317
  %v2528 = vpop.permute.xlu0 %2527
  %2531 = vset.pattern.permute.xlu0 0
  %2532 = vperm.xlu0 %2531, %v2318
  %v2533 = vpop.permute.xlu0 %2532
  %2536 = vset.pattern.permute.xlu0 0
  %2537 = vperm.xlu0 %2536, %v2319
  %v2538 = vpop.permute.xlu0 %2537
  %2541 = vset.pattern.permute.xlu0 0
  %2542 = vperm.xlu0 %2541, %v2320
  %v2543 = vpop.permute.xlu0 %2542
  %2546 = vset.pattern.permute.xlu0 0
  %2547 = vperm.xlu0 %2546, %v2321
  %v2548 = vpop.permute.xlu0 %2547
  %2551 = vset.pattern.permute.xlu0 0
  %2552 = vperm.xlu0 %2551, %v2322
  %v2553 = vpop.permute.xlu0 %2552
  %2556 = vset.pattern.permute.xlu0 0
  %2557 = vperm.xlu0 %2556, %v2323
  %v2558 = vpop.permute.xlu0 %2557
  %2561 = vset.pattern.permute.xlu0 0
  %2562 = vperm.xlu0 %2561, %v2324
  %v2563 = vpop.permute.xlu0 %2562
  %2566 = vset.pattern.permute.xlu0 0
  %2567 = vperm.xlu0 %2566, %v2325
  %v2568 = vpop.permute.xlu0 %2567
  %2571 = vset.pattern.permute.xlu0 0
  %2572 = vperm.xlu0 %2571, %v2326
  %v2573 = vpop.permute.xlu0 %2572
  %2576 = vset.pattern.permute.xlu0 0
  %2577 = vperm.xlu0 %2576, %v2327
  %v2578 = vpop.permute.xlu0 %2577
  %2581 = vset.pattern.permute.xlu0 0
  %2582 = vperm.xlu0 %2581, %v2328
  %v2583 = vpop.permute.xlu0 %2582
  %2586 = vset.pattern.permute.xlu0 0
  %2587 = vperm.xlu0 %2586, %v2329
  %v2588 = vpop.permute.xlu0 %2587
  %2591 = vset.pattern.permute.xlu0 0
  %2592 = vperm.xlu0 %2591, %v2330
  %v2593 = vpop.permute.xlu0 %2592
  %2596 = vset.pattern.permute.xlu0 0
  %2597 = vperm.xlu0 %2596, %v2331
  %v2598 = vpop.permute.xlu0 %2597
  %2601 = vset.pattern.permute.xlu0 0
  %2602 = vperm.xlu0 %2601, %v2332
  %v2603 = vpop.permute.xlu0 %2602
  %2606 = vset.pattern.permute.xlu0 0
  %2607 = vperm.xlu0 %2606, %v2333
  %v2608 = vpop.permute.xlu0 %2607
  %2611 = vset.pattern.permute.xlu0 0
  %2612 = vperm.xlu0 %2611, %v2334
  %v2613 = vpop.permute.xlu0 %2612
  %2616 = vset.pattern.permute.xlu0 0
  %2617 = vperm.xlu0 %2616, %v2335
  %v2618 = vpop.permute.xlu0 %2617
  %2621 = vset.pattern.permute.xlu0 0
  %2622 = vperm.xlu0 %2621, %v2336
  %v2623 = vpop.permute.xlu0 %2622
  %2626 = vset.pattern.permute.xlu0 0
  %2627 = vperm.xlu0 %2626, %v2337
  %v2628 = vpop.permute.xlu0 %2627
  %2631 = vset.pattern.permute.xlu0 0
  %2632 = vperm.xlu0 %2631, %v2338
  %v2633 = vpop.permute.xlu0 %2632
  %2636 = vset.pattern.permute.xlu0 0
  %2637 = vperm.xlu0 %2636, %v2339
  %v2638 = vpop.permute.xlu0 %2637
  %2641 = vset.pattern.permute.xlu0 0
  %2642 = vperm.xlu0 %2641, %v2340
  %v2643 = vpop.permute.xlu0 %2642
  %2646 = vset.pattern.permute.xlu0 0
  %2647 = vperm.xlu0 %2646, %v2341
  %v2648 = vpop.permute.xlu0 %2647
  %2651 = vset.pattern.permute.xlu0 0
  %2652 = vperm.xlu0 %2651, %v2342
  %v2653 = vpop.permute.xlu0 %2652
  %2656 = vset.pattern.permute.xlu0 0
  %2657 = vperm.xlu0 %2656, %v2343
  %v2658 = vpop.permute.xlu0 %2657
  %2661 = vset.pattern.permute.xlu0 0
  %2662 = vperm.xlu0 %2661, %v2344
  %v2663 = vpop.permute.xlu0 %2662
  %2666 = vset.pattern.permute.xlu0 0
  %2667 = vperm.xlu0 %2666, %v2345
  %v2668 = vpop.permute.xlu0 %2667
  %2671 = vset.pattern.permute.xlu0 0
  %2672 = vperm.xlu0 %2671, %v2346
  %v2673 = vpop.permute.xlu0 %2672
  %2676 = vset.pattern.permute.xlu0 0
  %2677 = vperm.xlu0 %2676, %v2347
  %v2678 = vpop.permute.xlu0 %2677
  %2681 = vset.pattern.permute.xlu0 0
  %2682 = vperm.xlu0 %2681, %v2348
  %v2683 = vpop.permute.xlu0 %2682
  %2686 = vset.pattern.permute.xlu0 0
  %2687 = vperm.xlu0 %2686, %v2349
  %v2688 = vpop.permute.xlu0 %2687
  %2691 = vset.pattern.permute.xlu0 0
  %2692 = vperm.xlu0 %2691, %v2350
  %v2693 = vpop.permute.xlu0 %2692
  %2696 = vset.pattern.permute.xlu0 0
  %2697 = vperm.xlu0 %2696, %v2351
  %v2698 = vpop.permute.xlu0 %2697
  %2701 = vset.pattern.permute.xlu0 0
  %2702 = vperm.xlu0 %2701, %v2352
  %v2703 = vpop.permute.xlu0 %2702
  %2706 = vset.pattern.permute.xlu0 0
  %2707 = vperm.xlu0 %2706, %v2353
  %v2708 = vpop.permute.xlu0 %2707
  %2711 = vset.pattern.permute.xlu0 0
  %2712 = vperm.xlu0 %2711, %v2354
  %v2713 = vpop.permute.xlu0 %2712
  %2716 = vset.pattern.permute.xlu0 0
  %2717 = vperm.xlu0 %2716, %v2355
  %v2718 = vpop.permute.xlu0 %2717
  %2721 = vset.pattern.permute.xlu0 0
  %2722 = vperm.xlu0 %2721, %v2356
  %v2723 = vpop.permute.xlu0 %2722
  %2726 = vset.pattern.permute.xlu0 0
  %2727 = vperm.xlu0 %2726, %v2357
  %v2728 = vpop.permute.xlu0 %2727
  %2731 = vset.pattern.permute.xlu0 0
  %2732 = vperm.xlu0 %2731, %v2358
  %v2733 = vpop.permute.xlu0 %2732
  %2736 = vset.pattern.permute.xlu0 0
  %2737 = vperm.xlu0 %2736, %v2359
  %v2738 = vpop.permute.xlu0 %2737
  %2741 = vset.pattern.permute.xlu0 0
  %2742 = vperm.xlu0 %2741, %v2360
  %v2743 = vpop.permute.xlu0 %2742
  %2746 = vset.pattern.permute.xlu0 0
  %2747 = vperm.xlu0 %2746, %v2361
  %v2748 = vpop.permute.xlu0 %2747
  %2751 = vset.pattern.permute.xlu0 0
  %2752 = vperm.xlu0 %2751, %v2362
  %v2753 = vpop.permute.xlu0 %2752
  %2756 = vset.pattern.permute.xlu0 0
  %2757 = vperm.xlu0 %2756, %v2363
  %v2758 = vpop.permute.xlu0 %2757
  %2761 = vset.pattern.permute.xlu0 0
  %2762 = vperm.xlu0 %2761, %v2364
  %v2763 = vpop.permute.xlu0 %2762
  %2766 = vset.pattern.permute.xlu0 0
  %2767 = vperm.xlu0 %2766, %v2365
  %v2768 = vpop.permute.xlu0 %2767
  %2771 = vset.pattern.permute.xlu0 0
  %2772 = vperm.xlu0 %2771, %v2366
  %v2773 = vpop.permute.xlu0 %2772
  %2776 = vset.pattern.permute.xlu0 0
  %2777 = vperm.xlu0 %2776, %v2367
  %v2778 = vpop.permute.xlu0 %2777
  %2781 = vset.pattern.permute.xlu0 0
  %2782 = vperm.xlu0 %2781, %v2368
  %v2783 = vpop.permute.xlu0 %2782
  %2786 = vset.pattern.permute.xlu0 0
  %2787 = vperm.xlu0 %2786, %v2369
  %v2788 = vpop.permute.xlu0 %2787
  %2791 = vset.pattern.permute.xlu0 0
  %2792 = vperm.xlu0 %2791, %v2370
  %v2793 = vpop.permute.xlu0 %2792
  %2796 = vset.pattern.permute.xlu0 0
  %2797 = vperm.xlu0 %2796, %v2371
  %v2798 = vpop.permute.xlu0 %2797
  %2801 = vset.pattern.permute.xlu0 0
  %2802 = vperm.xlu0 %2801, %v2372
  %v2803 = vpop.permute.xlu0 %2802
  %2806 = vset.pattern.permute.xlu0 0
  %2807 = vperm.xlu0 %2806, %v2373
  %v2808 = vpop.permute.xlu0 %2807
  %2811 = vset.pattern.permute.xlu0 0
  %2812 = vperm.xlu0 %2811, %v2374
  %v2813 = vpop.permute.xlu0 %2812
  %2816 = vset.pattern.permute.xlu0 0
  %2817 = vperm.xlu0 %2816, %v2375
  %v2818 = vpop.permute.xlu0 %2817
  %2821 = vset.pattern.permute.xlu0 0
  %2822 = vperm.xlu0 %2821, %v2376
  %v2823 = vpop.permute.xlu0 %2822
  %2826 = vset.pattern.permute.xlu0 0
  %2827 = vperm.xlu0 %2826, %v2377
  %v2828 = vpop.permute.xlu0 %2827
  %2831 = vset.pattern.permute.xlu0 0
  %2832 = vperm.xlu0 %2831, %v2378
  %v2833 = vpop.permute.xlu0 %2832
  %2836 = vset.pattern.permute.xlu0 0
  %2837 = vperm.xlu0 %2836, %v2379
  %v2838 = vpop.permute.xlu0 %2837
  %2841 = vset.pattern.permute.xlu0 0
  %2842 = vperm.xlu0 %2841, %v2380
  %v2843 = vpop.permute.xlu0 %2842
  %2846 = vset.pattern.permute.xlu0 0
  %2847 = vperm.xlu0 %2846, %v2381
  %v2848 = vpop.permute.xlu0 %2847
  %2851 = vset.pattern.permute.xlu0 0
  %2852 = vperm.xlu0 %2851, %v2382
  %v2853 = vpop.permute.xlu0 %2852
  %2856 = vset.pattern.permute.xlu0 0
  %2857 = vperm.xlu0 %2856, %v2383
  %v2858 = vpop.permute.xlu0 %2857
  %2861 = vset.pattern.permute.xlu0 0
  %2862 = vperm.xlu0 %2861, %v2384
  %v2863 = vpop.permute.xlu0 %2862
  %2866 = vset.pattern.permute.xlu0 0
  %2867 = vperm.xlu0 %2866, %v2385
  %v2868 = vpop.permute.xlu0 %2867
  %2871 = vset.pattern.permute.xlu0 0
  %2872 = vperm.xlu0 %2871, %v2386
  %v2873 = vpop.permute.xlu0 %2872
  %2876 = vset.pattern.permute.xlu0 0
  %2877 = vperm.xlu0 %2876, %v2387
  %v2878 = vpop.permute.xlu0 %2877
  %2881 = vset.pattern.permute.xlu0 0
  %2882 = vperm.xlu0 %2881, %v2388
  %v2883 = vpop.permute.xlu0 %2882
  %2886 = vset.pattern.permute.xlu0 0
  %2887 = vperm.xlu0 %2886, %v2389
  %v2888 = vpop.permute.xlu0 %2887
  %2891 = vset.pattern.permute.xlu0 0
  %2892 = vperm.xlu0 %2891, %v2390
  %v2893 = vpop.permute.xlu0 %2892
  %2896 = vset.pattern.permute.xlu0 0
  %2897 = vperm.xlu0 %2896, %v2391
  %v2898 = vpop.permute.xlu0 %2897
  %2901 = vset.pattern.permute.xlu0 0
  %2902 = vperm.xlu0 %2901, %v2392
  %v2903 = vpop.permute.xlu0 %2902
  %2906 = vset.pattern.permute.xlu0 0
  %2907 = vperm.xlu0 %2906, %v2393
  %v2908 = vpop.permute.xlu0 %2907
  %2911 = vset.pattern.permute.xlu0 0
  %2912 = vperm.xlu0 %2911, %v2394
  %v2913 = vpop.permute.xlu0 %2912
  %2916 = vset.pattern.permute.xlu0 0
  %2917 = vperm.xlu0 %2916, %v2395
  %v2918 = vpop.permute.xlu0 %2917
  %2921 = vset.pattern.permute.xlu0 0
  %2922 = vperm.xlu0 %2921, %v2396
  %v2923 = vpop.permute.xlu0 %2922
  %2926 = vset.pattern.permute.xlu0 0
  %2927 = vperm.xlu0 %2926, %v2397
  %v2928 = vpop.permute.xlu0 %2927
  %2931 = vset.pattern.permute.xlu0 0
  %2932 = vperm.xlu0 %2931, %v2398
  %v2933 = vpop.permute.xlu0 %2932
  %2936 = vset.pattern.permute.xlu0 0
  %2937 = vperm.xlu0 %2936, %v2399
  %v2938 = vpop.permute.xlu0 %2937
  %2941 = vset.pattern.permute.xlu0 0
  %2942 = vperm.xlu0 %2941, %v2400
  %v2943 = vpop.permute.xlu0 %2942
  %2946 = vset.pattern.permute.xlu0 0
  %2947 = vperm.xlu0 %2946, %v2401
  %v2948 = vpop.permute.xlu0 %2947
  %2951 = vset.pattern.permute.xlu0 0
  %2952 = vperm.xlu0 %2951, %v2402
  %v2953 = vpop.permute.xlu0 %2952
  %2956 = vset.pattern.permute.xlu0 0
  %2957 = vperm.xlu0 %2956, %v2403
  %v2958 = vpop.permute.xlu0 %2957
  %2961 = vset.pattern.permute.xlu0 0
  %2962 = vperm.xlu0 %2961, %v2404
  %v2963 = vpop.permute.xlu0 %2962
  %2966 = vset.pattern.permute.xlu0 0
  %2967 = vperm.xlu0 %2966, %v2405
  %v2968 = vpop.permute.xlu0 %2967
  %2971 = vset.pattern.permute.xlu0 0
  %2972 = vperm.xlu0 %2971, %v2406
  %v2973 = vpop.permute.xlu0 %2972
  %2976 = vset.pattern.permute.xlu0 0
  %2977 = vperm.xlu0 %2976, %v2407
  %v2978 = vpop.permute.xlu0 %2977
  %2981 = vset.pattern.permute.xlu0 0
  %2982 = vperm.xlu0 %2981, %v2408
  %v2983 = vpop.permute.xlu0 %2982
  %2986 = vset.pattern.permute.xlu0 0
  %2987 = vperm.xlu0 %2986, %v2409
  %v2988 = vpop.permute.xlu0 %2987
  %2991 = vset.pattern.permute.xlu0 0
  %2992 = vperm.xlu0 %2991, %v2410
  %v2993 = vpop.permute.xlu0 %2992
  %2996 = vset.pattern.permute.xlu0 0
  %2997 = vperm.xlu0 %2996, %v2411
  %v2998 = vpop.permute.xlu0 %2997
  %3001 = vset.pattern.permute.xlu0 0
  %3002 = vperm.xlu0 %3001, %v2412
  %v3003 = vpop.permute.xlu0 %3002
  %3006 = vset.pattern.permute.xlu0 0
  %3007 = vperm.xlu0 %3006, %v2413
  %v3008 = vpop.permute.xlu0 %3007
  %3011 = vset.pattern.permute.xlu0 0
  %3012 = vperm.xlu0 %3011, %v2414
  %v3013 = vpop.permute.xlu0 %3012
  %v3015 = vmul.f32 %v855, %v2418
  %v3016 = vmul.f32 %v856, %v2418
  %v3017 = vmul.f32 %v857, %v2423
  %v3018 = vmul.f32 %v858, %v2423
  %v3019 = vmul.f32 %v859, %v2428
  %v3020 = vmul.f32 %v860, %v2428
  %v3021 = vmul.f32 %v861, %v2433
  %v3022 = vmul.f32 %v862, %v2433
  %v3023 = vmul.f32 %v863, %v2438
  %v3024 = vmul.f32 %v864, %v2438
  %v3025 = vmul.f32 %v865, %v2443
  %v3026 = vmul.f32 %v866, %v2443
  %v3027 = vmul.f32 %v867, %v2448
  %v3028 = vmul.f32 %v868, %v2448
  %v3029 = vmul.f32 %v869, %v2453
  %v3030 = vmul.f32 %v870, %v2453
  %v3031 = vmul.f32 %v871, %v2458
  %v3032 = vmul.f32 %v872, %v2458
  %v3033 = vmul.f32 %v873, %v2463
  %v3034 = vmul.f32 %v874, %v2463
  %v3035 = vmul.f32 %v875, %v2468
  %v3036 = vmul.f32 %v876, %v2468
  %v3037 = vmul.f32 %v877, %v2473
  %v3038 = vmul.f32 %v878, %v2473
  %v3039 = vmul.f32 %v879, %v2478
  %v3040 = vmul.f32 %v880, %v2478
  %v3041 = vmul.f32 %v881, %v2483
  %v3042 = vmul.f32 %v882, %v2483
  %v3043 = vmul.f32 %v883, %v2488
  %v3044 = vmul.f32 %v884, %v2488
  %v3045 = vmul.f32 %v885, %v2493
  %v3046 = vmul.f32 %v886, %v2493
  %v3047 = vmul.f32 %v887, %v2498
  %v3048 = vmul.f32 %v888, %v2498
  %v3049 = vmul.f32 %v889, %v2503
  %v3050 = vmul.f32 %v890, %v2503
  %v3051 = vmul.f32 %v891, %v2508
  %v3052 = vmul.f32 %v892, %v2508
  %v3053 = vmul.f32 %v893, %v2513
  %v3054 = vmul.f32 %v894, %v2513
  %v3055 = vmul.f32 %v895, %v2518
  %v3056 = vmul.f32 %v896, %v2518
  %v3057 = vmul.f32 %v897, %v2523
  %v3058 = vmul.f32 %v898, %v2523
  %v3059 = vmul.f32 %v899, %v2528
  %v3060 = vmul.f32 %v900, %v2528
  %v3061 = vmul.f32 %v901, %v2533
  %v3062 = vmul.f32 %v902, %v2533
  %v3063 = vmul.f32 %v903, %v2538
  %v3064 = vmul.f32 %v904, %v2538
  %v3065 = vmul.f32 %v905, %v2543
  %v3066 = vmul.f32 %v906, %v2543
  %v3067 = vmul.f32 %v907, %v2548
  %v3068 = vmul.f32 %v908, %v2548
  %v3069 = vmul.f32 %v909, %v2553
  %v3070 = vmul.f32 %v910, %v2553
  %v3071 = vmul.f32 %v911, %v2558
  %v3072 = vmul.f32 %v912, %v2558
  %v3073 = vmul.f32 %v913, %v2563
  %v3074 = vmul.f32 %v914, %v2563
  %v3075 = vmul.f32 %v915, %v2568
  %v3076 = vmul.f32 %v916, %v2568
  %v3077 = vmul.f32 %v917, %v2573
  %v3078 = vmul.f32 %v918, %v2573
  %v3079 = vmul.f32 %v919, %v2578
  %v3080 = vmul.f32 %v920, %v2578
  %v3081 = vmul.f32 %v921, %v2583
  %v3082 = vmul.f32 %v922, %v2583
  %v3083 = vmul.f32 %v923, %v2588
  %v3084 = vmul.f32 %v924, %v2588
  %v3085 = vmul.f32 %v925, %v2593
  %v3086 = vmul.f32 %v926, %v2593
  %v3087 = vmul.f32 %v927, %v2598
  %v3088 = vmul.f32 %v928, %v2598
  %v3089 = vmul.f32 %v929, %v2603
  %v3090 = vmul.f32 %v930, %v2603
  %v3091 = vmul.f32 %v931, %v2608
  %v3092 = vmul.f32 %v932, %v2608
  %v3093 = vmul.f32 %v933, %v2613
  %v3094 = vmul.f32 %v934, %v2613
  %v3095 = vmul.f32 %v935, %v2618
  %v3096 = vmul.f32 %v936, %v2618
  %v3097 = vmul.f32 %v937, %v2623
  %v3098 = vmul.f32 %v938, %v2623
  %v3099 = vmul.f32 %v939, %v2628
  %v3100 = vmul.f32 %v940, %v2628
  %v3101 = vmul.f32 %v941, %v2633
  %v3102 = vmul.f32 %v942, %v2633
  %v3103 = vmul.f32 %v943, %v2638
  %v3104 = vmul.f32 %v944, %v2638
  %v3105 = vmul.f32 %v945, %v2643
  %v3106 = vmul.f32 %v946, %v2643
  %v3107 = vmul.f32 %v947, %v2648
  %v3108 = vmul.f32 %v948, %v2648
  %v3109 = vmul.f32 %v949, %v2653
  %v3110 = vmul.f32 %v950, %v2653
  %v3111 = vmul.f32 %v951, %v2658
  %v3112 = vmul.f32 %v952, %v2658
  %v3113 = vmul.f32 %v953, %v2663
  %v3114 = vmul.f32 %v954, %v2663
  %v3115 = vmul.f32 %v955, %v2668
  %v3116 = vmul.f32 %v956, %v2668
  %v3117 = vmul.f32 %v957, %v2673
  %v3118 = vmul.f32 %v958, %v2673
  %v3119 = vmul.f32 %v959, %v2678
  %v3120 = vmul.f32 %v960, %v2678
  %v3121 = vmul.f32 %v961, %v2683
  %v3122 = vmul.f32 %v962, %v2683
  %v3123 = vmul.f32 %v963, %v2688
  %v3124 = vmul.f32 %v964, %v2688
  %v3125 = vmul.f32 %v965, %v2693
  %v3126 = vmul.f32 %v966, %v2693
  %v3127 = vmul.f32 %v967, %v2698
  %v3128 = vmul.f32 %v968, %v2698
  %v3129 = vmul.f32 %v969, %v2703
  %v3130 = vmul.f32 %v970, %v2703
  %v3131 = vmul.f32 %v971, %v2708
  %v3132 = vmul.f32 %v972, %v2708
  %v3133 = vmul.f32 %v973, %v2713
  %v3134 = vmul.f32 %v974, %v2713
  %v3135 = vmul.f32 %v975, %v2718
  %v3136 = vmul.f32 %v976, %v2718
  %v3137 = vmul.f32 %v977, %v2723
  %v3138 = vmul.f32 %v978, %v2723
  %v3139 = vmul.f32 %v979, %v2728
  %v3140 = vmul.f32 %v980, %v2728
  %v3141 = vmul.f32 %v981, %v2733
  %v3142 = vmul.f32 %v982, %v2733
  %v3143 = vmul.f32 %v983, %v2738
  %v3144 = vmul.f32 %v984, %v2738
  %v3145 = vmul.f32 %v985, %v2743
  %v3146 = vmul.f32 %v986, %v2743
  %v3147 = vmul.f32 %v987, %v2748
  %v3148 = vmul.f32 %v988, %v2748
  %v3149 = vmul.f32 %v989, %v2753
  %v3150 = vmul.f32 %v990, %v2753
  %v3151 = vmul.f32 %v991, %v2758
  %v3152 = vmul.f32 %v992, %v2758
  %v3153 = vmul.f32 %v993, %v2763
  %v3154 = vmul.f32 %v994, %v2763
  %v3155 = vmul.f32 %v995, %v2768
  %v3156 = vmul.f32 %v996, %v2768
  %v3157 = vmul.f32 %v997, %v2773
  %v3158 = vmul.f32 %v998, %v2773
  %v3159 = vmul.f32 %v999, %v2778
  %v3160 = vmul.f32 %v1000, %v2778
  %v3161 = vmul.f32 %v1001, %v2783
  %v3162 = vmul.f32 %v1002, %v2783
  %v3163 = vmul.f32 %v1003, %v2788
  %v3164 = vmul.f32 %v1004, %v2788
  %v3165 = vmul.f32 %v1005, %v2793
  %v3166 = vmul.f32 %v1006, %v2793
  %v3167 = vmul.f32 %v1007, %v2798
  %v3168 = vmul.f32 %v1008, %v2798
  %v3169 = vmul.f32 %v1009, %v2803
  %v3170 = vmul.f32 %v1010, %v2803
  %v3171 = vmul.f32 %v1011, %v2808
  %v3172 = vmul.f32 %v1012, %v2808
  %v3173 = vmul.f32 %v1013, %v2813
  %v3174 = vmul.f32 %v1014, %v2813
  %v3175 = vmul.f32 %v1015, %v2818
  %v3176 = vmul.f32 %v1016, %v2818
  %v3177 = vmul.f32 %v1017, %v2823
  %v3178 = vmul.f32 %v1018, %v2823
  %v3179 = vmul.f32 %v1019, %v2828
  %v3180 = vmul.f32 %v1020, %v2828
  %v3181 = vmul.f32 %v1021, %v2833
  %v3182 = vmul.f32 %v1022, %v2833
  %v3183 = vmul.f32 %v1023, %v2838
  %v3184 = vmul.f32 %v1024, %v2838
  %v3185 = vmul.f32 %v1025, %v2843
  %v3186 = vmul.f32 %v1026, %v2843
  %v3187 = vmul.f32 %v1027, %v2848
  %v3188 = vmul.f32 %v1028, %v2848
  %v3189 = vmul.f32 %v1029, %v2853
  %v3190 = vmul.f32 %v1030, %v2853
  %v3191 = vmul.f32 %v1031, %v2858
  %v3192 = vmul.f32 %v1032, %v2858
  %v3193 = vmul.f32 %v1033, %v2863
  %v3194 = vmul.f32 %v1034, %v2863
  %v3195 = vmul.f32 %v1035, %v2868
  %v3196 = vmul.f32 %v1036, %v2868
  %v3197 = vmul.f32 %v1037, %v2873
  %v3198 = vmul.f32 %v1038, %v2873
  %v3199 = vmul.f32 %v1039, %v2878
  %v3200 = vmul.f32 %v1040, %v2878
  %v3201 = vmul.f32 %v1041, %v2883
  %v3202 = vmul.f32 %v1042, %v2883
  %v3203 = vmul.f32 %v1043, %v2888
  %v3204 = vmul.f32 %v1044, %v2888
  %v3205 = vmul.f32 %v1045, %v2893
  %v3206 = vmul.f32 %v1046, %v2893
  %v3207 = vmul.f32 %v1047, %v2898
  %v3208 = vmul.f32 %v1048, %v2898
  %v3209 = vmul.f32 %v1049, %v2903
  %v3210 = vmul.f32 %v1050, %v2903
  %v3211 = vmul.f32 %v1051, %v2908
  %v3212 = vmul.f32 %v1052, %v2908
  %v3213 = vmul.f32 %v1053, %v2913
  %v3214 = vmul.f32 %v1054, %v2913
  %v3215 = vmul.f32 %v1055, %v2918
  %v3216 = vmul.f32 %v1056, %v2918
  %v3217 = vmul.f32 %v1057, %v2923
  %v3218 = vmul.f32 %v1058, %v2923
  %v3219 = vmul.f32 %v1059, %v2928
  %v3220 = vmul.f32 %v1060, %v2928
  %v3221 = vmul.f32 %v1061, %v2933
  %v3222 = vmul.f32 %v1062, %v2933
  %v3223 = vmul.f32 %v1063, %v2938
  %v3224 = vmul.f32 %v1064, %v2938
  %v3225 = vmul.f32 %v1065, %v2943
  %v3226 = vmul.f32 %v1066, %v2943
  %v3227 = vmul.f32 %v1067, %v2948
  %v3228 = vmul.f32 %v1068, %v2948
  %v3229 = vmul.f32 %v1069, %v2953
  %v3230 = vmul.f32 %v1070, %v2953
  %v3231 = vmul.f32 %v1071, %v2958
  %v3232 = vmul.f32 %v1072, %v2958
  %v3233 = vmul.f32 %v1073, %v2963
  %v3234 = vmul.f32 %v1074, %v2963
  %v3235 = vmul.f32 %v1075, %v2968
  %v3236 = vmul.f32 %v1076, %v2968
  %v3237 = vmul.f32 %v1077, %v2973
  %v3238 = vmul.f32 %v1078, %v2973
  %v3239 = vmul.f32 %v1079, %v2978
  %v3240 = vmul.f32 %v1080, %v2978
  %v3241 = vmul.f32 %v1081, %v2983
  %v3242 = vmul.f32 %v1082, %v2983
  %v3243 = vmul.f32 %v1083, %v2988
  %v3244 = vmul.f32 %v1084, %v2988
  %v3245 = vmul.f32 %v1085, %v2993
  %v3246 = vmul.f32 %v1086, %v2993
  %v3247 = vmul.f32 %v1087, %v2998
  %v3248 = vmul.f32 %v1088, %v2998
  %v3249 = vmul.f32 %v1089, %v3003
  %v3250 = vmul.f32 %v1090, %v3003
  %v3251 = vmul.f32 %v1091, %v3008
  %v3252 = vmul.f32 %v1092, %v3008
  %v3253 = vmul.f32 %v1093, %v3013
  %v3254 = vmul.f32 %v1094, %v3013
  %v3255 = vld [vmem:[%s2] sm:$0xff]
  %v3256 = vld [vmem:[%s2 + $0x8] sm:$0xff]
  %v3257 = vld [vmem:[%s2 + $0x10] sm:$0xff]
  %v3258 = vld [vmem:[%s2 + $0x18] sm:$0xff]
  %v3259 = vld [vmem:[%s2 + $0x20] sm:$0xff]
  %v3260 = vld [vmem:[%s2 + $0x28] sm:$0xff]
  %v3261 = vld [vmem:[%s2 + $0x30] sm:$0xff]
  %v3262 = vld [vmem:[%s2 + $0x38] sm:$0xff]
  %v3263 = vld [vmem:[%s2 + $0x40] sm:$0xff]
  %v3264 = vld [vmem:[%s2 + $0x48] sm:$0xff]
  %v3265 = vld [vmem:[%s2 + $0x50] sm:$0xff]
  %v3266 = vld [vmem:[%s2 + $0x58] sm:$0xff]
  %v3267 = vld [vmem:[%s2 + $0x60] sm:$0xff]
  %v3268 = vld [vmem:[%s2 + $0x68] sm:$0xff]
  %v3269 = vld [vmem:[%s2 + $0x70] sm:$0xff]
  %v3270 = vld [vmem:[%s2 + $0x78] sm:$0xff]
  %v3271 = vld [vmem:[%s2 + $0x80] sm:$0xff]
  %v3272 = vld [vmem:[%s2 + $0x88] sm:$0xff]
  %v3273 = vld [vmem:[%s2 + $0x90] sm:$0xff]
  %v3274 = vld [vmem:[%s2 + $0x98] sm:$0xff]
  %v3275 = vld [vmem:[%s2 + $0xa0] sm:$0xff]
  %v3276 = vld [vmem:[%s2 + $0xa8] sm:$0xff]
  %v3277 = vld [vmem:[%s2 + $0xb0] sm:$0xff]
  %v3278 = vld [vmem:[%s2 + $0xb8] sm:$0xff]
  %v3279 = vld [vmem:[%s2 + $0xc0] sm:$0xff]
  %v3280 = vld [vmem:[%s2 + $0xc8] sm:$0xff]
  %v3281 = vld [vmem:[%s2 + $0xd0] sm:$0xff]
  %v3282 = vld [vmem:[%s2 + $0xd8] sm:$0xff]
  %v3283 = vld [vmem:[%s2 + $0xe0] sm:$0xff]
  %v3284 = vld [vmem:[%s2 + $0xe8] sm:$0xff]
  %v3285 = vld [vmem:[%s2 + $0xf0] sm:$0xff]
  %v3286 = vld [vmem:[%s2 + $0xf8] sm:$0xff]
  %v3287 = vld [vmem:[%s2 + $0x100] sm:$0xff]
  %v3288 = vld [vmem:[%s2 + $0x108] sm:$0xff]
  %v3289 = vld [vmem:[%s2 + $0x110] sm:$0xff]
  %v3290 = vld [vmem:[%s2 + $0x118] sm:$0xff]
  %v3291 = vld [vmem:[%s2 + $0x120] sm:$0xff]
  %v3292 = vld [vmem:[%s2 + $0x128] sm:$0xff]
  %v3293 = vld [vmem:[%s2 + $0x130] sm:$0xff]
  %v3294 = vld [vmem:[%s2 + $0x138] sm:$0xff]
  %v3295 = vld [vmem:[%s2 + $0x140] sm:$0xff]
  %v3296 = vld [vmem:[%s2 + $0x148] sm:$0xff]
  %v3297 = vld [vmem:[%s2 + $0x150] sm:$0xff]
  %v3298 = vld [vmem:[%s2 + $0x158] sm:$0xff]
  %v3299 = vld [vmem:[%s2 + $0x160] sm:$0xff]
  %v3300 = vld [vmem:[%s2 + $0x168] sm:$0xff]
  %v3301 = vld [vmem:[%s2 + $0x170] sm:$0xff]
  %v3302 = vld [vmem:[%s2 + $0x178] sm:$0xff]
  %v3303 = vld [vmem:[%s2 + $0x180] sm:$0xff]
  %v3304 = vld [vmem:[%s2 + $0x188] sm:$0xff]
  %v3305 = vld [vmem:[%s2 + $0x190] sm:$0xff]
  %v3306 = vld [vmem:[%s2 + $0x198] sm:$0xff]
  %v3307 = vld [vmem:[%s2 + $0x1a0] sm:$0xff]
  %v3308 = vld [vmem:[%s2 + $0x1a8] sm:$0xff]
  %v3309 = vld [vmem:[%s2 + $0x1b0] sm:$0xff]
  %v3310 = vld [vmem:[%s2 + $0x1b8] sm:$0xff]
  %v3311 = vld [vmem:[%s2 + $0x1c0] sm:$0xff]
  %v3312 = vld [vmem:[%s2 + $0x1c8] sm:$0xff]
  %v3313 = vld [vmem:[%s2 + $0x1d0] sm:$0xff]
  %v3314 = vld [vmem:[%s2 + $0x1d8] sm:$0xff]
  %v3315 = vld [vmem:[%s2 + $0x1e0] sm:$0xff]
  %v3316 = vld [vmem:[%s2 + $0x1e8] sm:$0xff]
  %v3317 = vld [vmem:[%s2 + $0x1f0] sm:$0xff]
  %v3318 = vld [vmem:[%s2 + $0x1f8] sm:$0xff]
  %v3319 = vld [vmem:[%s2 + $0x200] sm:$0xff]
  %v3320 = vld [vmem:[%s2 + $0x208] sm:$0xff]
  %v3321 = vld [vmem:[%s2 + $0x210] sm:$0xff]
  %v3322 = vld [vmem:[%s2 + $0x218] sm:$0xff]
  %v3323 = vld [vmem:[%s2 + $0x220] sm:$0xff]
  %v3324 = vld [vmem:[%s2 + $0x228] sm:$0xff]
  %v3325 = vld [vmem:[%s2 + $0x230] sm:$0xff]
  %v3326 = vld [vmem:[%s2 + $0x238] sm:$0xff]
  %v3327 = vld [vmem:[%s2 + $0x240] sm:$0xff]
  %v3328 = vld [vmem:[%s2 + $0x248] sm:$0xff]
  %v3329 = vld [vmem:[%s2 + $0x250] sm:$0xff]
  %v3330 = vld [vmem:[%s2 + $0x258] sm:$0xff]
  %v3331 = vld [vmem:[%s2 + $0x260] sm:$0xff]
  %v3332 = vld [vmem:[%s2 + $0x268] sm:$0xff]
  %v3333 = vld [vmem:[%s2 + $0x270] sm:$0xff]
  %v3334 = vld [vmem:[%s2 + $0x278] sm:$0xff]
  %v3335 = vld [vmem:[%s2 + $0x280] sm:$0xff]
  %v3336 = vld [vmem:[%s2 + $0x288] sm:$0xff]
  %v3337 = vld [vmem:[%s2 + $0x290] sm:$0xff]
  %v3338 = vld [vmem:[%s2 + $0x298] sm:$0xff]
  %v3339 = vld [vmem:[%s2 + $0x2a0] sm:$0xff]
  %v3340 = vld [vmem:[%s2 + $0x2a8] sm:$0xff]
  %v3341 = vld [vmem:[%s2 + $0x2b0] sm:$0xff]
  %v3342 = vld [vmem:[%s2 + $0x2b8] sm:$0xff]
  %v3343 = vld [vmem:[%s2 + $0x2c0] sm:$0xff]
  %v3344 = vld [vmem:[%s2 + $0x2c8] sm:$0xff]
  %v3345 = vld [vmem:[%s2 + $0x2d0] sm:$0xff]
  %v3346 = vld [vmem:[%s2 + $0x2d8] sm:$0xff]
  %v3347 = vld [vmem:[%s2 + $0x2e0] sm:$0xff]
  %v3348 = vld [vmem:[%s2 + $0x2e8] sm:$0xff]
  %v3349 = vld [vmem:[%s2 + $0x2f0] sm:$0xff]
  %v3350 = vld [vmem:[%s2 + $0x2f8] sm:$0xff]
  %v3351 = vld [vmem:[%s2 + $0x300] sm:$0xff]
  %v3352 = vld [vmem:[%s2 + $0x308] sm:$0xff]
  %v3353 = vld [vmem:[%s2 + $0x310] sm:$0xff]
  %v3354 = vld [vmem:[%s2 + $0x318] sm:$0xff]
  %v3355 = vld [vmem:[%s2 + $0x320] sm:$0xff]
  %v3356 = vld [vmem:[%s2 + $0x328] sm:$0xff]
  %v3357 = vld [vmem:[%s2 + $0x330] sm:$0xff]
  %v3358 = vld [vmem:[%s2 + $0x338] sm:$0xff]
  %v3359 = vld [vmem:[%s2 + $0x340] sm:$0xff]
  %v3360 = vld [vmem:[%s2 + $0x348] sm:$0xff]
  %v3361 = vld [vmem:[%s2 + $0x350] sm:$0xff]
  %v3362 = vld [vmem:[%s2 + $0x358] sm:$0xff]
  %v3363 = vld [vmem:[%s2 + $0x360] sm:$0xff]
  %v3364 = vld [vmem:[%s2 + $0x368] sm:$0xff]
  %v3365 = vld [vmem:[%s2 + $0x370] sm:$0xff]
  %v3366 = vld [vmem:[%s2 + $0x378] sm:$0xff]
  %v3367 = vld [vmem:[%s2 + $0x380] sm:$0xff]
  %v3368 = vld [vmem:[%s2 + $0x388] sm:$0xff]
  %v3369 = vld [vmem:[%s2 + $0x390] sm:$0xff]
  %v3370 = vld [vmem:[%s2 + $0x398] sm:$0xff]
  %v3371 = vld [vmem:[%s2 + $0x3a0] sm:$0xff]
  %v3372 = vld [vmem:[%s2 + $0x3a8] sm:$0xff]
  %v3373 = vld [vmem:[%s2 + $0x3b0] sm:$0xff]
  %v3374 = vld [vmem:[%s2 + $0x3b8] sm:$0xff]
  %3376 = vset.pattern.permute.xlu0 0
  %3377 = vperm.xlu0 %3376, %v3255
  %v3378 = vpop.permute.xlu0 %3377
  %3381 = vset.pattern.permute.xlu0 0
  %3382 = vperm.xlu0 %3381, %v3256
  %v3383 = vpop.permute.xlu0 %3382
  %3386 = vset.pattern.permute.xlu0 0
  %3387 = vperm.xlu0 %3386, %v3257
  %v3388 = vpop.permute.xlu0 %3387
  %3391 = vset.pattern.permute.xlu0 0
  %3392 = vperm.xlu0 %3391, %v3258
  %v3393 = vpop.permute.xlu0 %3392
  %3396 = vset.pattern.permute.xlu0 0
  %3397 = vperm.xlu0 %3396, %v3259
  %v3398 = vpop.permute.xlu0 %3397
  %3401 = vset.pattern.permute.xlu0 0
  %3402 = vperm.xlu0 %3401, %v3260
  %v3403 = vpop.permute.xlu0 %3402
  %3406 = vset.pattern.permute.xlu0 0
  %3407 = vperm.xlu0 %3406, %v3261
  %v3408 = vpop.permute.xlu0 %3407
  %3411 = vset.pattern.permute.xlu0 0
  %3412 = vperm.xlu0 %3411, %v3262
  %v3413 = vpop.permute.xlu0 %3412
  %3416 = vset.pattern.permute.xlu0 0
  %3417 = vperm.xlu0 %3416, %v3263
  %v3418 = vpop.permute.xlu0 %3417
  %3421 = vset.pattern.permute.xlu0 0
  %3422 = vperm.xlu0 %3421, %v3264
  %v3423 = vpop.permute.xlu0 %3422
  %3426 = vset.pattern.permute.xlu0 0
  %3427 = vperm.xlu0 %3426, %v3265
  %v3428 = vpop.permute.xlu0 %3427
  %3431 = vset.pattern.permute.xlu0 0
  %3432 = vperm.xlu0 %3431, %v3266
  %v3433 = vpop.permute.xlu0 %3432
  %3436 = vset.pattern.permute.xlu0 0
  %3437 = vperm.xlu0 %3436, %v3267
  %v3438 = vpop.permute.xlu0 %3437
  %3441 = vset.pattern.permute.xlu0 0
  %3442 = vperm.xlu0 %3441, %v3268
  %v3443 = vpop.permute.xlu0 %3442
  %3446 = vset.pattern.permute.xlu0 0
  %3447 = vperm.xlu0 %3446, %v3269
  %v3448 = vpop.permute.xlu0 %3447
  %3451 = vset.pattern.permute.xlu0 0
  %3452 = vperm.xlu0 %3451, %v3270
  %v3453 = vpop.permute.xlu0 %3452
  %3456 = vset.pattern.permute.xlu0 0
  %3457 = vperm.xlu0 %3456, %v3271
  %v3458 = vpop.permute.xlu0 %3457
  %3461 = vset.pattern.permute.xlu0 0
  %3462 = vperm.xlu0 %3461, %v3272
  %v3463 = vpop.permute.xlu0 %3462
  %3466 = vset.pattern.permute.xlu0 0
  %3467 = vperm.xlu0 %3466, %v3273
  %v3468 = vpop.permute.xlu0 %3467
  %3471 = vset.pattern.permute.xlu0 0
  %3472 = vperm.xlu0 %3471, %v3274
  %v3473 = vpop.permute.xlu0 %3472
  %3476 = vset.pattern.permute.xlu0 0
  %3477 = vperm.xlu0 %3476, %v3275
  %v3478 = vpop.permute.xlu0 %3477
  %3481 = vset.pattern.permute.xlu0 0
  %3482 = vperm.xlu0 %3481, %v3276
  %v3483 = vpop.permute.xlu0 %3482
  %3486 = vset.pattern.permute.xlu0 0
  %3487 = vperm.xlu0 %3486, %v3277
  %v3488 = vpop.permute.xlu0 %3487
  %3491 = vset.pattern.permute.xlu0 0
  %3492 = vperm.xlu0 %3491, %v3278
  %v3493 = vpop.permute.xlu0 %3492
  %3496 = vset.pattern.permute.xlu0 0
  %3497 = vperm.xlu0 %3496, %v3279
  %v3498 = vpop.permute.xlu0 %3497
  %3501 = vset.pattern.permute.xlu0 0
  %3502 = vperm.xlu0 %3501, %v3280
  %v3503 = vpop.permute.xlu0 %3502
  %3506 = vset.pattern.permute.xlu0 0
  %3507 = vperm.xlu0 %3506, %v3281
  %v3508 = vpop.permute.xlu0 %3507
  %3511 = vset.pattern.permute.xlu0 0
  %3512 = vperm.xlu0 %3511, %v3282
  %v3513 = vpop.permute.xlu0 %3512
  %3516 = vset.pattern.permute.xlu0 0
  %3517 = vperm.xlu0 %3516, %v3283
  %v3518 = vpop.permute.xlu0 %3517
  %3521 = vset.pattern.permute.xlu0 0
  %3522 = vperm.xlu0 %3521, %v3284
  %v3523 = vpop.permute.xlu0 %3522
  %3526 = vset.pattern.permute.xlu0 0
  %3527 = vperm.xlu0 %3526, %v3285
  %v3528 = vpop.permute.xlu0 %3527
  %3531 = vset.pattern.permute.xlu0 0
  %3532 = vperm.xlu0 %3531, %v3286
  %v3533 = vpop.permute.xlu0 %3532
  %3536 = vset.pattern.permute.xlu0 0
  %3537 = vperm.xlu0 %3536, %v3287
  %v3538 = vpop.permute.xlu0 %3537
  %3541 = vset.pattern.permute.xlu0 0
  %3542 = vperm.xlu0 %3541, %v3288
  %v3543 = vpop.permute.xlu0 %3542
  %3546 = vset.pattern.permute.xlu0 0
  %3547 = vperm.xlu0 %3546, %v3289
  %v3548 = vpop.permute.xlu0 %3547
  %3551 = vset.pattern.permute.xlu0 0
  %3552 = vperm.xlu0 %3551, %v3290
  %v3553 = vpop.permute.xlu0 %3552
  %3556 = vset.pattern.permute.xlu0 0
  %3557 = vperm.xlu0 %3556, %v3291
  %v3558 = vpop.permute.xlu0 %3557
  %3561 = vset.pattern.permute.xlu0 0
  %3562 = vperm.xlu0 %3561, %v3292
  %v3563 = vpop.permute.xlu0 %3562
  %3566 = vset.pattern.permute.xlu0 0
  %3567 = vperm.xlu0 %3566, %v3293
  %v3568 = vpop.permute.xlu0 %3567
  %3571 = vset.pattern.permute.xlu0 0
  %3572 = vperm.xlu0 %3571, %v3294
  %v3573 = vpop.permute.xlu0 %3572
  %3576 = vset.pattern.permute.xlu0 0
  %3577 = vperm.xlu0 %3576, %v3295
  %v3578 = vpop.permute.xlu0 %3577
  %3581 = vset.pattern.permute.xlu0 0
  %3582 = vperm.xlu0 %3581, %v3296
  %v3583 = vpop.permute.xlu0 %3582
  %3586 = vset.pattern.permute.xlu0 0
  %3587 = vperm.xlu0 %3586, %v3297
  %v3588 = vpop.permute.xlu0 %3587
  %3591 = vset.pattern.permute.xlu0 0
  %3592 = vperm.xlu0 %3591, %v3298
  %v3593 = vpop.permute.xlu0 %3592
  %3596 = vset.pattern.permute.xlu0 0
  %3597 = vperm.xlu0 %3596, %v3299
  %v3598 = vpop.permute.xlu0 %3597
  %3601 = vset.pattern.permute.xlu0 0
  %3602 = vperm.xlu0 %3601, %v3300
  %v3603 = vpop.permute.xlu0 %3602
  %3606 = vset.pattern.permute.xlu0 0
  %3607 = vperm.xlu0 %3606, %v3301
  %v3608 = vpop.permute.xlu0 %3607
  %3611 = vset.pattern.permute.xlu0 0
  %3612 = vperm.xlu0 %3611, %v3302
  %v3613 = vpop.permute.xlu0 %3612
  %3616 = vset.pattern.permute.xlu0 0
  %3617 = vperm.xlu0 %3616, %v3303
  %v3618 = vpop.permute.xlu0 %3617
  %3621 = vset.pattern.permute.xlu0 0
  %3622 = vperm.xlu0 %3621, %v3304
  %v3623 = vpop.permute.xlu0 %3622
  %3626 = vset.pattern.permute.xlu0 0
  %3627 = vperm.xlu0 %3626, %v3305
  %v3628 = vpop.permute.xlu0 %3627
  %3631 = vset.pattern.permute.xlu0 0
  %3632 = vperm.xlu0 %3631, %v3306
  %v3633 = vpop.permute.xlu0 %3632
  %3636 = vset.pattern.permute.xlu0 0
  %3637 = vperm.xlu0 %3636, %v3307
  %v3638 = vpop.permute.xlu0 %3637
  %3641 = vset.pattern.permute.xlu0 0
  %3642 = vperm.xlu0 %3641, %v3308
  %v3643 = vpop.permute.xlu0 %3642
  %3646 = vset.pattern.permute.xlu0 0
  %3647 = vperm.xlu0 %3646, %v3309
  %v3648 = vpop.permute.xlu0 %3647
  %3651 = vset.pattern.permute.xlu0 0
  %3652 = vperm.xlu0 %3651, %v3310
  %v3653 = vpop.permute.xlu0 %3652
  %3656 = vset.pattern.permute.xlu0 0
  %3657 = vperm.xlu0 %3656, %v3311
  %v3658 = vpop.permute.xlu0 %3657
  %3661 = vset.pattern.permute.xlu0 0
  %3662 = vperm.xlu0 %3661, %v3312
  %v3663 = vpop.permute.xlu0 %3662
  %3666 = vset.pattern.permute.xlu0 0
  %3667 = vperm.xlu0 %3666, %v3313
  %v3668 = vpop.permute.xlu0 %3667
  %3671 = vset.pattern.permute.xlu0 0
  %3672 = vperm.xlu0 %3671, %v3314
  %v3673 = vpop.permute.xlu0 %3672
  %3676 = vset.pattern.permute.xlu0 0
  %3677 = vperm.xlu0 %3676, %v3315
  %v3678 = vpop.permute.xlu0 %3677
  %3681 = vset.pattern.permute.xlu0 0
  %3682 = vperm.xlu0 %3681, %v3316
  %v3683 = vpop.permute.xlu0 %3682
  %3686 = vset.pattern.permute.xlu0 0
  %3687 = vperm.xlu0 %3686, %v3317
  %v3688 = vpop.permute.xlu0 %3687
  %3691 = vset.pattern.permute.xlu0 0
  %3692 = vperm.xlu0 %3691, %v3318
  %v3693 = vpop.permute.xlu0 %3692
  %3696 = vset.pattern.permute.xlu0 0
  %3697 = vperm.xlu0 %3696, %v3319
  %v3698 = vpop.permute.xlu0 %3697
  %3701 = vset.pattern.permute.xlu0 0
  %3702 = vperm.xlu0 %3701, %v3320
  %v3703 = vpop.permute.xlu0 %3702
  %3706 = vset.pattern.permute.xlu0 0
  %3707 = vperm.xlu0 %3706, %v3321
  %v3708 = vpop.permute.xlu0 %3707
  %3711 = vset.pattern.permute.xlu0 0
  %3712 = vperm.xlu0 %3711, %v3322
  %v3713 = vpop.permute.xlu0 %3712
  %3716 = vset.pattern.permute.xlu0 0
  %3717 = vperm.xlu0 %3716, %v3323
  %v3718 = vpop.permute.xlu0 %3717
  %3721 = vset.pattern.permute.xlu0 0
  %3722 = vperm.xlu0 %3721, %v3324
  %v3723 = vpop.permute.xlu0 %3722
  %3726 = vset.pattern.permute.xlu0 0
  %3727 = vperm.xlu0 %3726, %v3325
  %v3728 = vpop.permute.xlu0 %3727
  %3731 = vset.pattern.permute.xlu0 0
  %3732 = vperm.xlu0 %3731, %v3326
  %v3733 = vpop.permute.xlu0 %3732
  %3736 = vset.pattern.permute.xlu0 0
  %3737 = vperm.xlu0 %3736, %v3327
  %v3738 = vpop.permute.xlu0 %3737
  %3741 = vset.pattern.permute.xlu0 0
  %3742 = vperm.xlu0 %3741, %v3328
  %v3743 = vpop.permute.xlu0 %3742
  %3746 = vset.pattern.permute.xlu0 0
  %3747 = vperm.xlu0 %3746, %v3329
  %v3748 = vpop.permute.xlu0 %3747
  %3751 = vset.pattern.permute.xlu0 0
  %3752 = vperm.xlu0 %3751, %v3330
  %v3753 = vpop.permute.xlu0 %3752
  %3756 = vset.pattern.permute.xlu0 0
  %3757 = vperm.xlu0 %3756, %v3331
  %v3758 = vpop.permute.xlu0 %3757
  %3761 = vset.pattern.permute.xlu0 0
  %3762 = vperm.xlu0 %3761, %v3332
  %v3763 = vpop.permute.xlu0 %3762
  %3766 = vset.pattern.permute.xlu0 0
  %3767 = vperm.xlu0 %3766, %v3333
  %v3768 = vpop.permute.xlu0 %3767
  %3771 = vset.pattern.permute.xlu0 0
  %3772 = vperm.xlu0 %3771, %v3334
  %v3773 = vpop.permute.xlu0 %3772
  %3776 = vset.pattern.permute.xlu0 0
  %3777 = vperm.xlu0 %3776, %v3335
  %v3778 = vpop.permute.xlu0 %3777
  %3781 = vset.pattern.permute.xlu0 0
  %3782 = vperm.xlu0 %3781, %v3336
  %v3783 = vpop.permute.xlu0 %3782
  %3786 = vset.pattern.permute.xlu0 0
  %3787 = vperm.xlu0 %3786, %v3337
  %v3788 = vpop.permute.xlu0 %3787
  %3791 = vset.pattern.permute.xlu0 0
  %3792 = vperm.xlu0 %3791, %v3338
  %v3793 = vpop.permute.xlu0 %3792
  %3796 = vset.pattern.permute.xlu0 0
  %3797 = vperm.xlu0 %3796, %v3339
  %v3798 = vpop.permute.xlu0 %3797
  %3801 = vset.pattern.permute.xlu0 0
  %3802 = vperm.xlu0 %3801, %v3340
  %v3803 = vpop.permute.xlu0 %3802
  %3806 = vset.pattern.permute.xlu0 0
  %3807 = vperm.xlu0 %3806, %v3341
  %v3808 = vpop.permute.xlu0 %3807
  %3811 = vset.pattern.permute.xlu0 0
  %3812 = vperm.xlu0 %3811, %v3342
  %v3813 = vpop.permute.xlu0 %3812
  %3816 = vset.pattern.permute.xlu0 0
  %3817 = vperm.xlu0 %3816, %v3343
  %v3818 = vpop.permute.xlu0 %3817
  %3821 = vset.pattern.permute.xlu0 0
  %3822 = vperm.xlu0 %3821, %v3344
  %v3823 = vpop.permute.xlu0 %3822
  %3826 = vset.pattern.permute.xlu0 0
  %3827 = vperm.xlu0 %3826, %v3345
  %v3828 = vpop.permute.xlu0 %3827
  %3831 = vset.pattern.permute.xlu0 0
  %3832 = vperm.xlu0 %3831, %v3346
  %v3833 = vpop.permute.xlu0 %3832
  %3836 = vset.pattern.permute.xlu0 0
  %3837 = vperm.xlu0 %3836, %v3347
  %v3838 = vpop.permute.xlu0 %3837
  %3841 = vset.pattern.permute.xlu0 0
  %3842 = vperm.xlu0 %3841, %v3348
  %v3843 = vpop.permute.xlu0 %3842
  %3846 = vset.pattern.permute.xlu0 0
  %3847 = vperm.xlu0 %3846, %v3349
  %v3848 = vpop.permute.xlu0 %3847
  %3851 = vset.pattern.permute.xlu0 0
  %3852 = vperm.xlu0 %3851, %v3350
  %v3853 = vpop.permute.xlu0 %3852
  %3856 = vset.pattern.permute.xlu0 0
  %3857 = vperm.xlu0 %3856, %v3351
  %v3858 = vpop.permute.xlu0 %3857
  %3861 = vset.pattern.permute.xlu0 0
  %3862 = vperm.xlu0 %3861, %v3352
  %v3863 = vpop.permute.xlu0 %3862
  %3866 = vset.pattern.permute.xlu0 0
  %3867 = vperm.xlu0 %3866, %v3353
  %v3868 = vpop.permute.xlu0 %3867
  %3871 = vset.pattern.permute.xlu0 0
  %3872 = vperm.xlu0 %3871, %v3354
  %v3873 = vpop.permute.xlu0 %3872
  %3876 = vset.pattern.permute.xlu0 0
  %3877 = vperm.xlu0 %3876, %v3355
  %v3878 = vpop.permute.xlu0 %3877
  %3881 = vset.pattern.permute.xlu0 0
  %3882 = vperm.xlu0 %3881, %v3356
  %v3883 = vpop.permute.xlu0 %3882
  %3886 = vset.pattern.permute.xlu0 0
  %3887 = vperm.xlu0 %3886, %v3357
  %v3888 = vpop.permute.xlu0 %3887
  %3891 = vset.pattern.permute.xlu0 0
  %3892 = vperm.xlu0 %3891, %v3358
  %v3893 = vpop.permute.xlu0 %3892
  %3896 = vset.pattern.permute.xlu0 0
  %3897 = vperm.xlu0 %3896, %v3359
  %v3898 = vpop.permute.xlu0 %3897
  %3901 = vset.pattern.permute.xlu0 0
  %3902 = vperm.xlu0 %3901, %v3360
  %v3903 = vpop.permute.xlu0 %3902
  %3906 = vset.pattern.permute.xlu0 0
  %3907 = vperm.xlu0 %3906, %v3361
  %v3908 = vpop.permute.xlu0 %3907
  %3911 = vset.pattern.permute.xlu0 0
  %3912 = vperm.xlu0 %3911, %v3362
  %v3913 = vpop.permute.xlu0 %3912
  %3916 = vset.pattern.permute.xlu0 0
  %3917 = vperm.xlu0 %3916, %v3363
  %v3918 = vpop.permute.xlu0 %3917
  %3921 = vset.pattern.permute.xlu0 0
  %3922 = vperm.xlu0 %3921, %v3364
  %v3923 = vpop.permute.xlu0 %3922
  %3926 = vset.pattern.permute.xlu0 0
  %3927 = vperm.xlu0 %3926, %v3365
  %v3928 = vpop.permute.xlu0 %3927
  %3931 = vset.pattern.permute.xlu0 0
  %3932 = vperm.xlu0 %3931, %v3366
  %v3933 = vpop.permute.xlu0 %3932
  %3936 = vset.pattern.permute.xlu0 0
  %3937 = vperm.xlu0 %3936, %v3367
  %v3938 = vpop.permute.xlu0 %3937
  %3941 = vset.pattern.permute.xlu0 0
  %3942 = vperm.xlu0 %3941, %v3368
  %v3943 = vpop.permute.xlu0 %3942
  %3946 = vset.pattern.permute.xlu0 0
  %3947 = vperm.xlu0 %3946, %v3369
  %v3948 = vpop.permute.xlu0 %3947
  %3951 = vset.pattern.permute.xlu0 0
  %3952 = vperm.xlu0 %3951, %v3370
  %v3953 = vpop.permute.xlu0 %3952
  %3956 = vset.pattern.permute.xlu0 0
  %3957 = vperm.xlu0 %3956, %v3371
  %v3958 = vpop.permute.xlu0 %3957
  %3961 = vset.pattern.permute.xlu0 0
  %3962 = vperm.xlu0 %3961, %v3372
  %v3963 = vpop.permute.xlu0 %3962
  %3966 = vset.pattern.permute.xlu0 0
  %3967 = vperm.xlu0 %3966, %v3373
  %v3968 = vpop.permute.xlu0 %3967
  %3971 = vset.pattern.permute.xlu0 0
  %3972 = vperm.xlu0 %3971, %v3374
  %v3973 = vpop.permute.xlu0 %3972
  %v3975 = vadd.f32 %v3015, %v3378
  %v3976 = vadd.f32 %v3016, %v3378
  %v3977 = vadd.f32 %v3017, %v3383
  %v3978 = vadd.f32 %v3018, %v3383
  %v3979 = vadd.f32 %v3019, %v3388
  %v3980 = vadd.f32 %v3020, %v3388
  %v3981 = vadd.f32 %v3021, %v3393
  %v3982 = vadd.f32 %v3022, %v3393
  %v3983 = vadd.f32 %v3023, %v3398
  %v3984 = vadd.f32 %v3024, %v3398
  %v3985 = vadd.f32 %v3025, %v3403
  %v3986 = vadd.f32 %v3026, %v3403
  %v3987 = vadd.f32 %v3027, %v3408
  %v3988 = vadd.f32 %v3028, %v3408
  %v3989 = vadd.f32 %v3029, %v3413
  %v3990 = vadd.f32 %v3030, %v3413
  %v3991 = vadd.f32 %v3031, %v3418
  %v3992 = vadd.f32 %v3032, %v3418
  %v3993 = vadd.f32 %v3033, %v3423
  %v3994 = vadd.f32 %v3034, %v3423
  %v3995 = vadd.f32 %v3035, %v3428
  %v3996 = vadd.f32 %v3036, %v3428
  %v3997 = vadd.f32 %v3037, %v3433
  %v3998 = vadd.f32 %v3038, %v3433
  %v3999 = vadd.f32 %v3039, %v3438
  %v4000 = vadd.f32 %v3040, %v3438
  %v4001 = vadd.f32 %v3041, %v3443
  %v4002 = vadd.f32 %v3042, %v3443
  %v4003 = vadd.f32 %v3043, %v3448
  %v4004 = vadd.f32 %v3044, %v3448
  %v4005 = vadd.f32 %v3045, %v3453
  %v4006 = vadd.f32 %v3046, %v3453
  %v4007 = vadd.f32 %v3047, %v3458
  %v4008 = vadd.f32 %v3048, %v3458
  %v4009 = vadd.f32 %v3049, %v3463
  %v4010 = vadd.f32 %v3050, %v3463
  %v4011 = vadd.f32 %v3051, %v3468
  %v4012 = vadd.f32 %v3052, %v3468
  %v4013 = vadd.f32 %v3053, %v3473
  %v4014 = vadd.f32 %v3054, %v3473
  %v4015 = vadd.f32 %v3055, %v3478
  %v4016 = vadd.f32 %v3056, %v3478
  %v4017 = vadd.f32 %v3057, %v3483
  %v4018 = vadd.f32 %v3058, %v3483
  %v4019 = vadd.f32 %v3059, %v3488
  %v4020 = vadd.f32 %v3060, %v3488
  %v4021 = vadd.f32 %v3061, %v3493
  %v4022 = vadd.f32 %v3062, %v3493
  %v4023 = vadd.f32 %v3063, %v3498
  %v4024 = vadd.f32 %v3064, %v3498
  %v4025 = vadd.f32 %v3065, %v3503
  %v4026 = vadd.f32 %v3066, %v3503
  %v4027 = vadd.f32 %v3067, %v3508
  %v4028 = vadd.f32 %v3068, %v3508
  %v4029 = vadd.f32 %v3069, %v3513
  %v4030 = vadd.f32 %v3070, %v3513
  %v4031 = vadd.f32 %v3071, %v3518
  %v4032 = vadd.f32 %v3072, %v3518
  %v4033 = vadd.f32 %v3073, %v3523
  %v4034 = vadd.f32 %v3074, %v3523
  %v4035 = vadd.f32 %v3075, %v3528
  %v4036 = vadd.f32 %v3076, %v3528
  %v4037 = vadd.f32 %v3077, %v3533
  %v4038 = vadd.f32 %v3078, %v3533
  %v4039 = vadd.f32 %v3079, %v3538
  %v4040 = vadd.f32 %v3080, %v3538
  %v4041 = vadd.f32 %v3081, %v3543
  %v4042 = vadd.f32 %v3082, %v3543
  %v4043 = vadd.f32 %v3083, %v3548
  %v4044 = vadd.f32 %v3084, %v3548
  %v4045 = vadd.f32 %v3085, %v3553
  %v4046 = vadd.f32 %v3086, %v3553
  %v4047 = vadd.f32 %v3087, %v3558
  %v4048 = vadd.f32 %v3088, %v3558
  %v4049 = vadd.f32 %v3089, %v3563
  %v4050 = vadd.f32 %v3090, %v3563
  %v4051 = vadd.f32 %v3091, %v3568
  %v4052 = vadd.f32 %v3092, %v3568
  %v4053 = vadd.f32 %v3093, %v3573
  %v4054 = vadd.f32 %v3094, %v3573
  %v4055 = vadd.f32 %v3095, %v3578
  %v4056 = vadd.f32 %v3096, %v3578
  %v4057 = vadd.f32 %v3097, %v3583
  %v4058 = vadd.f32 %v3098, %v3583
  %v4059 = vadd.f32 %v3099, %v3588
  %v4060 = vadd.f32 %v3100, %v3588
  %v4061 = vadd.f32 %v3101, %v3593
  %v4062 = vadd.f32 %v3102, %v3593
  %v4063 = vadd.f32 %v3103, %v3598
  %v4064 = vadd.f32 %v3104, %v3598
  %v4065 = vadd.f32 %v3105, %v3603
  %v4066 = vadd.f32 %v3106, %v3603
  %v4067 = vadd.f32 %v3107, %v3608
  %v4068 = vadd.f32 %v3108, %v3608
  %v4069 = vadd.f32 %v3109, %v3613
  %v4070 = vadd.f32 %v3110, %v3613
  %v4071 = vadd.f32 %v3111, %v3618
  %v4072 = vadd.f32 %v3112, %v3618
  %v4073 = vadd.f32 %v3113, %v3623
  %v4074 = vadd.f32 %v3114, %v3623
  %v4075 = vadd.f32 %v3115, %v3628
  %v4076 = vadd.f32 %v3116, %v3628
  %v4077 = vadd.f32 %v3117, %v3633
  %v4078 = vadd.f32 %v3118, %v3633
  %v4079 = vadd.f32 %v3119, %v3638
  %v4080 = vadd.f32 %v3120, %v3638
  %v4081 = vadd.f32 %v3121, %v3643
  %v4082 = vadd.f32 %v3122, %v3643
  %v4083 = vadd.f32 %v3123, %v3648
  %v4084 = vadd.f32 %v3124, %v3648
  %v4085 = vadd.f32 %v3125, %v3653
  %v4086 = vadd.f32 %v3126, %v3653
  %v4087 = vadd.f32 %v3127, %v3658
  %v4088 = vadd.f32 %v3128, %v3658
  %v4089 = vadd.f32 %v3129, %v3663
  %v4090 = vadd.f32 %v3130, %v3663
  %v4091 = vadd.f32 %v3131, %v3668
  %v4092 = vadd.f32 %v3132, %v3668
  %v4093 = vadd.f32 %v3133, %v3673
  %v4094 = vadd.f32 %v3134, %v3673
  %v4095 = vadd.f32 %v3135, %v3678
  %v4096 = vadd.f32 %v3136, %v3678
  %v4097 = vadd.f32 %v3137, %v3683
  %v4098 = vadd.f32 %v3138, %v3683
  %v4099 = vadd.f32 %v3139, %v3688
  %v4100 = vadd.f32 %v3140, %v3688
  %v4101 = vadd.f32 %v3141, %v3693
  %v4102 = vadd.f32 %v3142, %v3693
  %v4103 = vadd.f32 %v3143, %v3698
  %v4104 = vadd.f32 %v3144, %v3698
  %v4105 = vadd.f32 %v3145, %v3703
  %v4106 = vadd.f32 %v3146, %v3703
  %v4107 = vadd.f32 %v3147, %v3708
  %v4108 = vadd.f32 %v3148, %v3708
  %v4109 = vadd.f32 %v3149, %v3713
  %v4110 = vadd.f32 %v3150, %v3713
  %v4111 = vadd.f32 %v3151, %v3718
  %v4112 = vadd.f32 %v3152, %v3718
  %v4113 = vadd.f32 %v3153, %v3723
  %v4114 = vadd.f32 %v3154, %v3723
  %v4115 = vadd.f32 %v3155, %v3728
  %v4116 = vadd.f32 %v3156, %v3728
  %v4117 = vadd.f32 %v3157, %v3733
  %v4118 = vadd.f32 %v3158, %v3733
  %v4119 = vadd.f32 %v3159, %v3738
  %v4120 = vadd.f32 %v3160, %v3738
  %v4121 = vadd.f32 %v3161, %v3743
  %v4122 = vadd.f32 %v3162, %v3743
  %v4123 = vadd.f32 %v3163, %v3748
  %v4124 = vadd.f32 %v3164, %v3748
  %v4125 = vadd.f32 %v3165, %v3753
  %v4126 = vadd.f32 %v3166, %v3753
  %v4127 = vadd.f32 %v3167, %v3758
  %v4128 = vadd.f32 %v3168, %v3758
  %v4129 = vadd.f32 %v3169, %v3763
  %v4130 = vadd.f32 %v3170, %v3763
  %v4131 = vadd.f32 %v3171, %v3768
  %v4132 = vadd.f32 %v3172, %v3768
  %v4133 = vadd.f32 %v3173, %v3773
  %v4134 = vadd.f32 %v3174, %v3773
  %v4135 = vadd.f32 %v3175, %v3778
  %v4136 = vadd.f32 %v3176, %v3778
  %v4137 = vadd.f32 %v3177, %v3783
  %v4138 = vadd.f32 %v3178, %v3783
  %v4139 = vadd.f32 %v3179, %v3788
  %v4140 = vadd.f32 %v3180, %v3788
  %v4141 = vadd.f32 %v3181, %v3793
  %v4142 = vadd.f32 %v3182, %v3793
  %v4143 = vadd.f32 %v3183, %v3798
  %v4144 = vadd.f32 %v3184, %v3798
  %v4145 = vadd.f32 %v3185, %v3803
  %v4146 = vadd.f32 %v3186, %v3803
  %v4147 = vadd.f32 %v3187, %v3808
  %v4148 = vadd.f32 %v3188, %v3808
  %v4149 = vadd.f32 %v3189, %v3813
  %v4150 = vadd.f32 %v3190, %v3813
  %v4151 = vadd.f32 %v3191, %v3818
  %v4152 = vadd.f32 %v3192, %v3818
  %v4153 = vadd.f32 %v3193, %v3823
  %v4154 = vadd.f32 %v3194, %v3823
  %v4155 = vadd.f32 %v3195, %v3828
  %v4156 = vadd.f32 %v3196, %v3828
  %v4157 = vadd.f32 %v3197, %v3833
  %v4158 = vadd.f32 %v3198, %v3833
  %v4159 = vadd.f32 %v3199, %v3838
  %v4160 = vadd.f32 %v3200, %v3838
  %v4161 = vadd.f32 %v3201, %v3843
  %v4162 = vadd.f32 %v3202, %v3843
  %v4163 = vadd.f32 %v3203, %v3848
  %v4164 = vadd.f32 %v3204, %v3848
  %v4165 = vadd.f32 %v3205, %v3853
  %v4166 = vadd.f32 %v3206, %v3853
  %v4167 = vadd.f32 %v3207, %v3858
  %v4168 = vadd.f32 %v3208, %v3858
  %v4169 = vadd.f32 %v3209, %v3863
  %v4170 = vadd.f32 %v3210, %v3863
  %v4171 = vadd.f32 %v3211, %v3868
  %v4172 = vadd.f32 %v3212, %v3868
  %v4173 = vadd.f32 %v3213, %v3873
  %v4174 = vadd.f32 %v3214, %v3873
  %v4175 = vadd.f32 %v3215, %v3878
  %v4176 = vadd.f32 %v3216, %v3878
  %v4177 = vadd.f32 %v3217, %v3883
  %v4178 = vadd.f32 %v3218, %v3883
  %v4179 = vadd.f32 %v3219, %v3888
  %v4180 = vadd.f32 %v3220, %v3888
  %v4181 = vadd.f32 %v3221, %v3893
  %v4182 = vadd.f32 %v3222, %v3893
  %v4183 = vadd.f32 %v3223, %v3898
  %v4184 = vadd.f32 %v3224, %v3898
  %v4185 = vadd.f32 %v3225, %v3903
  %v4186 = vadd.f32 %v3226, %v3903
  %v4187 = vadd.f32 %v3227, %v3908
  %v4188 = vadd.f32 %v3228, %v3908
  %v4189 = vadd.f32 %v3229, %v3913
  %v4190 = vadd.f32 %v3230, %v3913
  %v4191 = vadd.f32 %v3231, %v3918
  %v4192 = vadd.f32 %v3232, %v3918
  %v4193 = vadd.f32 %v3233, %v3923
  %v4194 = vadd.f32 %v3234, %v3923
  %v4195 = vadd.f32 %v3235, %v3928
  %v4196 = vadd.f32 %v3236, %v3928
  %v4197 = vadd.f32 %v3237, %v3933
  %v4198 = vadd.f32 %v3238, %v3933
  %v4199 = vadd.f32 %v3239, %v3938
  %v4200 = vadd.f32 %v3240, %v3938
  %v4201 = vadd.f32 %v3241, %v3943
  %v4202 = vadd.f32 %v3242, %v3943
  %v4203 = vadd.f32 %v3243, %v3948
  %v4204 = vadd.f32 %v3244, %v3948
  %v4205 = vadd.f32 %v3245, %v3953
  %v4206 = vadd.f32 %v3246, %v3953
  %v4207 = vadd.f32 %v3247, %v3958
  %v4208 = vadd.f32 %v3248, %v3958
  %v4209 = vadd.f32 %v3249, %v3963
  %v4210 = vadd.f32 %v3250, %v3963
  %v4211 = vadd.f32 %v3251, %v3968
  %v4212 = vadd.f32 %v3252, %v3968
  %v4213 = vadd.f32 %v3253, %v3973
  %v4214 = vadd.f32 %v3254, %v3973
  %4215 = vst [vmem:[%s3] sm:$0xff] %v3975
  %4216 = vst.msk [vmem:[%s3 + $0x8] sm:$0xff] %vm254, %v3976
  %4217 = vst [vmem:[%s3 + $0x10] sm:$0xff] %v3977
  %4218 = vst.msk [vmem:[%s3 + $0x18] sm:$0xff] %vm254, %v3978
  %4219 = vst [vmem:[%s3 + $0x20] sm:$0xff] %v3979
  %4220 = vst.msk [vmem:[%s3 + $0x28] sm:$0xff] %vm254, %v3980
  %4221 = vst [vmem:[%s3 + $0x30] sm:$0xff] %v3981
  %4222 = vst.msk [vmem:[%s3 + $0x38] sm:$0xff] %vm254, %v3982
  %4223 = vst [vmem:[%s3 + $0x40] sm:$0xff] %v3983
  %4224 = vst.msk [vmem:[%s3 + $0x48] sm:$0xff] %vm254, %v3984
  %4225 = vst [vmem:[%s3 + $0x50] sm:$0xff] %v3985
  %4226 = vst.msk [vmem:[%s3 + $0x58] sm:$0xff] %vm254, %v3986
  %4227 = vst [vmem:[%s3 + $0x60] sm:$0xff] %v3987
  %4228 = vst.msk [vmem:[%s3 + $0x68] sm:$0xff] %vm254, %v3988
  %4229 = vst [vmem:[%s3 + $0x70] sm:$0xff] %v3989
  %4230 = vst.msk [vmem:[%s3 + $0x78] sm:$0xff] %vm254, %v3990
  %4231 = vst [vmem:[%s3 + $0x80] sm:$0xff] %v3991
  %4232 = vst.msk [vmem:[%s3 + $0x88] sm:$0xff] %vm254, %v3992
  %4233 = vst [vmem:[%s3 + $0x90] sm:$0xff] %v3993
  %4234 = vst.msk [vmem:[%s3 + $0x98] sm:$0xff] %vm254, %v3994
  %4235 = vst [vmem:[%s3 + $0xa0] sm:$0xff] %v3995
  %4236 = vst.msk [vmem:[%s3 + $0xa8] sm:$0xff] %vm254, %v3996
  %4237 = vst [vmem:[%s3 + $0xb0] sm:$0xff] %v3997
  %4238 = vst.msk [vmem:[%s3 + $0xb8] sm:$0xff] %vm254, %v3998
  %4239 = vst [vmem:[%s3 + $0xc0] sm:$0xff] %v3999
  %4240 = vst.msk [vmem:[%s3 + $0xc8] sm:$0xff] %vm254, %v4000
  %4241 = vst [vmem:[%s3 + $0xd0] sm:$0xff] %v4001
  %4242 = vst.msk [vmem:[%s3 + $0xd8] sm:$0xff] %vm254, %v4002
  %4243 = vst [vmem:[%s3 + $0xe0] sm:$0xff] %v4003
  %4244 = vst.msk [vmem:[%s3 + $0xe8] sm:$0xff] %vm254, %v4004
  %4245 = vst [vmem:[%s3 + $0xf0] sm:$0xff] %v4005
  %4246 = vst.msk [vmem:[%s3 + $0xf8] sm:$0xff] %vm254, %v4006
  %4247 = vst [vmem:[%s3 + $0x100] sm:$0xff] %v4007
  %4248 = vst.msk [vmem:[%s3 + $0x108] sm:$0xff] %vm254, %v4008
  %4249 = vst [vmem:[%s3 + $0x110] sm:$0xff] %v4009
  %4250 = vst.msk [vmem:[%s3 + $0x118] sm:$0xff] %vm254, %v4010
  %4251 = vst [vmem:[%s3 + $0x120] sm:$0xff] %v4011
  %4252 = vst.msk [vmem:[%s3 + $0x128] sm:$0xff] %vm254, %v4012
  %4253 = vst [vmem:[%s3 + $0x130] sm:$0xff] %v4013
  %4254 = vst.msk [vmem:[%s3 + $0x138] sm:$0xff] %vm254, %v4014
  %4255 = vst [vmem:[%s3 + $0x140] sm:$0xff] %v4015
  %4256 = vst.msk [vmem:[%s3 + $0x148] sm:$0xff] %vm254, %v4016
  %4257 = vst [vmem:[%s3 + $0x150] sm:$0xff] %v4017
  %4258 = vst.msk [vmem:[%s3 + $0x158] sm:$0xff] %vm254, %v4018
  %4259 = vst [vmem:[%s3 + $0x160] sm:$0xff] %v4019
  %4260 = vst.msk [vmem:[%s3 + $0x168] sm:$0xff] %vm254, %v4020
  %4261 = vst [vmem:[%s3 + $0x170] sm:$0xff] %v4021
  %4262 = vst.msk [vmem:[%s3 + $0x178] sm:$0xff] %vm254, %v4022
  %4263 = vst [vmem:[%s3 + $0x180] sm:$0xff] %v4023
  %4264 = vst.msk [vmem:[%s3 + $0x188] sm:$0xff] %vm254, %v4024
  %4265 = vst [vmem:[%s3 + $0x190] sm:$0xff] %v4025
  %4266 = vst.msk [vmem:[%s3 + $0x198] sm:$0xff] %vm254, %v4026
  %4267 = vst [vmem:[%s3 + $0x1a0] sm:$0xff] %v4027
  %4268 = vst.msk [vmem:[%s3 + $0x1a8] sm:$0xff] %vm254, %v4028
  %4269 = vst [vmem:[%s3 + $0x1b0] sm:$0xff] %v4029
  %4270 = vst.msk [vmem:[%s3 + $0x1b8] sm:$0xff] %vm254, %v4030
  %4271 = vst [vmem:[%s3 + $0x1c0] sm:$0xff] %v4031
  %4272 = vst.msk [vmem:[%s3 + $0x1c8] sm:$0xff] %vm254, %v4032
  %4273 = vst [vmem:[%s3 + $0x1d0] sm:$0xff] %v4033
  %4274 = vst.msk [vmem:[%s3 + $0x1d8] sm:$0xff] %vm254, %v4034
  %4275 = vst [vmem:[%s3 + $0x1e0] sm:$0xff] %v4035
  %4276 = vst.msk [vmem:[%s3 + $0x1e8] sm:$0xff] %vm254, %v4036
  %4277 = vst [vmem:[%s3 + $0x1f0] sm:$0xff] %v4037
  %4278 = vst.msk [vmem:[%s3 + $0x1f8] sm:$0xff] %vm254, %v4038
  %4279 = vst [vmem:[%s3 + $0x200] sm:$0xff] %v4039
  %4280 = vst.msk [vmem:[%s3 + $0x208] sm:$0xff] %vm254, %v4040
  %4281 = vst [vmem:[%s3 + $0x210] sm:$0xff] %v4041
  %4282 = vst.msk [vmem:[%s3 + $0x218] sm:$0xff] %vm254, %v4042
  %4283 = vst [vmem:[%s3 + $0x220] sm:$0xff] %v4043
  %4284 = vst.msk [vmem:[%s3 + $0x228] sm:$0xff] %vm254, %v4044
  %4285 = vst [vmem:[%s3 + $0x230] sm:$0xff] %v4045
  %4286 = vst.msk [vmem:[%s3 + $0x238] sm:$0xff] %vm254, %v4046
  %4287 = vst [vmem:[%s3 + $0x240] sm:$0xff] %v4047
  %4288 = vst.msk [vmem:[%s3 + $0x248] sm:$0xff] %vm254, %v4048
  %4289 = vst [vmem:[%s3 + $0x250] sm:$0xff] %v4049
  %4290 = vst.msk [vmem:[%s3 + $0x258] sm:$0xff] %vm254, %v4050
  %4291 = vst [vmem:[%s3 + $0x260] sm:$0xff] %v4051
  %4292 = vst.msk [vmem:[%s3 + $0x268] sm:$0xff] %vm254, %v4052
  %4293 = vst [vmem:[%s3 + $0x270] sm:$0xff] %v4053
  %4294 = vst.msk [vmem:[%s3 + $0x278] sm:$0xff] %vm254, %v4054
  %4295 = vst [vmem:[%s3 + $0x280] sm:$0xff] %v4055
  %4296 = vst.msk [vmem:[%s3 + $0x288] sm:$0xff] %vm254, %v4056
  %4297 = vst [vmem:[%s3 + $0x290] sm:$0xff] %v4057
  %4298 = vst.msk [vmem:[%s3 + $0x298] sm:$0xff] %vm254, %v4058
  %4299 = vst [vmem:[%s3 + $0x2a0] sm:$0xff] %v4059
  %4300 = vst.msk [vmem:[%s3 + $0x2a8] sm:$0xff] %vm254, %v4060
  %4301 = vst [vmem:[%s3 + $0x2b0] sm:$0xff] %v4061
  %4302 = vst.msk [vmem:[%s3 + $0x2b8] sm:$0xff] %vm254, %v4062
  %4303 = vst [vmem:[%s3 + $0x2c0] sm:$0xff] %v4063
  %4304 = vst.msk [vmem:[%s3 + $0x2c8] sm:$0xff] %vm254, %v4064
  %4305 = vst [vmem:[%s3 + $0x2d0] sm:$0xff] %v4065
  %4306 = vst.msk [vmem:[%s3 + $0x2d8] sm:$0xff] %vm254, %v4066
  %4307 = vst [vmem:[%s3 + $0x2e0] sm:$0xff] %v4067
  %4308 = vst.msk [vmem:[%s3 + $0x2e8] sm:$0xff] %vm254, %v4068
  %4309 = vst [vmem:[%s3 + $0x2f0] sm:$0xff] %v4069
  %4310 = vst.msk [vmem:[%s3 + $0x2f8] sm:$0xff] %vm254, %v4070
  %4311 = vst [vmem:[%s3 + $0x300] sm:$0xff] %v4071
  %4312 = vst.msk [vmem:[%s3 + $0x308] sm:$0xff] %vm254, %v4072
  %4313 = vst [vmem:[%s3 + $0x310] sm:$0xff] %v4073
  %4314 = vst.msk [vmem:[%s3 + $0x318] sm:$0xff] %vm254, %v4074
  %4315 = vst [vmem:[%s3 + $0x320] sm:$0xff] %v4075
  %4316 = vst.msk [vmem:[%s3 + $0x328] sm:$0xff] %vm254, %v4076
  %4317 = vst [vmem:[%s3 + $0x330] sm:$0xff] %v4077
  %4318 = vst.msk [vmem:[%s3 + $0x338] sm:$0xff] %vm254, %v4078
  %4319 = vst [vmem:[%s3 + $0x340] sm:$0xff] %v4079
  %4320 = vst.msk [vmem:[%s3 + $0x348] sm:$0xff] %vm254, %v4080
  %4321 = vst [vmem:[%s3 + $0x350] sm:$0xff] %v4081
  %4322 = vst.msk [vmem:[%s3 + $0x358] sm:$0xff] %vm254, %v4082
  %4323 = vst [vmem:[%s3 + $0x360] sm:$0xff] %v4083
  %4324 = vst.msk [vmem:[%s3 + $0x368] sm:$0xff] %vm254, %v4084
  %4325 = vst [vmem:[%s3 + $0x370] sm:$0xff] %v4085
  %4326 = vst.msk [vmem:[%s3 + $0x378] sm:$0xff] %vm254, %v4086
  %4327 = vst [vmem:[%s3 + $0x380] sm:$0xff] %v4087
  %4328 = vst.msk [vmem:[%s3 + $0x388] sm:$0xff] %vm254, %v4088
  %4329 = vst [vmem:[%s3 + $0x390] sm:$0xff] %v4089
  %4330 = vst.msk [vmem:[%s3 + $0x398] sm:$0xff] %vm254, %v4090
  %4331 = vst [vmem:[%s3 + $0x3a0] sm:$0xff] %v4091
  %4332 = vst.msk [vmem:[%s3 + $0x3a8] sm:$0xff] %vm254, %v4092
  %4333 = vst [vmem:[%s3 + $0x3b0] sm:$0xff] %v4093
  %4334 = vst.msk [vmem:[%s3 + $0x3b8] sm:$0xff] %vm254, %v4094
  %4335 = vst [vmem:[%s3 + $0x3c0] sm:$0xff] %v4095
  %4336 = vst.msk [vmem:[%s3 + $0x3c8] sm:$0xff] %vm254, %v4096
  %4337 = vst [vmem:[%s3 + $0x3d0] sm:$0xff] %v4097
  %4338 = vst.msk [vmem:[%s3 + $0x3d8] sm:$0xff] %vm254, %v4098
  %4339 = vst [vmem:[%s3 + $0x3e0] sm:$0xff] %v4099
  %4340 = vst.msk [vmem:[%s3 + $0x3e8] sm:$0xff] %vm254, %v4100
  %4341 = vst [vmem:[%s3 + $0x3f0] sm:$0xff] %v4101
  %4342 = vst.msk [vmem:[%s3 + $0x3f8] sm:$0xff] %vm254, %v4102
  %4343 = vst [vmem:[%s3 + $0x400] sm:$0xff] %v4103
  %4344 = vst.msk [vmem:[%s3 + $0x408] sm:$0xff] %vm254, %v4104
  %4345 = vst [vmem:[%s3 + $0x410] sm:$0xff] %v4105
  %4346 = vst.msk [vmem:[%s3 + $0x418] sm:$0xff] %vm254, %v4106
  %4347 = vst [vmem:[%s3 + $0x420] sm:$0xff] %v4107
  %4348 = vst.msk [vmem:[%s3 + $0x428] sm:$0xff] %vm254, %v4108
  %4349 = vst [vmem:[%s3 + $0x430] sm:$0xff] %v4109
  %4350 = vst.msk [vmem:[%s3 + $0x438] sm:$0xff] %vm254, %v4110
  %4351 = vst [vmem:[%s3 + $0x440] sm:$0xff] %v4111
  %4352 = vst.msk [vmem:[%s3 + $0x448] sm:$0xff] %vm254, %v4112
  %4353 = vst [vmem:[%s3 + $0x450] sm:$0xff] %v4113
  %4354 = vst.msk [vmem:[%s3 + $0x458] sm:$0xff] %vm254, %v4114
  %4355 = vst [vmem:[%s3 + $0x460] sm:$0xff] %v4115
  %4356 = vst.msk [vmem:[%s3 + $0x468] sm:$0xff] %vm254, %v4116
  %4357 = vst [vmem:[%s3 + $0x470] sm:$0xff] %v4117
  %4358 = vst.msk [vmem:[%s3 + $0x478] sm:$0xff] %vm254, %v4118
  %4359 = vst [vmem:[%s3 + $0x480] sm:$0xff] %v4119
  %4360 = vst.msk [vmem:[%s3 + $0x488] sm:$0xff] %vm254, %v4120
  %4361 = vst [vmem:[%s3 + $0x490] sm:$0xff] %v4121
  %4362 = vst.msk [vmem:[%s3 + $0x498] sm:$0xff] %vm254, %v4122
  %4363 = vst [vmem:[%s3 + $0x4a0] sm:$0xff] %v4123
  %4364 = vst.msk [vmem:[%s3 + $0x4a8] sm:$0xff] %vm254, %v4124
  %4365 = vst [vmem:[%s3 + $0x4b0] sm:$0xff] %v4125
  %4366 = vst.msk [vmem:[%s3 + $0x4b8] sm:$0xff] %vm254, %v4126
  %4367 = vst [vmem:[%s3 + $0x4c0] sm:$0xff] %v4127
  %4368 = vst.msk [vmem:[%s3 + $0x4c8] sm:$0xff] %vm254, %v4128
  %4369 = vst [vmem:[%s3 + $0x4d0] sm:$0xff] %v4129
  %4370 = vst.msk [vmem:[%s3 + $0x4d8] sm:$0xff] %vm254, %v4130
  %4371 = vst [vmem:[%s3 + $0x4e0] sm:$0xff] %v4131
  %4372 = vst.msk [vmem:[%s3 + $0x4e8] sm:$0xff] %vm254, %v4132
  %4373 = vst [vmem:[%s3 + $0x4f0] sm:$0xff] %v4133
  %4374 = vst.msk [vmem:[%s3 + $0x4f8] sm:$0xff] %vm254, %v4134
  %4375 = vst [vmem:[%s3 + $0x500] sm:$0xff] %v4135
  %4376 = vst.msk [vmem:[%s3 + $0x508] sm:$0xff] %vm254, %v4136
  %4377 = vst [vmem:[%s3 + $0x510] sm:$0xff] %v4137
  %4378 = vst.msk [vmem:[%s3 + $0x518] sm:$0xff] %vm254, %v4138
  %4379 = vst [vmem:[%s3 + $0x520] sm:$0xff] %v4139
  %4380 = vst.msk [vmem:[%s3 + $0x528] sm:$0xff] %vm254, %v4140
  %4381 = vst [vmem:[%s3 + $0x530] sm:$0xff] %v4141
  %4382 = vst.msk [vmem:[%s3 + $0x538] sm:$0xff] %vm254, %v4142
  %4383 = vst [vmem:[%s3 + $0x540] sm:$0xff] %v4143
  %4384 = vst.msk [vmem:[%s3 + $0x548] sm:$0xff] %vm254, %v4144
  %4385 = vst [vmem:[%s3 + $0x550] sm:$0xff] %v4145
  %4386 = vst.msk [vmem:[%s3 + $0x558] sm:$0xff] %vm254, %v4146
  %4387 = vst [vmem:[%s3 + $0x560] sm:$0xff] %v4147
  %4388 = vst.msk [vmem:[%s3 + $0x568] sm:$0xff] %vm254, %v4148
  %4389 = vst [vmem:[%s3 + $0x570] sm:$0xff] %v4149
  %4390 = vst.msk [vmem:[%s3 + $0x578] sm:$0xff] %vm254, %v4150
  %4391 = vst [vmem:[%s3 + $0x580] sm:$0xff] %v4151
  %4392 = vst.msk [vmem:[%s3 + $0x588] sm:$0xff] %vm254, %v4152
  %4393 = vst [vmem:[%s3 + $0x590] sm:$0xff] %v4153
  %4394 = vst.msk [vmem:[%s3 + $0x598] sm:$0xff] %vm254, %v4154
  %4395 = vst [vmem:[%s3 + $0x5a0] sm:$0xff] %v4155
  %4396 = vst.msk [vmem:[%s3 + $0x5a8] sm:$0xff] %vm254, %v4156
  %4397 = vst [vmem:[%s3 + $0x5b0] sm:$0xff] %v4157
  %4398 = vst.msk [vmem:[%s3 + $0x5b8] sm:$0xff] %vm254, %v4158
  %4399 = vst [vmem:[%s3 + $0x5c0] sm:$0xff] %v4159
  %4400 = vst.msk [vmem:[%s3 + $0x5c8] sm:$0xff] %vm254, %v4160
  %4401 = vst [vmem:[%s3 + $0x5d0] sm:$0xff] %v4161
  %4402 = vst.msk [vmem:[%s3 + $0x5d8] sm:$0xff] %vm254, %v4162
  %4403 = vst [vmem:[%s3 + $0x5e0] sm:$0xff] %v4163
  %4404 = vst.msk [vmem:[%s3 + $0x5e8] sm:$0xff] %vm254, %v4164
  %4405 = vst [vmem:[%s3 + $0x5f0] sm:$0xff] %v4165
  %4406 = vst.msk [vmem:[%s3 + $0x5f8] sm:$0xff] %vm254, %v4166
  %4407 = vst [vmem:[%s3 + $0x600] sm:$0xff] %v4167
  %4408 = vst.msk [vmem:[%s3 + $0x608] sm:$0xff] %vm254, %v4168
  %4409 = vst [vmem:[%s3 + $0x610] sm:$0xff] %v4169
  %4410 = vst.msk [vmem:[%s3 + $0x618] sm:$0xff] %vm254, %v4170
  %4411 = vst [vmem:[%s3 + $0x620] sm:$0xff] %v4171
  %4412 = vst.msk [vmem:[%s3 + $0x628] sm:$0xff] %vm254, %v4172
  %4413 = vst [vmem:[%s3 + $0x630] sm:$0xff] %v4173
  %4414 = vst.msk [vmem:[%s3 + $0x638] sm:$0xff] %vm254, %v4174
  %4415 = vst [vmem:[%s3 + $0x640] sm:$0xff] %v4175
  %4416 = vst.msk [vmem:[%s3 + $0x648] sm:$0xff] %vm254, %v4176
  %4417 = vst [vmem:[%s3 + $0x650] sm:$0xff] %v4177
  %4418 = vst.msk [vmem:[%s3 + $0x658] sm:$0xff] %vm254, %v4178
  %4419 = vst [vmem:[%s3 + $0x660] sm:$0xff] %v4179
  %4420 = vst.msk [vmem:[%s3 + $0x668] sm:$0xff] %vm254, %v4180
  %4421 = vst [vmem:[%s3 + $0x670] sm:$0xff] %v4181
  %4422 = vst.msk [vmem:[%s3 + $0x678] sm:$0xff] %vm254, %v4182
  %4423 = vst [vmem:[%s3 + $0x680] sm:$0xff] %v4183
  %4424 = vst.msk [vmem:[%s3 + $0x688] sm:$0xff] %vm254, %v4184
  %4425 = vst [vmem:[%s3 + $0x690] sm:$0xff] %v4185
  %4426 = vst.msk [vmem:[%s3 + $0x698] sm:$0xff] %vm254, %v4186
  %4427 = vst [vmem:[%s3 + $0x6a0] sm:$0xff] %v4187
  %4428 = vst.msk [vmem:[%s3 + $0x6a8] sm:$0xff] %vm254, %v4188
  %4429 = vst [vmem:[%s3 + $0x6b0] sm:$0xff] %v4189
  %4430 = vst.msk [vmem:[%s3 + $0x6b8] sm:$0xff] %vm254, %v4190
  %4431 = vst [vmem:[%s3 + $0x6c0] sm:$0xff] %v4191
  %4432 = vst.msk [vmem:[%s3 + $0x6c8] sm:$0xff] %vm254, %v4192
  %4433 = vst [vmem:[%s3 + $0x6d0] sm:$0xff] %v4193
  %4434 = vst.msk [vmem:[%s3 + $0x6d8] sm:$0xff] %vm254, %v4194
  %4435 = vst [vmem:[%s3 + $0x6e0] sm:$0xff] %v4195
  %4436 = vst.msk [vmem:[%s3 + $0x6e8] sm:$0xff] %vm254, %v4196
  %4437 = vst [vmem:[%s3 + $0x6f0] sm:$0xff] %v4197
  %4438 = vst.msk [vmem:[%s3 + $0x6f8] sm:$0xff] %vm254, %v4198
  %4439 = vst [vmem:[%s3 + $0x700] sm:$0xff] %v4199
  %4440 = vst.msk [vmem:[%s3 + $0x708] sm:$0xff] %vm254, %v4200
  %4441 = vst [vmem:[%s3 + $0x710] sm:$0xff] %v4201
  %4442 = vst.msk [vmem:[%s3 + $0x718] sm:$0xff] %vm254, %v4202
  %4443 = vst [vmem:[%s3 + $0x720] sm:$0xff] %v4203
  %4444 = vst.msk [vmem:[%s3 + $0x728] sm:$0xff] %vm254, %v4204
  %4445 = vst [vmem:[%s3 + $0x730] sm:$0xff] %v4205
  %4446 = vst.msk [vmem:[%s3 + $0x738] sm:$0xff] %vm254, %v4206
  %4447 = vst [vmem:[%s3 + $0x740] sm:$0xff] %v4207
  %4448 = vst.msk [vmem:[%s3 + $0x748] sm:$0xff] %vm254, %v4208
  %4449 = vst [vmem:[%s3 + $0x750] sm:$0xff] %v4209
  %4450 = vst.msk [vmem:[%s3 + $0x758] sm:$0xff] %vm254, %v4210
  %4451 = vst [vmem:[%s3 + $0x760] sm:$0xff] %v4211
  %4452 = vst.msk [vmem:[%s3 + $0x768] sm:$0xff] %vm254, %v4212
  %4453 = vst [vmem:[%s3 + $0x770] sm:$0xff] %v4213
  %4454 = vst.msk [vmem:[%s3 + $0x778] sm:$0xff] %vm254, %v4214
  // Predicated region
  $region14: #{tpu_custom_call.1} parent=0 // pred_check
    _
  $region15: #{tpu_custom_call.1} parent=0 // pred_check_branch
    %4456 = sbr.rel (0) target = $region17
  $region16: #{tpu_custom_call.1} parent=0 // pred_region
    _
  $region17: #{tpu_custom_call.1} parent=0 // pred_fallthru
    _
  // Predicated region
  $region18: #{tpu_custom_call.1} parent=0 // pred_check
    _
  $region19: #{tpu_custom_call.1} parent=0 // pred_check_branch
    %4458 = sbr.rel (0) target = $region21
  $region20: #{tpu_custom_call.1} parent=0 // pred_region
    _
  $region21: #{tpu_custom_call.1} parent=0 // pred_fallthru
    _

</llo_original>
